<compile_context>
chip_gen: v7x
topology: tpu7x:2x2x1
jax: 0.10.0
libtpu: 0.0.40
codegen_flags: <defaults>
</compile_context>

<pallas_src>
import functools

import numpy as np
import jax
import jax.numpy as jnp
from jax.experimental import pallas as pl
from jax.experimental.pallas import tpu as pltpu

C_REAL = 30      # channel count fixed by the SRM filter bank
CP = 32          # padded channel rows (== 30 trans1 + 2 trans2 outputs)
CIN_SRM = 8      # SRM input channel (1) padded to one sublane tile


# ----------------------------------------------------------------------------
# Static tap metadata (single source of truth for offsets / masks / packing)
# ----------------------------------------------------------------------------
def _taps(K, skip_center=False):
  taps = []
  for kh in range(K):
    for kw in range(K):
      if skip_center and kh == K // 2 and kw == K // 2:
        continue
      taps.append((kh, kw))
  return taps


def _tap_offsets(taps, dil, pad, W):
  # flat-pixel shift of each tap: output pixel p reads input pixel p + off
  return tuple((kh * dil - pad) * W + (kw * dil - pad) for kh, kw in taps)


def _tap_masks(taps, dil, pad, H, W):
  # mask[t, h*W + w] = 1 iff pixel (h+dy, w+dx) lies inside the HxW image
  rows = []
  for kh, kw in taps:
    dy, dx = kh * dil - pad, kw * dil - pad
    m = np.zeros((H, W), np.float32)
    m[max(0, -dy):min(H, H - dy), max(0, -dx):min(W, W - dx)] = 1.0
    rows.append(m.reshape(-1))
  return np.stack(rows, axis=0)          # (T, H*W)


# ----------------------------------------------------------------------------
# Host-side weight packing (BN scale folded in, channels padded to CP)
# ----------------------------------------------------------------------------
def _np(a):
  return np.asarray(a, np.float32)


def _pack_spatial(w_hwio, scale, taps, cin_pad):
  # (K, K, Cin, Cout) -> (CP, T*cin_pad) matching the kernel's im2col row order
  w = _np(w_hwio) * _np(scale)[None, None, None, :]
  _, _, cin, cout = w.shape
  blocks = []
  for kh, kw in taps:
    blk = np.zeros((CP, cin_pad), np.float32)
    blk[:cout, :cin] = w[kh, kw].T
    blocks.append(blk)
  return np.concatenate(blocks, axis=1)


def _pack_1x1(w_hwio, scale=None, row0=0):
  w = _np(w_hwio)[0, 0]                  # (cin, cout)
  if scale is not None:
    w = w * _np(scale)[None, :]
  cin, cout = w.shape
  out = np.zeros((CP, CP), np.float32)
  out[row0:row0 + cout, :cin] = w.T
  return out


def _pack_depthwise(dw_hwio, taps):
  # depthwise 3x3 -> block-diagonal (CP, T*CP) weight for one MXU matmul
  w = _np(dw_hwio)                       # (3, 3, 1, C)
  cout = w.shape[-1]
  blocks = []
  for kh, kw in taps:
    blk = np.zeros((CP, CP), np.float32)
    blk[np.arange(cout), np.arange(cout)] = w[kh, kw, 0, :]
    blocks.append(blk)
  return np.concatenate(blocks, axis=1)


def _bias_col(b, row0=0):
  b = _np(b).reshape(-1)
  col = np.zeros((CP,), np.float32)
  col[row0:row0 + b.shape[0]] = b
  return col


# ----------------------------------------------------------------------------
# The single fused kernel (one grid step == `nb` samples, lane axis = nb*npix)
# ----------------------------------------------------------------------------
def _fused_kernel(
    x_ref, m_ref, b_ref,
    srm_w_ref, mk_w_ref, w1_ref, w3_ref,
    dw_w_ref, pw_w_ref, t2_w_ref,
    out_ref, *,
    L, npix, nb, num_modules,
    srm_offs, mk_offs, d_offs, dw_offs,
    srm_full, mk_full, d_full, dw_full,
    srm_row0, mk_row0, d_row0, dw_row0,
    b1_cols, b3_cols, srm_b, mk_b, dw_b, pw_b, t2_b):
  f32 = jnp.float32

  def dot(a, b):
    return jnp.dot(a, b, preferred_element_type=f32)

  def bias(j):                       # (CP, 1) column, broadcast along lanes
    return b_ref[:, j:j + 1]

  def relu(v):
    return jnp.maximum(v, 0.0)

  def spatial(y, offs, full, row0, w):
    # im2col via XLU rolls + 0/1 masks, one MXU matmul per conv.
    rows = []
    for ti, s in enumerate(offs):
      t = y if s == 0 else pltpu.roll(y, shift=(-s) % L, axis=1)
      if not full[ti]:
        t = t * m_ref[row0 + ti:row0 + ti + 1, :]
      rows.append(t)
    return dot(w, jnp.concatenate(rows, axis=0))

  # ---- SRM 5x5 conv (BN scale folded) + bias + ReLU ------------------------
  y = relu(spatial(x_ref[0], srm_offs, srm_full, srm_row0, srm_w_ref[...])
           + bias(srm_b))

  # ---- DC_branchl: CentralMaskedConv2d 3x3 (centre tap skipped) ------------
  y = relu(spatial(y, mk_offs, mk_full, mk_row0, mk_w_ref[...]) + bias(mk_b))
  # two 1x1 conv + BN + ReLU
  y = relu(dot(w1_ref[0], y) + bias(b1_cols[0]))
  y = relu(dot(w1_ref[1], y) + bias(b1_cols[1]))
  # num_modules x DCl: x + (dilated 3x3 + BN + ReLU -> 1x1 + BN)
  for m in range(num_modules):
    z = relu(spatial(y, d_offs, d_full, d_row0, w3_ref[m]) + bias(b3_cols[m]))
    z = dot(w1_ref[2 + m], z) + bias(b1_cols[2 + m])
    y = y + z
  # final 1x1 conv + BN + ReLU
  y = relu(dot(w1_ref[2 + num_modules], y) + bias(b1_cols[2 + num_modules]))

  # ---- trans1: Sepconv = depthwise 3x3 (block-diag matmul) -> pointwise ----
  o = spatial(y, dw_offs, dw_full, dw_row0, dw_w_ref[...]) + bias(dw_b)
  o = dot(pw_w_ref[...], o) + bias(pw_b)          # rows 0:30 = trans1 output
  # ---- trans2: 1x1 (scale folded) + bias + ReLU, lands in rows 30:32 -------
  o = o + relu(dot(t2_w_ref[...], y) + bias(t2_b))

  # per-sample, lane-aligned stores into the combined (C+2)-row output
  for b in range(nb):
    out_ref[0, b, :, :] = o[:, b * npix:(b + 1) * npix].astype(out_ref.dtype)


# ----------------------------------------------------------------------------
# Pallas wrapper
# ----------------------------------------------------------------------------
def forward_pallas(x_nchw, p, num_modules, samples_per_step=None):
  N, cin_img, H, W = x_nchw.shape
  assert cin_img == 1
  assert p["c1"]["w"].shape[-1] == C_REAL, "model fixes in_ch=30 (SRM bank)"
  npix = H * W
  assert npix % 128 == 0, "H*W must be a multiple of 128 for lane-dense layout"

  if samples_per_step is None:
    # >=2 grid steps keeps both v7x TensorCores busy; on single-TC chips
    # (v5e / v6e) pass samples_per_step=N to fold the whole batch into 1 step.
    samples_per_step = N // 2 if (N >= 2 and N % 2 == 0) else 1
  nb = samples_per_step
  assert N % nb == 0
  steps = N // nb
  L = nb * npix
  M = num_modules

  # ---- static tap metadata --------------------------------------------------
  srm_taps = _taps(5)
  mk_taps = _taps(3, skip_center=True)        # CentralMaskedConv2d
  d_taps = _taps(3)
  dw_taps = _taps(3)
  srm_offs = _tap_offsets(srm_taps, 1, 2, W)
  mk_offs = _tap_offsets(mk_taps, 1, 1, W)
  d_offs = _tap_offsets(d_taps, 2, 2, W)      # dilation = stride = 2
  dw_offs = _tap_offsets(dw_taps, 1, 1, W)

  srm_m = _tap_masks(srm_taps, 1, 2, H, W)
  mk_m = _tap_masks(mk_taps, 1, 1, H, W)
  d_m = _tap_masks(d_taps, 2, 2, H, W)
  dw_m = _tap_masks(dw_taps, 1, 1, H, W)
  full = lambda mm: tuple(bool(r.all()) for r in mm)
  srm_full, mk_full, d_full, dw_full = full(srm_m), full(mk_m), full(d_m), full(dw_m)
  mask_np = np.concatenate([srm_m, mk_m, d_m, dw_m], axis=0)     # (51, npix)
  masks = jnp.asarray(np.tile(mask_np, (1, nb)))                 # (51, L)
  srm_row0 = 0
  mk_row0 = srm_m.shape[0]
  d_row0 = mk_row0 + mk_m.shape[0]
  dw_row0 = d_row0 + d_m.shape[0]

  # ---- weights: BN scale folded, channels padded, lane/sublane aligned ------
  srm_w = jnp.asarray(_pack_spatial(p["srm_w"], p["srm_scale"], srm_taps, CIN_SRM))
  mk_w = jnp.asarray(_pack_spatial(p["masked"]["w"], p["masked"]["scale"],
                                   mk_taps, CP))
  w3 = jnp.asarray(np.stack(
      [_pack_spatial(p["dcl"][m]["conv3"]["w"], p["dcl"][m]["conv3"]["scale"],
                     d_taps, CP) for m in range(M)], axis=0))
  one_by_one = ([p["c1"], p["c2"]]
                + [p["dcl"][m]["conv1"] for m in range(M)] + [p["c3"]])
  w1 = jnp.asarray(np.stack([_pack_1x1(l["w"], l["scale"]) for l in one_by_one],
                            axis=0))
  dw_w = jnp.asarray(_pack_depthwise(p["dw_w"], dw_taps))
  pw_w = jnp.asarray(_pack_1x1(p["pw_w"]))
  t2_w = jnp.asarray(_pack_1x1(p["t2_w"], p["t2_scale"], row0=C_REAL))

  # ---- all biases in one lane-dense (CP, n_bias) array ----------------------
  bias_cols = ([_bias_col(p["srm_bias"]), _bias_col(p["masked"]["bias"])]
               + [_bias_col(l["bias"]) for l in one_by_one]
               + [_bias_col(p["dcl"][m]["conv3"]["bias"]) for m in range(M)]
               + [_bias_col(p["dw_b"]), _bias_col(p["pw_b"]),
                  _bias_col(p["t2_bias"], row0=C_REAL)])
  biases = jnp.asarray(np.stack(bias_cols, axis=1))              # (CP, 8+2M)
  col_srm, col_mk = 0, 1
  b1_cols = tuple(range(2, 2 + 3 + M))                           # c1,c2,conv1s,c3
  b3_cols = tuple(range(5 + M, 5 + 2 * M))                       # conv3 biases
  col_dw, col_pw, col_t2 = 5 + 2 * M, 6 + 2 * M, 7 + 2 * M

  # ---- input: (steps, 8, L) with the single image channel in row 0 ----------
  x_flat = x_nchw.reshape(steps, L).astype(jnp.float32)
  x_in = jnp.zeros((steps, CIN_SRM, L), jnp.float32).at[:, 0, :].set(x_flat)

  args = [x_in, masks, biases, srm_w, mk_w, w1, w3, dw_w, pw_w, t2_w]

  def const_spec(a):
    nd = a.ndim
    return pl.BlockSpec(a.shape, lambda n, _nd=nd: (0,) * _nd)

  in_specs = ([pl.BlockSpec((1, CIN_SRM, L), lambda n: (n, 0, 0))]
              + [const_spec(a) for a in args[1:]])
  out_specs = pl.BlockSpec((1, nb, CP, npix), lambda n: (n, 0, 0, 0))
  out_shape = jax.ShapeDtypeStruct((steps, nb, CP, npix), jnp.float32)

  kernel = functools.partial(
      _fused_kernel, L=L, npix=npix, nb=nb, num_modules=M,
      srm_offs=srm_offs, mk_offs=mk_offs, d_offs=d_offs, dw_offs=dw_offs,
      srm_full=srm_full, mk_full=mk_full, d_full=d_full, dw_full=dw_full,
      srm_row0=srm_row0, mk_row0=mk_row0, d_row0=d_row0, dw_row0=dw_row0,
      b1_cols=b1_cols, b3_cols=b3_cols,
      srm_b=col_srm, mk_b=col_mk, dw_b=col_dw, pw_b=col_pw, t2_b=col_t2)

  out = pl.pallas_call(
      kernel,
      out_shape=out_shape,
      grid=(steps,),
      in_specs=in_specs,
      out_specs=out_specs,
      compiler_params=pltpu.CompilerParams(
          dimension_semantics=("parallel",),
          vmem_limit_bytes=32 * 1024 * 1024),
  )(*args)

  # rows 0:30 = trans1 output, rows 30:32 = trans2 output (already concatenated)
  return out.reshape(N, CP, H, W)


# ----------------------------------------------------------------------------
# Pure-JAX reference of the same forward pass (for verification)
# ----------------------------------------------------------------------------
def forward_reference(x_nchw, p, num_modules):
  x = jnp.transpose(x_nchw, (0, 2, 3, 1))          # NHWC

  def conv(v, w, dil=1, pad=0, groups=1):
    return jax.lax.conv_general_dilated(
        v, w, (1, 1), [(pad, pad), (pad, pad)],
        rhs_dilation=(dil, dil),
        dimension_numbers=("NHWC", "HWIO", "NHWC"),
        feature_group_count=groups)

  def cbr(v, layer, dil=1, pad=0, relu=True):
    v = conv(v, layer["w"], dil=dil, pad=pad)
    v = v * layer["scale"] + layer["bias"]
    return jnp.maximum(v, 0.0) if relu else v

  y = conv(x, p["srm_w"], pad=2)
  y = jnp.maximum(y * p["srm_scale"] + p["srm_bias"], 0.0)

  y = cbr(y, p["masked"], pad=1)
  y = cbr(y, p["c1"])
  y = cbr(y, p["c2"])
  for m in range(num_modules):
    z = cbr(y, p["dcl"][m]["conv3"], dil=2, pad=2)
    z = cbr(z, p["dcl"][m]["conv1"], relu=False)
    y = y + z
  y = cbr(y, p["c3"])

  o1 = conv(y, p["dw_w"], pad=1, groups=y.shape[-1]) + p["dw_b"]
  o1 = conv(o1, p["pw_w"]) + p["pw_b"]
  o2 = conv(y, p["t2_w"])
  o2 = jnp.maximum(o2 * p["t2_scale"] + p["t2_bias"], 0.0)
  out = jnp.concatenate([o1, o2], axis=-1)
  return jnp.transpose(out, (0, 3, 1, 2))          # NCHW


# ----------------------------------------------------------------------------
# Deterministic synthetic parameters (BN already folded to eval-mode affine)
# ----------------------------------------------------------------------------
def _make_conv_w(key, K, cin, cout):
  w = jax.random.normal(key, (K, K, cin, cout), jnp.float32)
  return w * (1.0 / (K * K * cin) ** 0.5)


def _make_bn(key, c):
  k1, k2, k3, k4 = jax.random.split(key, 4)
  gamma = jax.random.uniform(k1, (c,), jnp.float32, 0.5, 1.5)
  beta = 0.1 * jax.random.normal(k2, (c,), jnp.float32)
  mean = 0.1 * jax.random.normal(k3, (c,), jnp.float32)
  var = jax.random.uniform(k4, (c,), jnp.float32, 0.5, 1.5)
  return gamma, beta, mean, var


def _fold_bn(conv_b, gamma, beta, mean, var, eps=1e-5):
  scale = gamma / jnp.sqrt(var + eps)
  bias = beta + (conv_b - mean) * scale
  return scale, bias


def _conv_bn_layer(key, K, cin, cout, masked=False):
  kw_, kb_, kbn = jax.random.split(key, 3)
  w = _make_conv_w(kw_, K, cin, cout)
  if masked:
    w = w.at[K // 2, K // 2, :, :].set(0.0)      # CentralMaskedConv2d mask
  cb = 0.1 * jax.random.normal(kb_, (cout,), jnp.float32)
  g, be, mu, va = _make_bn(kbn, cout)
  s, b = _fold_bn(cb, g, be, mu, va)
  return {"w": w, "scale": s, "bias": b}


def make_params(key, in_ch, num_modules):
  keys = jax.random.split(key, 16 + 2 * num_modules)
  it = iter(range(len(keys)))
  p = {}
  p["srm_w"] = _make_conv_w(keys[next(it)], 5, 1, in_ch)        # SRM stand-in
  g, b, m, v = _make_bn(keys[next(it)], in_ch)
  p["srm_scale"], p["srm_bias"] = _fold_bn(jnp.zeros((in_ch,), jnp.float32),
                                           g, b, m, v)
  p["masked"] = _conv_bn_layer(keys[next(it)], 3, in_ch, in_ch, masked=True)
  p["c1"] = _conv_bn_layer(keys[next(it)], 1, in_ch, in_ch)
  p["c2"] = _conv_bn_layer(keys[next(it)], 1, in_ch, in_ch)
  p["dcl"] = []
  for _ in range(num_modules):
    p["dcl"].append({
        "conv3": _conv_bn_layer(keys[next(it)], 3, in_ch, in_ch),
        "conv1": _conv_bn_layer(keys[next(it)], 1, in_ch, in_ch),
    })
  p["c3"] = _conv_bn_layer(keys[next(it)], 1, in_ch, in_ch)
  p["dw_w"] = _make_conv_w(keys[next(it)], 3, 1, in_ch)          # depthwise
  p["dw_b"] = 0.1 * jax.random.normal(keys[next(it)], (in_ch,), jnp.float32)
  p["pw_w"] = _make_conv_w(keys[next(it)], 1, in_ch, in_ch)
  p["pw_b"] = 0.1 * jax.random.normal(keys[next(it)], (in_ch,), jnp.float32)
  p["t2_w"] = _make_conv_w(keys[next(it)], 1, in_ch, 2)
  g, b, m, v = _make_bn(keys[next(it)], 2)
  p["t2_scale"], p["t2_bias"] = _fold_bn(jnp.zeros((2,), jnp.float32),
                                         g, b, m, v)
  return p


if __name__ == "__main__":
  # DenseNet_Add_3 fixes in_ch=30 (SRM bank); num_layers kept small (default 6)
  # so the self-test compiles quickly.  Input: NCHW (N, 1, H, W).
  N, H, W = 2, 16, 16
  in_ch, num_modules = 30, 2

  key = jax.random.PRNGKey(0)
  kx, kp = jax.random.split(key)
  x = jax.random.normal(kx, (N, 1, H, W), jnp.float32)
  params = make_params(kp, in_ch, num_modules)

  ref = jax.block_until_ready(forward_reference(x, params, num_modules))

  # default blocking: N//2 samples per step -> 2 "parallel" steps (v7x: both TCs)
  out_a = jax.block_until_ready(forward_pallas(x, params, num_modules))
  # whole batch in one step (best for single-TC v5e / v6e)
  out_b = jax.block_until_ready(forward_pallas(x, params, num_modules,
                                               samples_per_step=N))

  assert out_a.shape == (N, in_ch + 2, H, W), out_a.shape
  assert out_b.shape == (N, in_ch + 2, H, W), out_b.shape
  for out in (out_a, out_b):
    max_err = float(jnp.max(jnp.abs(out - ref)))
    assert jnp.allclose(out, ref, atol=5e-3, rtol=5e-3), max_err
  print("KERNEL_OK")
</pallas_src>

<mosaic_0001>
module attributes {stable_mosaic.version = 11 : i64} {
  func.func @_fused_kernel(%arg0: i32, %arg1: memref<1x8x256xf32, #tpu.memory_space<vmem>>, %arg2: memref<51x256xf32, #tpu.memory_space<vmem>>, %arg3: memref<32x12xf32, #tpu.memory_space<vmem>>, %arg4: memref<32x200xf32, #tpu.memory_space<vmem>>, %arg5: memref<32x256xf32, #tpu.memory_space<vmem>>, %arg6: memref<5x32x32xf32, #tpu.memory_space<vmem>>, %arg7: memref<2x32x288xf32, #tpu.memory_space<vmem>>, %arg8: memref<32x288xf32, #tpu.memory_space<vmem>>, %arg9: memref<32x32xf32, #tpu.memory_space<vmem>>, %arg10: memref<32x32xf32, #tpu.memory_space<vmem>>, %arg11: memref<1x1x32x256xf32, #tpu.memory_space<vmem>>) attributes {dimension_semantics = [#tpu.dimension_semantics<parallel>], iteration_bounds = array<i64: 2>, scalar_prefetch = 0 : i64, scratch_operands = 0 : i64, tpu.core_type = #tpu.core_type<tc>, window_params = [{transform_indices = @transform_0, window_bounds = array<i64: 1, 8, 256>}, {pipeline_mode = #tpu.pipeline_mode<synchronous>, transform_indices = @transform_1, window_bounds = array<i64: 51, 256>}, {pipeline_mode = #tpu.pipeline_mode<synchronous>, transform_indices = @transform_2, window_bounds = array<i64: 32, 12>}, {pipeline_mode = #tpu.pipeline_mode<synchronous>, transform_indices = @transform_3, window_bounds = array<i64: 32, 200>}, {pipeline_mode = #tpu.pipeline_mode<synchronous>, transform_indices = @transform_4, window_bounds = array<i64: 32, 256>}, {pipeline_mode = #tpu.pipeline_mode<synchronous>, transform_indices = @transform_5, window_bounds = array<i64: 5, 32, 32>}, {pipeline_mode = #tpu.pipeline_mode<synchronous>, transform_indices = @transform_6, window_bounds = array<i64: 2, 32, 288>}, {pipeline_mode = #tpu.pipeline_mode<synchronous>, transform_indices = @transform_7, window_bounds = array<i64: 32, 288>}, {pipeline_mode = #tpu.pipeline_mode<synchronous>, transform_indices = @transform_8, window_bounds = array<i64: 32, 32>}, {pipeline_mode = #tpu.pipeline_mode<synchronous>, transform_indices = @transform_9, window_bounds = array<i64: 32, 32>}, {transform_indices = @transform_10, window_bounds = array<i64: 1, 1, 32, 256>}]} {
    %c0 = arith.constant 0 : index
    %c0_0 = arith.constant 0 : index
    %c0_1 = arith.constant 0 : index
    %0 = vector.load %arg1[%c0, %c0_0, %c0_1] : memref<1x8x256xf32, #tpu.memory_space<vmem>>, vector<1x8x256xf32>
    %1 = vector.shape_cast %0 : vector<1x8x256xf32> to vector<8x256xf32>
    %c0_2 = arith.constant 0 : index
    %c0_3 = arith.constant 0 : index
    %2 = vector.load %arg4[%c0_2, %c0_3] : memref<32x200xf32, #tpu.memory_space<vmem>>, vector<32x200xf32>
    %c34_i32 = arith.constant 34 : i32
    %3 = tpu.dynamic_rotate %1 by %c34_i32 dim 1 : vector<8x256xf32>, i32 -> vector<8x256xf32>
    %c0_4 = arith.constant 0 : index
    %c0_5 = arith.constant 0 : index
    %4 = vector.load %arg2[%c0_4, %c0_5] : memref<51x256xf32, #tpu.memory_space<vmem>>, vector<1x256xf32>
    %5 = vector.broadcast %4 : vector<1x256xf32> to vector<8x256xf32>
    %6 = arith.mulf %3, %5 : vector<8x256xf32>
    %c33_i32 = arith.constant 33 : i32
    %7 = tpu.dynamic_rotate %1 by %c33_i32 dim 1 : vector<8x256xf32>, i32 -> vector<8x256xf32>
    %c1 = arith.constant 1 : index
    %c0_6 = arith.constant 0 : index
    %8 = vector.load %arg2[%c1, %c0_6] : memref<51x256xf32, #tpu.memory_space<vmem>>, vector<1x256xf32>
    %9 = vector.broadcast %8 : vector<1x256xf32> to vector<8x256xf32>
    %10 = arith.mulf %7, %9 : vector<8x256xf32>
    %c32_i32 = arith.constant 32 : i32
    %11 = tpu.dynamic_rotate %1 by %c32_i32 dim 1 : vector<8x256xf32>, i32 -> vector<8x256xf32>
    %c2 = arith.constant 2 : index
    %c0_7 = arith.constant 0 : index
    %12 = vector.load %arg2[%c2, %c0_7] : memref<51x256xf32, #tpu.memory_space<vmem>>, vector<1x256xf32>
    %13 = vector.broadcast %12 : vector<1x256xf32> to vector<8x256xf32>
    %14 = arith.mulf %11, %13 : vector<8x256xf32>
    %c31_i32 = arith.constant 31 : i32
    %15 = tpu.dynamic_rotate %1 by %c31_i32 dim 1 : vector<8x256xf32>, i32 -> vector<8x256xf32>
    %c3 = arith.constant 3 : index
    %c0_8 = arith.constant 0 : index
    %16 = vector.load %arg2[%c3, %c0_8] : memref<51x256xf32, #tpu.memory_space<vmem>>, vector<1x256xf32>
    %17 = vector.broadcast %16 : vector<1x256xf32> to vector<8x256xf32>
    %18 = arith.mulf %15, %17 : vector<8x256xf32>
    %c30_i32 = arith.constant 30 : i32
    %19 = tpu.dynamic_rotate %1 by %c30_i32 dim 1 : vector<8x256xf32>, i32 -> vector<8x256xf32>
    %c4 = arith.constant 4 : index
    %c0_9 = arith.constant 0 : index
    %20 = vector.load %arg2[%c4, %c0_9] : memref<51x256xf32, #tpu.memory_space<vmem>>, vector<1x256xf32>
    %21 = vector.broadcast %20 : vector<1x256xf32> to vector<8x256xf32>
    %22 = arith.mulf %19, %21 : vector<8x256xf32>
    %c18_i32 = arith.constant 18 : i32
    %23 = tpu.dynamic_rotate %1 by %c18_i32 dim 1 : vector<8x256xf32>, i32 -> vector<8x256xf32>
    %c5 = arith.constant 5 : index
    %c0_10 = arith.constant 0 : index
    %24 = vector.load %arg2[%c5, %c0_10] : memref<51x256xf32, #tpu.memory_space<vmem>>, vector<1x256xf32>
    %25 = vector.broadcast %24 : vector<1x256xf32> to vector<8x256xf32>
    %26 = arith.mulf %23, %25 : vector<8x256xf32>
    %c17_i32 = arith.constant 17 : i32
    %27 = tpu.dynamic_rotate %1 by %c17_i32 dim 1 : vector<8x256xf32>, i32 -> vector<8x256xf32>
    %c6 = arith.constant 6 : index
    %c0_11 = arith.constant 0 : index
    %28 = vector.load %arg2[%c6, %c0_11] : memref<51x256xf32, #tpu.memory_space<vmem>>, vector<1x256xf32>
    %29 = vector.broadcast %28 : vector<1x256xf32> to vector<8x256xf32>
    %30 = arith.mulf %27, %29 : vector<8x256xf32>
    %c16_i32 = arith.constant 16 : i32
    %31 = tpu.dynamic_rotate %1 by %c16_i32 dim 1 : vector<8x256xf32>, i32 -> vector<8x256xf32>
    %c7 = arith.constant 7 : index
    %c0_12 = arith.constant 0 : index
    %32 = vector.load %arg2[%c7, %c0_12] : memref<51x256xf32, #tpu.memory_space<vmem>>, vector<1x256xf32>
    %33 = vector.broadcast %32 : vector<1x256xf32> to vector<8x256xf32>
    %34 = arith.mulf %31, %33 : vector<8x256xf32>
    %c15_i32 = arith.constant 15 : i32
    %35 = tpu.dynamic_rotate %1 by %c15_i32 dim 1 : vector<8x256xf32>, i32 -> vector<8x256xf32>
    %c8 = arith.constant 8 : index
    %c0_13 = arith.constant 0 : index
    %36 = vector.load %arg2[%c8, %c0_13] : memref<51x256xf32, #tpu.memory_space<vmem>>, vector<1x256xf32>
    %37 = vector.broadcast %36 : vector<1x256xf32> to vector<8x256xf32>
    %38 = arith.mulf %35, %37 : vector<8x256xf32>
    %c14_i32 = arith.constant 14 : i32
    %39 = tpu.dynamic_rotate %1 by %c14_i32 dim 1 : vector<8x256xf32>, i32 -> vector<8x256xf32>
    %c9 = arith.constant 9 : index
    %c0_14 = arith.constant 0 : index
    %40 = vector.load %arg2[%c9, %c0_14] : memref<51x256xf32, #tpu.memory_space<vmem>>, vector<1x256xf32>
    %41 = vector.broadcast %40 : vector<1x256xf32> to vector<8x256xf32>
    %42 = arith.mulf %39, %41 : vector<8x256xf32>
    %c2_i32 = arith.constant 2 : i32
    %43 = tpu.dynamic_rotate %1 by %c2_i32 dim 1 : vector<8x256xf32>, i32 -> vector<8x256xf32>
    %c10 = arith.constant 10 : index
    %c0_15 = arith.constant 0 : index
    %44 = vector.load %arg2[%c10, %c0_15] : memref<51x256xf32, #tpu.memory_space<vmem>>, vector<1x256xf32>
    %45 = vector.broadcast %44 : vector<1x256xf32> to vector<8x256xf32>
    %46 = arith.mulf %43, %45 : vector<8x256xf32>
    %c1_i32 = arith.constant 1 : i32
    %47 = tpu.dynamic_rotate %1 by %c1_i32 dim 1 : vector<8x256xf32>, i32 -> vector<8x256xf32>
    %c11 = arith.constant 11 : index
    %c0_16 = arith.constant 0 : index
    %48 = vector.load %arg2[%c11, %c0_16] : memref<51x256xf32, #tpu.memory_space<vmem>>, vector<1x256xf32>
    %49 = vector.broadcast %48 : vector<1x256xf32> to vector<8x256xf32>
    %50 = arith.mulf %47, %49 : vector<8x256xf32>
    %c255_i32 = arith.constant 255 : i32
    %51 = tpu.dynamic_rotate %1 by %c255_i32 dim 1 : vector<8x256xf32>, i32 -> vector<8x256xf32>
    %c13 = arith.constant 13 : index
    %c0_17 = arith.constant 0 : index
    %52 = vector.load %arg2[%c13, %c0_17] : memref<51x256xf32, #tpu.memory_space<vmem>>, vector<1x256xf32>
    %53 = vector.broadcast %52 : vector<1x256xf32> to vector<8x256xf32>
    %54 = arith.mulf %51, %53 : vector<8x256xf32>
    %c254_i32 = arith.constant 254 : i32
    %55 = tpu.dynamic_rotate %1 by %c254_i32 dim 1 : vector<8x256xf32>, i32 -> vector<8x256xf32>
    %c14 = arith.constant 14 : index
    %c0_18 = arith.constant 0 : index
    %56 = vector.load %arg2[%c14, %c0_18] : memref<51x256xf32, #tpu.memory_space<vmem>>, vector<1x256xf32>
    %57 = vector.broadcast %56 : vector<1x256xf32> to vector<8x256xf32>
    %58 = arith.mulf %55, %57 : vector<8x256xf32>
    %c242_i32 = arith.constant 242 : i32
    %59 = tpu.dynamic_rotate %1 by %c242_i32 dim 1 : vector<8x256xf32>, i32 -> vector<8x256xf32>
    %c15 = arith.constant 15 : index
    %c0_19 = arith.constant 0 : index
    %60 = vector.load %arg2[%c15, %c0_19] : memref<51x256xf32, #tpu.memory_space<vmem>>, vector<1x256xf32>
    %61 = vector.broadcast %60 : vector<1x256xf32> to vector<8x256xf32>
    %62 = arith.mulf %59, %61 : vector<8x256xf32>
    %c241_i32 = arith.constant 241 : i32
    %63 = tpu.dynamic_rotate %1 by %c241_i32 dim 1 : vector<8x256xf32>, i32 -> vector<8x256xf32>
    %c16 = arith.constant 16 : index
    %c0_20 = arith.constant 0 : index
    %64 = vector.load %arg2[%c16, %c0_20] : memref<51x256xf32, #tpu.memory_space<vmem>>, vector<1x256xf32>
    %65 = vector.broadcast %64 : vector<1x256xf32> to vector<8x256xf32>
    %66 = arith.mulf %63, %65 : vector<8x256xf32>
    %c240_i32 = arith.constant 240 : i32
    %67 = tpu.dynamic_rotate %1 by %c240_i32 dim 1 : vector<8x256xf32>, i32 -> vector<8x256xf32>
    %c17 = arith.constant 17 : index
    %c0_21 = arith.constant 0 : index
    %68 = vector.load %arg2[%c17, %c0_21] : memref<51x256xf32, #tpu.memory_space<vmem>>, vector<1x256xf32>
    %69 = vector.broadcast %68 : vector<1x256xf32> to vector<8x256xf32>
    %70 = arith.mulf %67, %69 : vector<8x256xf32>
    %c239_i32 = arith.constant 239 : i32
    %71 = tpu.dynamic_rotate %1 by %c239_i32 dim 1 : vector<8x256xf32>, i32 -> vector<8x256xf32>
    %c18 = arith.constant 18 : index
    %c0_22 = arith.constant 0 : index
    %72 = vector.load %arg2[%c18, %c0_22] : memref<51x256xf32, #tpu.memory_space<vmem>>, vector<1x256xf32>
    %73 = vector.broadcast %72 : vector<1x256xf32> to vector<8x256xf32>
    %74 = arith.mulf %71, %73 : vector<8x256xf32>
    %c238_i32 = arith.constant 238 : i32
    %75 = tpu.dynamic_rotate %1 by %c238_i32 dim 1 : vector<8x256xf32>, i32 -> vector<8x256xf32>
    %c19 = arith.constant 19 : index
    %c0_23 = arith.constant 0 : index
    %76 = vector.load %arg2[%c19, %c0_23] : memref<51x256xf32, #tpu.memory_space<vmem>>, vector<1x256xf32>
    %77 = vector.broadcast %76 : vector<1x256xf32> to vector<8x256xf32>
    %78 = arith.mulf %75, %77 : vector<8x256xf32>
    %c226_i32 = arith.constant 226 : i32
    %79 = tpu.dynamic_rotate %1 by %c226_i32 dim 1 : vector<8x256xf32>, i32 -> vector<8x256xf32>
    %c20 = arith.constant 20 : index
    %c0_24 = arith.constant 0 : index
    %80 = vector.load %arg2[%c20, %c0_24] : memref<51x256xf32, #tpu.memory_space<vmem>>, vector<1x256xf32>
    %81 = vector.broadcast %80 : vector<1x256xf32> to vector<8x256xf32>
    %82 = arith.mulf %79, %81 : vector<8x256xf32>
    %c225_i32 = arith.constant 225 : i32
    %83 = tpu.dynamic_rotate %1 by %c225_i32 dim 1 : vector<8x256xf32>, i32 -> vector<8x256xf32>
    %c21 = arith.constant 21 : index
    %c0_25 = arith.constant 0 : index
    %84 = vector.load %arg2[%c21, %c0_25] : memref<51x256xf32, #tpu.memory_space<vmem>>, vector<1x256xf32>
    %85 = vector.broadcast %84 : vector<1x256xf32> to vector<8x256xf32>
    %86 = arith.mulf %83, %85 : vector<8x256xf32>
    %c224_i32 = arith.constant 224 : i32
    %87 = tpu.dynamic_rotate %1 by %c224_i32 dim 1 : vector<8x256xf32>, i32 -> vector<8x256xf32>
    %c22 = arith.constant 22 : index
    %c0_26 = arith.constant 0 : index
    %88 = vector.load %arg2[%c22, %c0_26] : memref<51x256xf32, #tpu.memory_space<vmem>>, vector<1x256xf32>
    %89 = vector.broadcast %88 : vector<1x256xf32> to vector<8x256xf32>
    %90 = arith.mulf %87, %89 : vector<8x256xf32>
    %c223_i32 = arith.constant 223 : i32
    %91 = tpu.dynamic_rotate %1 by %c223_i32 dim 1 : vector<8x256xf32>, i32 -> vector<8x256xf32>
    %c23 = arith.constant 23 : index
    %c0_27 = arith.constant 0 : index
    %92 = vector.load %arg2[%c23, %c0_27] : memref<51x256xf32, #tpu.memory_space<vmem>>, vector<1x256xf32>
    %93 = vector.broadcast %92 : vector<1x256xf32> to vector<8x256xf32>
    %94 = arith.mulf %91, %93 : vector<8x256xf32>
    %c222_i32 = arith.constant 222 : i32
    %95 = tpu.dynamic_rotate %1 by %c222_i32 dim 1 : vector<8x256xf32>, i32 -> vector<8x256xf32>
    %c24 = arith.constant 24 : index
    %c0_28 = arith.constant 0 : index
    %96 = vector.load %arg2[%c24, %c0_28] : memref<51x256xf32, #tpu.memory_space<vmem>>, vector<1x256xf32>
    %97 = vector.broadcast %96 : vector<1x256xf32> to vector<8x256xf32>
    %98 = arith.mulf %95, %97 : vector<8x256xf32>
    %99 = tpu.concatenate %6, %10, %14, %18, %22, %26, %30, %34, %38, %42, %46, %50, %1, %54, %58, %62 in 0 : vector<8x256xf32>, vector<8x256xf32>, vector<8x256xf32>, vector<8x256xf32>, vector<8x256xf32>, vector<8x256xf32>, vector<8x256xf32>, vector<8x256xf32>, vector<8x256xf32>, vector<8x256xf32>, vector<8x256xf32>, vector<8x256xf32>, vector<8x256xf32>, vector<8x256xf32>, vector<8x256xf32>, vector<8x256xf32> -> vector<128x256xf32>
    %100 = tpu.concatenate %66, %70, %74, %78, %82, %86, %90, %94, %98 in 0 : vector<8x256xf32>, vector<8x256xf32>, vector<8x256xf32>, vector<8x256xf32>, vector<8x256xf32>, vector<8x256xf32>, vector<8x256xf32>, vector<8x256xf32>, vector<8x256xf32> -> vector<72x256xf32>
    %101 = tpu.concatenate %99, %100 in 0 : vector<128x256xf32>, vector<72x256xf32> -> vector<200x256xf32>
    %cst = arith.constant dense<0.000000e+00> : vector<32x256xf32>
    %102 = tpu.matmul %2, %101, %cst {dimension_numbers = #tpu.dot_dimension_numbers<[1], [0], [0], [1], [0, 0, 1, 1], [], []>} : vector<32x200xf32>, vector<200x256xf32>, vector<32x256xf32> -> vector<32x256xf32>
    %c0_29 = arith.constant 0 : index
    %c0_30 = arith.constant 0 : index
    %103 = vector.load %arg3[%c0_29, %c0_30] : memref<32x12xf32, #tpu.memory_space<vmem>>, vector<32x1xf32>
    %104 = vector.broadcast %103 : vector<32x1xf32> to vector<32x256xf32>
    %105 = arith.addf %102, %104 : vector<32x256xf32>
    %cst_31 = arith.constant 0.000000e+00 : f32
    %106 = vector.broadcast %cst_31 : f32 to vector<32x256xf32>
    %107 = arith.maximumf %105, %106 : vector<32x256xf32>
    %c0_32 = arith.constant 0 : index
    %c0_33 = arith.constant 0 : index
    %108 = vector.load %arg5[%c0_32, %c0_33] : memref<32x256xf32, #tpu.memory_space<vmem>>, vector<32x256xf32>
    %c17_i32_34 = arith.constant 17 : i32
    %109 = tpu.dynamic_rotate %107 by %c17_i32_34 dim 1 : vector<32x256xf32>, i32 -> vector<32x256xf32>
    %c25 = arith.constant 25 : index
    %c0_35 = arith.constant 0 : index
    %110 = vector.load %arg2[%c25, %c0_35] : memref<51x256xf32, #tpu.memory_space<vmem>>, vector<1x256xf32>
    %111 = vector.broadcast %110 : vector<1x256xf32> to vector<32x256xf32>
    %112 = arith.mulf %109, %111 : vector<32x256xf32>
    %c16_i32_36 = arith.constant 16 : i32
    %113 = tpu.dynamic_rotate %107 by %c16_i32_36 dim 1 : vector<32x256xf32>, i32 -> vector<32x256xf32>
    %c26 = arith.constant 26 : index
    %c0_37 = arith.constant 0 : index
    %114 = vector.load %arg2[%c26, %c0_37] : memref<51x256xf32, #tpu.memory_space<vmem>>, vector<1x256xf32>
    %115 = vector.broadcast %114 : vector<1x256xf32> to vector<32x256xf32>
    %116 = arith.mulf %113, %115 : vector<32x256xf32>
    %c15_i32_38 = arith.constant 15 : i32
    %117 = tpu.dynamic_rotate %107 by %c15_i32_38 dim 1 : vector<32x256xf32>, i32 -> vector<32x256xf32>
    %c27 = arith.constant 27 : index
    %c0_39 = arith.constant 0 : index
    %118 = vector.load %arg2[%c27, %c0_39] : memref<51x256xf32, #tpu.memory_space<vmem>>, vector<1x256xf32>
    %119 = vector.broadcast %118 : vector<1x256xf32> to vector<32x256xf32>
    %120 = arith.mulf %117, %119 : vector<32x256xf32>
    %c1_i32_40 = arith.constant 1 : i32
    %121 = tpu.dynamic_rotate %107 by %c1_i32_40 dim 1 : vector<32x256xf32>, i32 -> vector<32x256xf32>
    %c28 = arith.constant 28 : index
    %c0_41 = arith.constant 0 : index
    %122 = vector.load %arg2[%c28, %c0_41] : memref<51x256xf32, #tpu.memory_space<vmem>>, vector<1x256xf32>
    %123 = vector.broadcast %122 : vector<1x256xf32> to vector<32x256xf32>
    %124 = arith.mulf %121, %123 : vector<32x256xf32>
    %c255_i32_42 = arith.constant 255 : i32
    %125 = tpu.dynamic_rotate %107 by %c255_i32_42 dim 1 : vector<32x256xf32>, i32 -> vector<32x256xf32>
    %c29 = arith.constant 29 : index
    %c0_43 = arith.constant 0 : index
    %126 = vector.load %arg2[%c29, %c0_43] : memref<51x256xf32, #tpu.memory_space<vmem>>, vector<1x256xf32>
    %127 = vector.broadcast %126 : vector<1x256xf32> to vector<32x256xf32>
    %128 = arith.mulf %125, %127 : vector<32x256xf32>
    %c241_i32_44 = arith.constant 241 : i32
    %129 = tpu.dynamic_rotate %107 by %c241_i32_44 dim 1 : vector<32x256xf32>, i32 -> vector<32x256xf32>
    %c30 = arith.constant 30 : index
    %c0_45 = arith.constant 0 : index
    %130 = vector.load %arg2[%c30, %c0_45] : memref<51x256xf32, #tpu.memory_space<vmem>>, vector<1x256xf32>
    %131 = vector.broadcast %130 : vector<1x256xf32> to vector<32x256xf32>
    %132 = arith.mulf %129, %131 : vector<32x256xf32>
    %c240_i32_46 = arith.constant 240 : i32
    %133 = tpu.dynamic_rotate %107 by %c240_i32_46 dim 1 : vector<32x256xf32>, i32 -> vector<32x256xf32>
    %c31 = arith.constant 31 : index
    %c0_47 = arith.constant 0 : index
    %134 = vector.load %arg2[%c31, %c0_47] : memref<51x256xf32, #tpu.memory_space<vmem>>, vector<1x256xf32>
    %135 = vector.broadcast %134 : vector<1x256xf32> to vector<32x256xf32>
    %136 = arith.mulf %133, %135 : vector<32x256xf32>
    %c239_i32_48 = arith.constant 239 : i32
    %137 = tpu.dynamic_rotate %107 by %c239_i32_48 dim 1 : vector<32x256xf32>, i32 -> vector<32x256xf32>
    %c32 = arith.constant 32 : index
    %c0_49 = arith.constant 0 : index
    %138 = vector.load %arg2[%c32, %c0_49] : memref<51x256xf32, #tpu.memory_space<vmem>>, vector<1x256xf32>
    %139 = vector.broadcast %138 : vector<1x256xf32> to vector<32x256xf32>
    %140 = arith.mulf %137, %139 : vector<32x256xf32>
    %141 = tpu.concatenate %112, %116, %120, %124, %128, %132, %136, %140 in 0 : vector<32x256xf32>, vector<32x256xf32>, vector<32x256xf32>, vector<32x256xf32>, vector<32x256xf32>, vector<32x256xf32>, vector<32x256xf32>, vector<32x256xf32> -> vector<256x256xf32>
    %cst_50 = arith.constant dense<0.000000e+00> : vector<32x256xf32>
    %142 = tpu.matmul %108, %141, %cst_50 {dimension_numbers = #tpu.dot_dimension_numbers<[1], [0], [0], [1], [0, 0, 1, 1], [], []>} : vector<32x256xf32>, vector<256x256xf32>, vector<32x256xf32> -> vector<32x256xf32>
    %c0_51 = arith.constant 0 : index
    %c1_52 = arith.constant 1 : index
    %143 = vector.load %arg3[%c0_51, %c1_52] : memref<32x12xf32, #tpu.memory_space<vmem>>, vector<32x1xf32>
    %144 = vector.broadcast %143 : vector<32x1xf32> to vector<32x256xf32>
    %145 = arith.addf %142, %144 : vector<32x256xf32>
    %cst_53 = arith.constant 0.000000e+00 : f32
    %146 = vector.broadcast %cst_53 : f32 to vector<32x256xf32>
    %147 = arith.maximumf %145, %146 : vector<32x256xf32>
    %c0_54 = arith.constant 0 : index
    %c0_55 = arith.constant 0 : index
    %c0_56 = arith.constant 0 : index
    %148 = vector.load %arg6[%c0_54, %c0_55, %c0_56] : memref<5x32x32xf32, #tpu.memory_space<vmem>>, vector<1x32x32xf32>
    %149 = vector.shape_cast %148 : vector<1x32x32xf32> to vector<32x32xf32>
    %cst_57 = arith.constant dense<0.000000e+00> : vector<32x256xf32>
    %150 = tpu.matmul %149, %147, %cst_57 {dimension_numbers = #tpu.dot_dimension_numbers<[1], [0], [0], [1], [0, 0, 1, 1], [], []>} : vector<32x32xf32>, vector<32x256xf32>, vector<32x256xf32> -> vector<32x256xf32>
    %c0_58 = arith.constant 0 : index
    %c2_59 = arith.constant 2 : index
    %151 = vector.load %arg3[%c0_58, %c2_59] : memref<32x12xf32, #tpu.memory_space<vmem>>, vector<32x1xf32>
    %152 = vector.broadcast %151 : vector<32x1xf32> to vector<32x256xf32>
    %153 = arith.addf %150, %152 : vector<32x256xf32>
    %cst_60 = arith.constant 0.000000e+00 : f32
    %154 = vector.broadcast %cst_60 : f32 to vector<32x256xf32>
    %155 = arith.maximumf %153, %154 : vector<32x256xf32>
    %c1_61 = arith.constant 1 : index
    %c0_62 = arith.constant 0 : index
    %c0_63 = arith.constant 0 : index
    %156 = vector.load %arg6[%c1_61, %c0_62, %c0_63] : memref<5x32x32xf32, #tpu.memory_space<vmem>>, vector<1x32x32xf32>
    %157 = vector.shape_cast %156 : vector<1x32x32xf32> to vector<32x32xf32>
    %cst_64 = arith.constant dense<0.000000e+00> : vector<32x256xf32>
    %158 = tpu.matmul %157, %155, %cst_64 {dimension_numbers = #tpu.dot_dimension_numbers<[1], [0], [0], [1], [0, 0, 1, 1], [], []>} : vector<32x32xf32>, vector<32x256xf32>, vector<32x256xf32> -> vector<32x256xf32>
    %c0_65 = arith.constant 0 : index
    %c3_66 = arith.constant 3 : index
    %159 = vector.load %arg3[%c0_65, %c3_66] : memref<32x12xf32, #tpu.memory_space<vmem>>, vector<32x1xf32>
    %160 = vector.broadcast %159 : vector<32x1xf32> to vector<32x256xf32>
    %161 = arith.addf %158, %160 : vector<32x256xf32>
    %cst_67 = arith.constant 0.000000e+00 : f32
    %162 = vector.broadcast %cst_67 : f32 to vector<32x256xf32>
    %163 = arith.maximumf %161, %162 : vector<32x256xf32>
    %c0_68 = arith.constant 0 : index
    %c0_69 = arith.constant 0 : index
    %c0_70 = arith.constant 0 : index
    %164 = vector.load %arg7[%c0_68, %c0_69, %c0_70] : memref<2x32x288xf32, #tpu.memory_space<vmem>>, vector<1x32x288xf32>
    %165 = vector.shape_cast %164 : vector<1x32x288xf32> to vector<32x288xf32>
    %c34_i32_71 = arith.constant 34 : i32
    %166 = tpu.dynamic_rotate %163 by %c34_i32_71 dim 1 : vector<32x256xf32>, i32 -> vector<32x256xf32>
    %c33 = arith.constant 33 : index
    %c0_72 = arith.constant 0 : index
    %167 = vector.load %arg2[%c33, %c0_72] : memref<51x256xf32, #tpu.memory_space<vmem>>, vector<1x256xf32>
    %168 = vector.broadcast %167 : vector<1x256xf32> to vector<32x256xf32>
    %169 = arith.mulf %166, %168 : vector<32x256xf32>
    %c32_i32_73 = arith.constant 32 : i32
    %170 = tpu.dynamic_rotate %163 by %c32_i32_73 dim 1 : vector<32x256xf32>, i32 -> vector<32x256xf32>
    %c34 = arith.constant 34 : index
    %c0_74 = arith.constant 0 : index
    %171 = vector.load %arg2[%c34, %c0_74] : memref<51x256xf32, #tpu.memory_space<vmem>>, vector<1x256xf32>
    %172 = vector.broadcast %171 : vector<1x256xf32> to vector<32x256xf32>
    %173 = arith.mulf %170, %172 : vector<32x256xf32>
    %c30_i32_75 = arith.constant 30 : i32
    %174 = tpu.dynamic_rotate %163 by %c30_i32_75 dim 1 : vector<32x256xf32>, i32 -> vector<32x256xf32>
    %c35 = arith.constant 35 : index
    %c0_76 = arith.constant 0 : index
    %175 = vector.load %arg2[%c35, %c0_76] : memref<51x256xf32, #tpu.memory_space<vmem>>, vector<1x256xf32>
    %176 = vector.broadcast %175 : vector<1x256xf32> to vector<32x256xf32>
    %177 = arith.mulf %174, %176 : vector<32x256xf32>
    %c2_i32_77 = arith.constant 2 : i32
    %178 = tpu.dynamic_rotate %163 by %c2_i32_77 dim 1 : vector<32x256xf32>, i32 -> vector<32x256xf32>
    %c36 = arith.constant 36 : index
    %c0_78 = arith.constant 0 : index
    %179 = vector.load %arg2[%c36, %c0_78] : memref<51x256xf32, #tpu.memory_space<vmem>>, vector<1x256xf32>
    %180 = vector.broadcast %179 : vector<1x256xf32> to vector<32x256xf32>
    %181 = arith.mulf %178, %180 : vector<32x256xf32>
    %c254_i32_79 = arith.constant 254 : i32
    %182 = tpu.dynamic_rotate %163 by %c254_i32_79 dim 1 : vector<32x256xf32>, i32 -> vector<32x256xf32>
    %c38 = arith.constant 38 : index
    %c0_80 = arith.constant 0 : index
    %183 = vector.load %arg2[%c38, %c0_80] : memref<51x256xf32, #tpu.memory_space<vmem>>, vector<1x256xf32>
    %184 = vector.broadcast %183 : vector<1x256xf32> to vector<32x256xf32>
    %185 = arith.mulf %182, %184 : vector<32x256xf32>
    %c226_i32_81 = arith.constant 226 : i32
    %186 = tpu.dynamic_rotate %163 by %c226_i32_81 dim 1 : vector<32x256xf32>, i32 -> vector<32x256xf32>
    %c39 = arith.constant 39 : index
    %c0_82 = arith.constant 0 : index
    %187 = vector.load %arg2[%c39, %c0_82] : memref<51x256xf32, #tpu.memory_space<vmem>>, vector<1x256xf32>
    %188 = vector.broadcast %187 : vector<1x256xf32> to vector<32x256xf32>
    %189 = arith.mulf %186, %188 : vector<32x256xf32>
    %c224_i32_83 = arith.constant 224 : i32
    %190 = tpu.dynamic_rotate %163 by %c224_i32_83 dim 1 : vector<32x256xf32>, i32 -> vector<32x256xf32>
    %c40 = arith.constant 40 : index
    %c0_84 = arith.constant 0 : index
    %191 = vector.load %arg2[%c40, %c0_84] : memref<51x256xf32, #tpu.memory_space<vmem>>, vector<1x256xf32>
    %192 = vector.broadcast %191 : vector<1x256xf32> to vector<32x256xf32>
    %193 = arith.mulf %190, %192 : vector<32x256xf32>
    %c222_i32_85 = arith.constant 222 : i32
    %194 = tpu.dynamic_rotate %163 by %c222_i32_85 dim 1 : vector<32x256xf32>, i32 -> vector<32x256xf32>
    %c41 = arith.constant 41 : index
    %c0_86 = arith.constant 0 : index
    %195 = vector.load %arg2[%c41, %c0_86] : memref<51x256xf32, #tpu.memory_space<vmem>>, vector<1x256xf32>
    %196 = vector.broadcast %195 : vector<1x256xf32> to vector<32x256xf32>
    %197 = arith.mulf %194, %196 : vector<32x256xf32>
    %198 = tpu.concatenate %169, %173, %177, %181, %163, %185, %189, %193, %197 in 0 : vector<32x256xf32>, vector<32x256xf32>, vector<32x256xf32>, vector<32x256xf32>, vector<32x256xf32>, vector<32x256xf32>, vector<32x256xf32>, vector<32x256xf32>, vector<32x256xf32> -> vector<288x256xf32>
    %cst_87 = arith.constant dense<0.000000e+00> : vector<32x256xf32>
    %199 = tpu.matmul %165, %198, %cst_87 {dimension_numbers = #tpu.dot_dimension_numbers<[1], [0], [0], [1], [0, 0, 1, 1], [], []>} : vector<32x288xf32>, vector<288x256xf32>, vector<32x256xf32> -> vector<32x256xf32>
    %c0_88 = arith.constant 0 : index
    %c7_89 = arith.constant 7 : index
    %200 = vector.load %arg3[%c0_88, %c7_89] : memref<32x12xf32, #tpu.memory_space<vmem>>, vector<32x1xf32>
    %201 = vector.broadcast %200 : vector<32x1xf32> to vector<32x256xf32>
    %202 = arith.addf %199, %201 : vector<32x256xf32>
    %cst_90 = arith.constant 0.000000e+00 : f32
    %203 = vector.broadcast %cst_90 : f32 to vector<32x256xf32>
    %204 = arith.maximumf %202, %203 : vector<32x256xf32>
    %c2_91 = arith.constant 2 : index
    %c0_92 = arith.constant 0 : index
    %c0_93 = arith.constant 0 : index
    %205 = vector.load %arg6[%c2_91, %c0_92, %c0_93] : memref<5x32x32xf32, #tpu.memory_space<vmem>>, vector<1x32x32xf32>
    %206 = vector.shape_cast %205 : vector<1x32x32xf32> to vector<32x32xf32>
    %cst_94 = arith.constant dense<0.000000e+00> : vector<32x256xf32>
    %207 = tpu.matmul %206, %204, %cst_94 {dimension_numbers = #tpu.dot_dimension_numbers<[1], [0], [0], [1], [0, 0, 1, 1], [], []>} : vector<32x32xf32>, vector<32x256xf32>, vector<32x256xf32> -> vector<32x256xf32>
    %c0_95 = arith.constant 0 : index
    %c4_96 = arith.constant 4 : index
    %208 = vector.load %arg3[%c0_95, %c4_96] : memref<32x12xf32, #tpu.memory_space<vmem>>, vector<32x1xf32>
    %209 = vector.broadcast %208 : vector<32x1xf32> to vector<32x256xf32>
    %210 = arith.addf %207, %209 : vector<32x256xf32>
    %211 = arith.addf %163, %210 : vector<32x256xf32>
    %c1_97 = arith.constant 1 : index
    %c0_98 = arith.constant 0 : index
    %c0_99 = arith.constant 0 : index
    %212 = vector.load %arg7[%c1_97, %c0_98, %c0_99] : memref<2x32x288xf32, #tpu.memory_space<vmem>>, vector<1x32x288xf32>
    %213 = vector.shape_cast %212 : vector<1x32x288xf32> to vector<32x288xf32>
    %c34_i32_100 = arith.constant 34 : i32
    %214 = tpu.dynamic_rotate %211 by %c34_i32_100 dim 1 : vector<32x256xf32>, i32 -> vector<32x256xf32>
    %c33_101 = arith.constant 33 : index
    %c0_102 = arith.constant 0 : index
    %215 = vector.load %arg2[%c33_101, %c0_102] : memref<51x256xf32, #tpu.memory_space<vmem>>, vector<1x256xf32>
    %216 = vector.broadcast %215 : vector<1x256xf32> to vector<32x256xf32>
    %217 = arith.mulf %214, %216 : vector<32x256xf32>
    %c32_i32_103 = arith.constant 32 : i32
    %218 = tpu.dynamic_rotate %211 by %c32_i32_103 dim 1 : vector<32x256xf32>, i32 -> vector<32x256xf32>
    %c34_104 = arith.constant 34 : index
    %c0_105 = arith.constant 0 : index
    %219 = vector.load %arg2[%c34_104, %c0_105] : memref<51x256xf32, #tpu.memory_space<vmem>>, vector<1x256xf32>
    %220 = vector.broadcast %219 : vector<1x256xf32> to vector<32x256xf32>
    %221 = arith.mulf %218, %220 : vector<32x256xf32>
    %c30_i32_106 = arith.constant 30 : i32
    %222 = tpu.dynamic_rotate %211 by %c30_i32_106 dim 1 : vector<32x256xf32>, i32 -> vector<32x256xf32>
    %c35_107 = arith.constant 35 : index
    %c0_108 = arith.constant 0 : index
    %223 = vector.load %arg2[%c35_107, %c0_108] : memref<51x256xf32, #tpu.memory_space<vmem>>, vector<1x256xf32>
    %224 = vector.broadcast %223 : vector<1x256xf32> to vector<32x256xf32>
    %225 = arith.mulf %222, %224 : vector<32x256xf32>
    %c2_i32_109 = arith.constant 2 : i32
    %226 = tpu.dynamic_rotate %211 by %c2_i32_109 dim 1 : vector<32x256xf32>, i32 -> vector<32x256xf32>
    %c36_110 = arith.constant 36 : index
    %c0_111 = arith.constant 0 : index
    %227 = vector.load %arg2[%c36_110, %c0_111] : memref<51x256xf32, #tpu.memory_space<vmem>>, vector<1x256xf32>
    %228 = vector.broadcast %227 : vector<1x256xf32> to vector<32x256xf32>
    %229 = arith.mulf %226, %228 : vector<32x256xf32>
    %c254_i32_112 = arith.constant 254 : i32
    %230 = tpu.dynamic_rotate %211 by %c254_i32_112 dim 1 : vector<32x256xf32>, i32 -> vector<32x256xf32>
    %c38_113 = arith.constant 38 : index
    %c0_114 = arith.constant 0 : index
    %231 = vector.load %arg2[%c38_113, %c0_114] : memref<51x256xf32, #tpu.memory_space<vmem>>, vector<1x256xf32>
    %232 = vector.broadcast %231 : vector<1x256xf32> to vector<32x256xf32>
    %233 = arith.mulf %230, %232 : vector<32x256xf32>
    %c226_i32_115 = arith.constant 226 : i32
    %234 = tpu.dynamic_rotate %211 by %c226_i32_115 dim 1 : vector<32x256xf32>, i32 -> vector<32x256xf32>
    %c39_116 = arith.constant 39 : index
    %c0_117 = arith.constant 0 : index
    %235 = vector.load %arg2[%c39_116, %c0_117] : memref<51x256xf32, #tpu.memory_space<vmem>>, vector<1x256xf32>
    %236 = vector.broadcast %235 : vector<1x256xf32> to vector<32x256xf32>
    %237 = arith.mulf %234, %236 : vector<32x256xf32>
    %c224_i32_118 = arith.constant 224 : i32
    %238 = tpu.dynamic_rotate %211 by %c224_i32_118 dim 1 : vector<32x256xf32>, i32 -> vector<32x256xf32>
    %c40_119 = arith.constant 40 : index
    %c0_120 = arith.constant 0 : index
    %239 = vector.load %arg2[%c40_119, %c0_120] : memref<51x256xf32, #tpu.memory_space<vmem>>, vector<1x256xf32>
    %240 = vector.broadcast %239 : vector<1x256xf32> to vector<32x256xf32>
    %241 = arith.mulf %238, %240 : vector<32x256xf32>
    %c222_i32_121 = arith.constant 222 : i32
    %242 = tpu.dynamic_rotate %211 by %c222_i32_121 dim 1 : vector<32x256xf32>, i32 -> vector<32x256xf32>
    %c41_122 = arith.constant 41 : index
    %c0_123 = arith.constant 0 : index
    %243 = vector.load %arg2[%c41_122, %c0_123] : memref<51x256xf32, #tpu.memory_space<vmem>>, vector<1x256xf32>
    %244 = vector.broadcast %243 : vector<1x256xf32> to vector<32x256xf32>
    %245 = arith.mulf %242, %244 : vector<32x256xf32>
    %246 = tpu.concatenate %217, %221, %225, %229, %211, %233, %237, %241, %245 in 0 : vector<32x256xf32>, vector<32x256xf32>, vector<32x256xf32>, vector<32x256xf32>, vector<32x256xf32>, vector<32x256xf32>, vector<32x256xf32>, vector<32x256xf32>, vector<32x256xf32> -> vector<288x256xf32>
    %cst_124 = arith.constant dense<0.000000e+00> : vector<32x256xf32>
    %247 = tpu.matmul %213, %246, %cst_124 {dimension_numbers = #tpu.dot_dimension_numbers<[1], [0], [0], [1], [0, 0, 1, 1], [], []>} : vector<32x288xf32>, vector<288x256xf32>, vector<32x256xf32> -> vector<32x256xf32>
    %c0_125 = arith.constant 0 : index
    %c8_126 = arith.constant 8 : index
    %248 = vector.load %arg3[%c0_125, %c8_126] : memref<32x12xf32, #tpu.memory_space<vmem>>, vector<32x1xf32>
    %249 = vector.broadcast %248 : vector<32x1xf32> to vector<32x256xf32>
    %250 = arith.addf %247, %249 : vector<32x256xf32>
    %cst_127 = arith.constant 0.000000e+00 : f32
    %251 = vector.broadcast %cst_127 : f32 to vector<32x256xf32>
    %252 = arith.maximumf %250, %251 : vector<32x256xf32>
    %c3_128 = arith.constant 3 : index
    %c0_129 = arith.constant 0 : index
    %c0_130 = arith.constant 0 : index
    %253 = vector.load %arg6[%c3_128, %c0_129, %c0_130] : memref<5x32x32xf32, #tpu.memory_space<vmem>>, vector<1x32x32xf32>
    %254 = vector.shape_cast %253 : vector<1x32x32xf32> to vector<32x32xf32>
    %cst_131 = arith.constant dense<0.000000e+00> : vector<32x256xf32>
    %255 = tpu.matmul %254, %252, %cst_131 {dimension_numbers = #tpu.dot_dimension_numbers<[1], [0], [0], [1], [0, 0, 1, 1], [], []>} : vector<32x32xf32>, vector<32x256xf32>, vector<32x256xf32> -> vector<32x256xf32>
    %c0_132 = arith.constant 0 : index
    %c5_133 = arith.constant 5 : index
    %256 = vector.load %arg3[%c0_132, %c5_133] : memref<32x12xf32, #tpu.memory_space<vmem>>, vector<32x1xf32>
    %257 = vector.broadcast %256 : vector<32x1xf32> to vector<32x256xf32>
    %258 = arith.addf %255, %257 : vector<32x256xf32>
    %259 = arith.addf %211, %258 : vector<32x256xf32>
    %c4_134 = arith.constant 4 : index
    %c0_135 = arith.constant 0 : index
    %c0_136 = arith.constant 0 : index
    %260 = vector.load %arg6[%c4_134, %c0_135, %c0_136] : memref<5x32x32xf32, #tpu.memory_space<vmem>>, vector<1x32x32xf32>
    %261 = vector.shape_cast %260 : vector<1x32x32xf32> to vector<32x32xf32>
    %cst_137 = arith.constant dense<0.000000e+00> : vector<32x256xf32>
    %262 = tpu.matmul %261, %259, %cst_137 {dimension_numbers = #tpu.dot_dimension_numbers<[1], [0], [0], [1], [0, 0, 1, 1], [], []>} : vector<32x32xf32>, vector<32x256xf32>, vector<32x256xf32> -> vector<32x256xf32>
    %c0_138 = arith.constant 0 : index
    %c6_139 = arith.constant 6 : index
    %263 = vector.load %arg3[%c0_138, %c6_139] : memref<32x12xf32, #tpu.memory_space<vmem>>, vector<32x1xf32>
    %264 = vector.broadcast %263 : vector<32x1xf32> to vector<32x256xf32>
    %265 = arith.addf %262, %264 : vector<32x256xf32>
    %cst_140 = arith.constant 0.000000e+00 : f32
    %266 = vector.broadcast %cst_140 : f32 to vector<32x256xf32>
    %267 = arith.maximumf %265, %266 : vector<32x256xf32>
    %c0_141 = arith.constant 0 : index
    %c0_142 = arith.constant 0 : index
    %268 = vector.load %arg8[%c0_141, %c0_142] : memref<32x288xf32, #tpu.memory_space<vmem>>, vector<32x288xf32>
    %c17_i32_143 = arith.constant 17 : i32
    %269 = tpu.dynamic_rotate %267 by %c17_i32_143 dim 1 : vector<32x256xf32>, i32 -> vector<32x256xf32>
    %c42 = arith.constant 42 : index
    %c0_144 = arith.constant 0 : index
    %270 = vector.load %arg2[%c42, %c0_144] : memref<51x256xf32, #tpu.memory_space<vmem>>, vector<1x256xf32>
    %271 = vector.broadcast %270 : vector<1x256xf32> to vector<32x256xf32>
    %272 = arith.mulf %269, %271 : vector<32x256xf32>
    %c16_i32_145 = arith.constant 16 : i32
    %273 = tpu.dynamic_rotate %267 by %c16_i32_145 dim 1 : vector<32x256xf32>, i32 -> vector<32x256xf32>
    %c43 = arith.constant 43 : index
    %c0_146 = arith.constant 0 : index
    %274 = vector.load %arg2[%c43, %c0_146] : memref<51x256xf32, #tpu.memory_space<vmem>>, vector<1x256xf32>
    %275 = vector.broadcast %274 : vector<1x256xf32> to vector<32x256xf32>
    %276 = arith.mulf %273, %275 : vector<32x256xf32>
    %c15_i32_147 = arith.constant 15 : i32
    %277 = tpu.dynamic_rotate %267 by %c15_i32_147 dim 1 : vector<32x256xf32>, i32 -> vector<32x256xf32>
    %c44 = arith.constant 44 : index
    %c0_148 = arith.constant 0 : index
    %278 = vector.load %arg2[%c44, %c0_148] : memref<51x256xf32, #tpu.memory_space<vmem>>, vector<1x256xf32>
    %279 = vector.broadcast %278 : vector<1x256xf32> to vector<32x256xf32>
    %280 = arith.mulf %277, %279 : vector<32x256xf32>
    %c1_i32_149 = arith.constant 1 : i32
    %281 = tpu.dynamic_rotate %267 by %c1_i32_149 dim 1 : vector<32x256xf32>, i32 -> vector<32x256xf32>
    %c45 = arith.constant 45 : index
    %c0_150 = arith.constant 0 : index
    %282 = vector.load %arg2[%c45, %c0_150] : memref<51x256xf32, #tpu.memory_space<vmem>>, vector<1x256xf32>
    %283 = vector.broadcast %282 : vector<1x256xf32> to vector<32x256xf32>
    %284 = arith.mulf %281, %283 : vector<32x256xf32>
    %c255_i32_151 = arith.constant 255 : i32
    %285 = tpu.dynamic_rotate %267 by %c255_i32_151 dim 1 : vector<32x256xf32>, i32 -> vector<32x256xf32>
    %c47 = arith.constant 47 : index
    %c0_152 = arith.constant 0 : index
    %286 = vector.load %arg2[%c47, %c0_152] : memref<51x256xf32, #tpu.memory_space<vmem>>, vector<1x256xf32>
    %287 = vector.broadcast %286 : vector<1x256xf32> to vector<32x256xf32>
    %288 = arith.mulf %285, %287 : vector<32x256xf32>
    %c241_i32_153 = arith.constant 241 : i32
    %289 = tpu.dynamic_rotate %267 by %c241_i32_153 dim 1 : vector<32x256xf32>, i32 -> vector<32x256xf32>
    %c48 = arith.constant 48 : index
    %c0_154 = arith.constant 0 : index
    %290 = vector.load %arg2[%c48, %c0_154] : memref<51x256xf32, #tpu.memory_space<vmem>>, vector<1x256xf32>
    %291 = vector.broadcast %290 : vector<1x256xf32> to vector<32x256xf32>
    %292 = arith.mulf %289, %291 : vector<32x256xf32>
    %c240_i32_155 = arith.constant 240 : i32
    %293 = tpu.dynamic_rotate %267 by %c240_i32_155 dim 1 : vector<32x256xf32>, i32 -> vector<32x256xf32>
    %c49 = arith.constant 49 : index
    %c0_156 = arith.constant 0 : index
    %294 = vector.load %arg2[%c49, %c0_156] : memref<51x256xf32, #tpu.memory_space<vmem>>, vector<1x256xf32>
    %295 = vector.broadcast %294 : vector<1x256xf32> to vector<32x256xf32>
    %296 = arith.mulf %293, %295 : vector<32x256xf32>
    %c239_i32_157 = arith.constant 239 : i32
    %297 = tpu.dynamic_rotate %267 by %c239_i32_157 dim 1 : vector<32x256xf32>, i32 -> vector<32x256xf32>
    %c50 = arith.constant 50 : index
    %c0_158 = arith.constant 0 : index
    %298 = vector.load %arg2[%c50, %c0_158] : memref<51x256xf32, #tpu.memory_space<vmem>>, vector<1x256xf32>
    %299 = vector.broadcast %298 : vector<1x256xf32> to vector<32x256xf32>
    %300 = arith.mulf %297, %299 : vector<32x256xf32>
    %301 = tpu.concatenate %272, %276, %280, %284, %267, %288, %292, %296, %300 in 0 : vector<32x256xf32>, vector<32x256xf32>, vector<32x256xf32>, vector<32x256xf32>, vector<32x256xf32>, vector<32x256xf32>, vector<32x256xf32>, vector<32x256xf32>, vector<32x256xf32> -> vector<288x256xf32>
    %cst_159 = arith.constant dense<0.000000e+00> : vector<32x256xf32>
    %302 = tpu.matmul %268, %301, %cst_159 {dimension_numbers = #tpu.dot_dimension_numbers<[1], [0], [0], [1], [0, 0, 1, 1], [], []>} : vector<32x288xf32>, vector<288x256xf32>, vector<32x256xf32> -> vector<32x256xf32>
    %c0_160 = arith.constant 0 : index
    %c9_161 = arith.constant 9 : index
    %303 = vector.load %arg3[%c0_160, %c9_161] : memref<32x12xf32, #tpu.memory_space<vmem>>, vector<32x1xf32>
    %304 = vector.broadcast %303 : vector<32x1xf32> to vector<32x256xf32>
    %305 = arith.addf %302, %304 : vector<32x256xf32>
    %c0_162 = arith.constant 0 : index
    %c0_163 = arith.constant 0 : index
    %306 = vector.load %arg9[%c0_162, %c0_163] : memref<32x32xf32, #tpu.memory_space<vmem>>, vector<32x32xf32>
    %cst_164 = arith.constant dense<0.000000e+00> : vector<32x256xf32>
    %307 = tpu.matmul %306, %305, %cst_164 {dimension_numbers = #tpu.dot_dimension_numbers<[1], [0], [0], [1], [0, 0, 1, 1], [], []>} : vector<32x32xf32>, vector<32x256xf32>, vector<32x256xf32> -> vector<32x256xf32>
    %c0_165 = arith.constant 0 : index
    %c10_166 = arith.constant 10 : index
    %308 = vector.load %arg3[%c0_165, %c10_166] : memref<32x12xf32, #tpu.memory_space<vmem>>, vector<32x1xf32>
    %309 = vector.broadcast %308 : vector<32x1xf32> to vector<32x256xf32>
    %310 = arith.addf %307, %309 : vector<32x256xf32>
    %c0_167 = arith.constant 0 : index
    %c0_168 = arith.constant 0 : index
    %311 = vector.load %arg10[%c0_167, %c0_168] : memref<32x32xf32, #tpu.memory_space<vmem>>, vector<32x32xf32>
    %cst_169 = arith.constant dense<0.000000e+00> : vector<32x256xf32>
    %312 = tpu.matmul %311, %267, %cst_169 {dimension_numbers = #tpu.dot_dimension_numbers<[1], [0], [0], [1], [0, 0, 1, 1], [], []>} : vector<32x32xf32>, vector<32x256xf32>, vector<32x256xf32> -> vector<32x256xf32>
    %c0_170 = arith.constant 0 : index
    %c11_171 = arith.constant 11 : index
    %313 = vector.load %arg3[%c0_170, %c11_171] : memref<32x12xf32, #tpu.memory_space<vmem>>, vector<32x1xf32>
    %314 = vector.broadcast %313 : vector<32x1xf32> to vector<32x256xf32>
    %315 = arith.addf %312, %314 : vector<32x256xf32>
    %cst_172 = arith.constant 0.000000e+00 : f32
    %316 = vector.broadcast %cst_172 : f32 to vector<32x256xf32>
    %317 = arith.maximumf %315, %316 : vector<32x256xf32>
    %318 = arith.addf %310, %317 : vector<32x256xf32>
    %c0_173 = arith.constant 0 : index
    %c0_174 = arith.constant 0 : index
    %c0_175 = arith.constant 0 : index
    %c0_176 = arith.constant 0 : index
    %319 = vector.load %arg11[%c0_173, %c0_174, %c0_175, %c0_176] : memref<1x1x32x256xf32, #tpu.memory_space<vmem>>, vector<1x1x32x256xf32>
    %320 = vector.shape_cast %319 : vector<1x1x32x256xf32> to vector<32x256xf32>
    %321 = vector.shape_cast %318 : vector<32x256xf32> to vector<1x1x32x256xf32>
    tpu.vector_store %arg11[%c0_173, %c0_174, %c0_175, %c0_176], %321 {strides = array<i32>} : memref<1x1x32x256xf32, #tpu.memory_space<vmem>>, vector<1x1x32x256xf32>,
    return
  }
  func.func @transform_0(%arg0: i32) -> (i32, i32, i32) {
    %c0_i32 = arith.constant 0 : i32
    %c0_i32_0 = arith.constant 0 : i32
    %c0_i32_1 = arith.constant 0 : i32
    return %arg0, %c0_i32, %c0_i32_0 : i32, i32, i32
  }
  func.func @transform_1(%arg0: i32) -> (i32, i32) {
    %c0_i32 = arith.constant 0 : i32
    %c0_i32_0 = arith.constant 0 : i32
    %c0_i32_1 = arith.constant 0 : i32
    return %c0_i32, %c0_i32_0 : i32, i32
  }
  func.func @transform_2(%arg0: i32) -> (i32, i32) {
    %c0_i32 = arith.constant 0 : i32
    %c0_i32_0 = arith.constant 0 : i32
    %c0_i32_1 = arith.constant 0 : i32
    return %c0_i32, %c0_i32_0 : i32, i32
  }
  func.func @transform_3(%arg0: i32) -> (i32, i32) {
    %c0_i32 = arith.constant 0 : i32
    %c0_i32_0 = arith.constant 0 : i32
    %c0_i32_1 = arith.constant 0 : i32
    return %c0_i32, %c0_i32_0 : i32, i32
  }
  func.func @transform_4(%arg0: i32) -> (i32, i32) {
    %c0_i32 = arith.constant 0 : i32
    %c0_i32_0 = arith.constant 0 : i32
    %c0_i32_1 = arith.constant 0 : i32
    return %c0_i32, %c0_i32_0 : i32, i32
  }
  func.func @transform_5(%arg0: i32) -> (i32, i32, i32) {
    %c0_i32 = arith.constant 0 : i32
    %c0_i32_0 = arith.constant 0 : i32
    %c0_i32_1 = arith.constant 0 : i32
    %c0_i32_2 = arith.constant 0 : i32
    return %c0_i32, %c0_i32_0, %c0_i32_1 : i32, i32, i32
  }
  func.func @transform_6(%arg0: i32) -> (i32, i32, i32) {
    %c0_i32 = arith.constant 0 : i32
    %c0_i32_0 = arith.constant 0 : i32
    %c0_i32_1 = arith.constant 0 : i32
    %c0_i32_2 = arith.constant 0 : i32
    return %c0_i32, %c0_i32_0, %c0_i32_1 : i32, i32, i32
  }
  func.func @transform_7(%arg0: i32) -> (i32, i32) {
    %c0_i32 = arith.constant 0 : i32
    %c0_i32_0 = arith.constant 0 : i32
    %c0_i32_1 = arith.constant 0 : i32
    return %c0_i32, %c0_i32_0 : i32, i32
  }
  func.func @transform_8(%arg0: i32) -> (i32, i32) {
    %c0_i32 = arith.constant 0 : i32
    %c0_i32_0 = arith.constant 0 : i32
    %c0_i32_1 = arith.constant 0 : i32
    return %c0_i32, %c0_i32_0 : i32, i32
  }
  func.func @transform_9(%arg0: i32) -> (i32, i32) {
    %c0_i32 = arith.constant 0 : i32
    %c0_i32_0 = arith.constant 0 : i32
    %c0_i32_1 = arith.constant 0 : i32
    return %c0_i32, %c0_i32_0 : i32, i32
  }
  func.func @transform_10(%arg0: i32) -> (i32, i32, i32, i32) {
    %c0_i32 = arith.constant 0 : i32
    %c0_i32_0 = arith.constant 0 : i32
    %c0_i32_1 = arith.constant 0 : i32
    %c0_i32_2 = arith.constant 0 : i32
    return %arg0, %c0_i32, %c0_i32_0, %c0_i32_1 : i32, i32, i32, i32
  }
}

</mosaic_0001>

<llo_original>
// kernel: tpu_custom_call.1
$region0: #{tpu_custom_call.1}
  #allocation0 [shape = 'u32[]', space=smem, size = 0x4, offset = 0x4, fixed_abs, tag = 'smem constant byte address 0x4 - core index']
  #allocation1 [shape = 'u32[144,128]{1,0:T(1,128)}', space=vmem, size = 0x12000, scoped, tag = 'internal scratch']
  %s0 = inlined_call_operand.vmem [shape: f32[2,8,256], index: 0, kind: input, shape index: {}]
  %s1 = inlined_call_operand.hbm [shape: f32[51,256], index: 1, kind: input, shape index: {}]
  %s2 = inlined_call_operand.vmem [shape: f32[32,12], index: 2, kind: input, shape index: {}]
  %s3 = inlined_call_operand.hbm [shape: f32[32,200], index: 3, kind: input, shape index: {}]
  %s4 = inlined_call_operand.hbm [shape: f32[32,256], index: 4, kind: input, shape index: {}]
  %s5 = inlined_call_operand.hbm [shape: f32[5,32,32], index: 5, kind: input, shape index: {}]
  %s6 = inlined_call_operand.hbm [shape: f32[2,32,288], index: 6, kind: input, shape index: {}]
  %s7 = inlined_call_operand.hbm [shape: f32[32,288], index: 7, kind: input, shape index: {}]
  %s8 = inlined_call_operand.vmem [shape: f32[32,32], index: 8, kind: input, shape index: {}]
  %s9 = inlined_call_operand.hbm [shape: f32[32,32], index: 9, kind: input, shape index: {}]
  %s10 = inlined_call_operand.hbm [shape: f32[2,1,32,256], index: 10, kind: output, shape index: {}]
  %s11 = sld [smem:[#allocation0]]
  $region101: #{tpu_custom_call.1} parent=0
    _
  %s13 = ssub.s32 1, %s11
  %s14 = scalar_select 0, %s13, %s11
  $region1: #{tpu_custom_call.1} parent=0
    #allocation2 [shape = 'u8[57344]{0}', space=vmem, size = 0xe000, scoped, tag = 'input window, operand 1, single buffered']
    #allocation3 [shape = 's32[2]{0}', space=sflag, size = 0x8, scoped, tag = 'scoped memory for tpu_custom_call.1']
    #allocation4 [shape = 's32[2]{0}', space=sflag, size = 0x8, scoped, tag = 'scoped memory for tpu_custom_call.1']
    #allocation5 [shape = 'u8[32768]{0}', space=vmem, size = 0x8000, scoped, tag = 'input window, operand 3, single buffered']
    #allocation6 [shape = 's32[1]{0}', space=sflag, size = 0x4, scoped, tag = 'scoped memory for tpu_custom_call.1']
    #allocation7 [shape = 'u8[32768]{0}', space=vmem, size = 0x8000, scoped, tag = 'input window, operand 4, single buffered']
    #allocation8 [shape = 'u8[81920]{0}', space=vmem, size = 0x14000, scoped, tag = 'input window, operand 5, single buffered']
    #allocation9 [shape = 's32[1]{0}', space=sflag, size = 0x4, scoped, tag = 'scoped memory for tpu_custom_call.1']
    #allocation10 [shape = 'u8[98304]{0}', space=vmem, size = 0x18000, scoped, tag = 'input window, operand 6, single buffered']
    #allocation11 [shape = 'u8[49152]{0}', space=vmem, size = 0xc000, scoped, tag = 'input window, operand 7, single buffered']
    #allocation12 [shape = 's32[1]{0}', space=sflag, size = 0x4, scoped, tag = 'scoped memory for tpu_custom_call.1']
    #allocation13 [shape = 'u8[16384]{0}', space=vmem, size = 0x4000, scoped, tag = 'input window, operand 9, single buffered']
    #allocation14 [shape = 'u8[65536]{0}', space=vmem, size = 0x10000, scoped, tag = 'output window, operand 0']
    %15 = vsyncpa [#allocation3], 0
    %16 = vsyncpa [#allocation6], 0
    %17 = vsyncpa [#allocation9], 0
    %18 = vsyncpa [#allocation12], 0
    %19 = vsyncpa [#allocation4], 0
    %s20 = scalar_lea.sflag [#allocation4], 1
    %21 = vsyncpa %s20, 0
    loop: start=0, step=1, limit=4
    $region2: #{tpu_custom_call.1} parent=1 // loop_pre_header
      _
    $region3: #{tpu_custom_call.1} parent=1 // loop_header
      %s23 = sphi 0, %s27
      %p24 = scmp.ge.s32.totalorder %s23, 4
      %s33 = sphi 0, %s35
      %s36 = sphi 0, %s33
      %s37 = sphi 0, %s36
      %s53 = sphi 0, %s37
      %s57 = sphi 0, %s57
      %s59 = sphi 0, %s57
      %s60 = sphi 0, %s59
      %s74 = sphi 0, %s60
      %s78 = sphi 0, %s78
      %s80 = sphi 0, %s78
      %s81 = sphi 0, %s80
      %s95 = sphi 0, %s81
      %s99 = sphi 0, %s99
      %s101 = sphi 0, %s99
      %s102 = sphi 0, %s101
      %s116 = sphi 0, %s102
      %s120 = sphi 0, %s120
      %s122 = sphi 0, %s120
      %s123 = sphi 0, %s122
      %s137 = sphi 0, %s123
      %s141 = sphi 0, %s141
      %s143 = sphi 0, %s141
      %s144 = sphi 0, %s143
      %s158 = sphi 0, %s144
      %s162 = sphi 0, %s162
      %s164 = sphi 0, %s162
      %s165 = sphi 0, %s164
      %s179 = sphi 0, %s165
      %s183 = sphi 0, %s183
      %s185 = sphi 0, %s183
      %s186 = sphi 0, %s185
      %s200 = sphi 0, %s186
      %s204 = sphi 0, %s204
      %s206 = sphi 0, %s204
      %s207 = sphi 0, %s206
      %s221 = sphi 0, %s207
      %s225 = sphi 0, %s225
      %s227 = sphi 0, %s225
      %s228 = sphi 0, %s227
      %s242 = sphi 0, %s228
      %s248 = sphi 0, %s250
      %s251 = sphi 0, %s248
      %s252 = sphi 0, %s251
      %s268 = sphi 0, %s252
    $region4: #{tpu_custom_call.1} parent=1 // loop_header_branch
      %26 = sbr.rel (%p24) target = $region8
    $region5: #{tpu_custom_call.1} parent=1 // loop_body
      %s28 = ssub.s32 %s23, 1
      %s29 = ssub.s32 %s23, 2
      %s30 = sadd.s32 %s23, 1
      %s31 = ssub.s32 %s23, %s30
      %p32 = scmp.eq.s32.totalorder %s31, 0
      %s34 = sadd.s32 %s33, 1
      %s35 = scalar_select %p32, %s33, %s34
      %p38 = pneg %p32
      %p39 = scmp.eq.s32.totalorder %s23, 1
      %p40 = por %p38, %p39
      %p41 = scmp.ne.s32.totalorder %s33, %s36
      %p42 = scmp.eq.s32.totalorder %s23, 0
      %p43 = por %p41, %p42
      %p44 = scmp.ne.s32.totalorder %s33, %s36
      %p45 = scmp.eq.s32.totalorder %s28, 1
      %p46 = por %p44, %p45
      %p47 = scmp.ne.s32.totalorder %s36, %s37
      %p48 = scmp.eq.s32.totalorder %s28, 0
      %p49 = por %p47, %p48
      %p50 = scmp.ne.s32.totalorder %s36, %s37
      %p51 = scmp.eq.s32.totalorder %s29, 1
      %p52 = por %p50, %p51
      %p54 = scmp.ne.s32.totalorder %s37, %s53
      %p55 = scmp.eq.s32.totalorder %s29, 0
      %p56 = por %p54, %p55
      %s58 = sadd.s32 %s57, 1
      %p61 = scmp.eq.s32.totalorder %s23, 1
      %p62 = scmp.ne.s32.totalorder %s57, %s59
      %p63 = scmp.eq.s32.totalorder %s23, 0
      %p64 = por %p62, %p63
      %p65 = scmp.ne.s32.totalorder %s57, %s59
      %p66 = scmp.eq.s32.totalorder %s28, 1
      %p67 = por %p65, %p66
      %p68 = scmp.ne.s32.totalorder %s59, %s60
      %p69 = scmp.eq.s32.totalorder %s28, 0
      %p70 = por %p68, %p69
      %p71 = scmp.ne.s32.totalorder %s59, %s60
      %p72 = scmp.eq.s32.totalorder %s29, 1
      %p73 = por %p71, %p72
      %p75 = scmp.ne.s32.totalorder %s60, %s74
      %p76 = scmp.eq.s32.totalorder %s29, 0
      %p77 = por %p75, %p76
      %s79 = sadd.s32 %s78, 1
      %p82 = scmp.eq.s32.totalorder %s23, 1
      %p83 = scmp.ne.s32.totalorder %s78, %s80
      %p84 = scmp.eq.s32.totalorder %s23, 0
      %p85 = por %p83, %p84
      %p86 = scmp.ne.s32.totalorder %s78, %s80
      %p87 = scmp.eq.s32.totalorder %s28, 1
      %p88 = por %p86, %p87
      %p89 = scmp.ne.s32.totalorder %s80, %s81
      %p90 = scmp.eq.s32.totalorder %s28, 0
      %p91 = por %p89, %p90
      %p92 = scmp.ne.s32.totalorder %s80, %s81
      %p93 = scmp.eq.s32.totalorder %s29, 1
      %p94 = por %p92, %p93
      %p96 = scmp.ne.s32.totalorder %s81, %s95
      %p97 = scmp.eq.s32.totalorder %s29, 0
      %p98 = por %p96, %p97
      %s100 = sadd.s32 %s99, 1
      %p103 = scmp.eq.s32.totalorder %s23, 1
      %p104 = scmp.ne.s32.totalorder %s99, %s101
      %p105 = scmp.eq.s32.totalorder %s23, 0
      %p106 = por %p104, %p105
      %p107 = scmp.ne.s32.totalorder %s99, %s101
      %p108 = scmp.eq.s32.totalorder %s28, 1
      %p109 = por %p107, %p108
      %p110 = scmp.ne.s32.totalorder %s101, %s102
      %p111 = scmp.eq.s32.totalorder %s28, 0
      %p112 = por %p110, %p111
      %p113 = scmp.ne.s32.totalorder %s101, %s102
      %p114 = scmp.eq.s32.totalorder %s29, 1
      %p115 = por %p113, %p114
      %p117 = scmp.ne.s32.totalorder %s102, %s116
      %p118 = scmp.eq.s32.totalorder %s29, 0
      %p119 = por %p117, %p118
      %s121 = sadd.s32 %s120, 1
      %p124 = scmp.eq.s32.totalorder %s23, 1
      %p125 = scmp.ne.s32.totalorder %s120, %s122
      %p126 = scmp.eq.s32.totalorder %s23, 0
      %p127 = por %p125, %p126
      %p128 = scmp.ne.s32.totalorder %s120, %s122
      %p129 = scmp.eq.s32.totalorder %s28, 1
      %p130 = por %p128, %p129
      %p131 = scmp.ne.s32.totalorder %s122, %s123
      %p132 = scmp.eq.s32.totalorder %s28, 0
      %p133 = por %p131, %p132
      %p134 = scmp.ne.s32.totalorder %s122, %s123
      %p135 = scmp.eq.s32.totalorder %s29, 1
      %p136 = por %p134, %p135
      %p138 = scmp.ne.s32.totalorder %s123, %s137
      %p139 = scmp.eq.s32.totalorder %s29, 0
      %p140 = por %p138, %p139
      %s142 = sadd.s32 %s141, 1
      %p145 = scmp.eq.s32.totalorder %s23, 1
      %p146 = scmp.ne.s32.totalorder %s141, %s143
      %p147 = scmp.eq.s32.totalorder %s23, 0
      %p148 = por %p146, %p147
      %p149 = scmp.ne.s32.totalorder %s141, %s143
      %p150 = scmp.eq.s32.totalorder %s28, 1
      %p151 = por %p149, %p150
      %p152 = scmp.ne.s32.totalorder %s143, %s144
      %p153 = scmp.eq.s32.totalorder %s28, 0
      %p154 = por %p152, %p153
      %p155 = scmp.ne.s32.totalorder %s143, %s144
      %p156 = scmp.eq.s32.totalorder %s29, 1
      %p157 = por %p155, %p156
      %p159 = scmp.ne.s32.totalorder %s144, %s158
      %p160 = scmp.eq.s32.totalorder %s29, 0
      %p161 = por %p159, %p160
      %s163 = sadd.s32 %s162, 1
      %p166 = scmp.eq.s32.totalorder %s23, 1
      %p167 = scmp.ne.s32.totalorder %s162, %s164
      %p168 = scmp.eq.s32.totalorder %s23, 0
      %p169 = por %p167, %p168
      %p170 = scmp.ne.s32.totalorder %s162, %s164
      %p171 = scmp.eq.s32.totalorder %s28, 1
      %p172 = por %p170, %p171
      %p173 = scmp.ne.s32.totalorder %s164, %s165
      %p174 = scmp.eq.s32.totalorder %s28, 0
      %p175 = por %p173, %p174
      %p176 = scmp.ne.s32.totalorder %s164, %s165
      %p177 = scmp.eq.s32.totalorder %s29, 1
      %p178 = por %p176, %p177
      %p180 = scmp.ne.s32.totalorder %s165, %s179
      %p181 = scmp.eq.s32.totalorder %s29, 0
      %p182 = por %p180, %p181
      %s184 = sadd.s32 %s183, 1
      %p187 = scmp.eq.s32.totalorder %s23, 1
      %p188 = scmp.ne.s32.totalorder %s183, %s185
      %p189 = scmp.eq.s32.totalorder %s23, 0
      %p190 = por %p188, %p189
      %p191 = scmp.ne.s32.totalorder %s183, %s185
      %p192 = scmp.eq.s32.totalorder %s28, 1
      %p193 = por %p191, %p192
      %p194 = scmp.ne.s32.totalorder %s185, %s186
      %p195 = scmp.eq.s32.totalorder %s28, 0
      %p196 = por %p194, %p195
      %p197 = scmp.ne.s32.totalorder %s185, %s186
      %p198 = scmp.eq.s32.totalorder %s29, 1
      %p199 = por %p197, %p198
      %p201 = scmp.ne.s32.totalorder %s186, %s200
      %p202 = scmp.eq.s32.totalorder %s29, 0
      %p203 = por %p201, %p202
      %s205 = sadd.s32 %s204, 1
      %p208 = scmp.eq.s32.totalorder %s23, 1
      %p209 = scmp.ne.s32.totalorder %s204, %s206
      %p210 = scmp.eq.s32.totalorder %s23, 0
      %p211 = por %p209, %p210
      %p212 = scmp.ne.s32.totalorder %s204, %s206
      %p213 = scmp.eq.s32.totalorder %s28, 1
      %p214 = por %p212, %p213
      %p215 = scmp.ne.s32.totalorder %s206, %s207
      %p216 = scmp.eq.s32.totalorder %s28, 0
      %p217 = por %p215, %p216
      %p218 = scmp.ne.s32.totalorder %s206, %s207
      %p219 = scmp.eq.s32.totalorder %s29, 1
      %p220 = por %p218, %p219
      %p222 = scmp.ne.s32.totalorder %s207, %s221
      %p223 = scmp.eq.s32.totalorder %s29, 0
      %p224 = por %p222, %p223
      %s226 = sadd.s32 %s225, 1
      %p229 = scmp.eq.s32.totalorder %s23, 1
      %p230 = scmp.ne.s32.totalorder %s225, %s227
      %p231 = scmp.eq.s32.totalorder %s23, 0
      %p232 = por %p230, %p231
      %p233 = scmp.ne.s32.totalorder %s225, %s227
      %p234 = scmp.eq.s32.totalorder %s28, 1
      %p235 = por %p233, %p234
      %p236 = scmp.ne.s32.totalorder %s227, %s228
      %p237 = scmp.eq.s32.totalorder %s28, 0
      %p238 = por %p236, %p237
      %p239 = scmp.ne.s32.totalorder %s227, %s228
      %p240 = scmp.eq.s32.totalorder %s29, 1
      %p241 = por %p239, %p240
      %p243 = scmp.ne.s32.totalorder %s228, %s242
      %p244 = scmp.eq.s32.totalorder %s29, 0
      %p245 = por %p243, %p244
      %s246 = ssub.s32 %s23, %s30
      %p247 = scmp.eq.s32.totalorder %s246, 0
      %s249 = sadd.s32 %s248, 1
      %s250 = scalar_select %p247, %s248, %s249
      %p253 = pneg %p247
      %p254 = scmp.eq.s32.totalorder %s23, 1
      %p255 = por %p253, %p254
      %p256 = scmp.ne.s32.totalorder %s248, %s251
      %p257 = scmp.eq.s32.totalorder %s23, 0
      %p258 = por %p256, %p257
      %p259 = scmp.ne.s32.totalorder %s248, %s251
      %p260 = scmp.eq.s32.totalorder %s28, 1
      %p261 = por %p259, %p260
      %p262 = scmp.ne.s32.totalorder %s251, %s252
      %p263 = scmp.eq.s32.totalorder %s28, 0
      %p264 = por %p262, %p263
      %p265 = scmp.ne.s32.totalorder %s251, %s252
      %p266 = scmp.eq.s32.totalorder %s29, 1
      %p267 = por %p265, %p266
      %p269 = scmp.ne.s32.totalorder %s252, %s268
      %p270 = scmp.eq.s32.totalorder %s29, 0
      %p271 = por %p269, %p270
      %p272 = scmp.le.s32.totalorder 1, %s23
      %p273 = scmp.lt.s32.totalorder %s23, 3
      %p274 = pnand %p272, %p273
      %p275 = pneg %p274
      // Predicated region
      $region9: #{tpu_custom_call.1} parent=5 // pred_check
        _
      $region10: #{tpu_custom_call.1} parent=5 // pred_check_branch
        %277 = sbr.rel (%p274) target = $region12
      $region11: #{tpu_custom_call.1} parent=5 // pred_region
        %s278 = ssub.s32 %s23, 1
        // Predicated region
        $region13: #{tpu_custom_call.1} parent=11 // pred_check
          %p279 = pneg %p70
        $region14: #{tpu_custom_call.1} parent=11 // pred_check_branch
          %281 = sbr.rel (%p279) target = $region16
        $region15: #{tpu_custom_call.1} parent=11 // pred_region
          %s283 = ssub.s32 1792, 1792
          %284 = vsyncadd [#allocation3], %s283
          %s285 = sshll.u32 [#allocation2], 4
          %s286 = int_to_ptr.vmem [resolvable:$true] %s285
          %291 = dma.hbm_to_vmem [thread:$0]  %s1, 1792, %s286, [#allocation3], 256, 256, 16
        $region16: #{tpu_custom_call.1} parent=11 // pred_fallthru
          _
        // Predicated region
        $region17: #{tpu_custom_call.1} parent=11 // pred_check
          %p292 = pneg %p91
        $region18: #{tpu_custom_call.1} parent=11 // pred_check_branch
          %294 = sbr.rel (%p292) target = $region20
        $region19: #{tpu_custom_call.1} parent=11 // pred_region
          _
        $region20: #{tpu_custom_call.1} parent=11 // pred_fallthru
          _
        // Predicated region
        $region21: #{tpu_custom_call.1} parent=11 // pred_check
          %p295 = pneg %p112
        $region22: #{tpu_custom_call.1} parent=11 // pred_check_branch
          %297 = sbr.rel (%p295) target = $region24
        $region23: #{tpu_custom_call.1} parent=11 // pred_region
          %s299 = ssub.s32 1024, 1024
          %300 = vsyncadd [#allocation6], %s299
          %s301 = sshll.u32 [#allocation5], 4
          %s302 = int_to_ptr.vmem [resolvable:$true] %s301
          %307 = dma.hbm_to_vmem [thread:$0]  %s3, 1024, %s302, [#allocation6], 256, 256, 16
        $region24: #{tpu_custom_call.1} parent=11 // pred_fallthru
          _
        // Predicated region
        $region25: #{tpu_custom_call.1} parent=11 // pred_check
          %p308 = pneg %p133
        $region26: #{tpu_custom_call.1} parent=11 // pred_check_branch
          %310 = sbr.rel (%p308) target = $region28
        $region27: #{tpu_custom_call.1} parent=11 // pred_region
          %s312 = ssub.s32 1024, 1024
          %313 = vsyncadd [#allocation6], %s312
          %s314 = sshll.u32 [#allocation7], 4
          %s315 = int_to_ptr.vmem [resolvable:$true] %s314
          %320 = dma.hbm_to_vmem [thread:$0]  %s4, 1024, %s315, [#allocation6], 256, 256, 16
        $region28: #{tpu_custom_call.1} parent=11 // pred_fallthru
          _
        // Predicated region
        $region29: #{tpu_custom_call.1} parent=11 // pred_check
          %p321 = pneg %p154
        $region30: #{tpu_custom_call.1} parent=11 // pred_check_branch
          %323 = sbr.rel (%p321) target = $region32
        $region31: #{tpu_custom_call.1} parent=11 // pred_region
          %s325 = ssub.s32 2560, 2560
          %326 = vsyncadd [#allocation9], %s325
          %s327 = sshll.u32 [#allocation8], 4
          %s328 = int_to_ptr.vmem [resolvable:$true] %s327
          %333 = dma.hbm_to_vmem [thread:$0]  %s5, 2560, %s328, [#allocation9], 128, 128, 8
        $region32: #{tpu_custom_call.1} parent=11 // pred_fallthru
          _
        // Predicated region
        $region33: #{tpu_custom_call.1} parent=11 // pred_check
          %p334 = pneg %p175
        $region34: #{tpu_custom_call.1} parent=11 // pred_check_branch
          %336 = sbr.rel (%p334) target = $region36
        $region35: #{tpu_custom_call.1} parent=11 // pred_region
          %s338 = ssub.s32 3072, 3072
          %339 = vsyncadd [#allocation9], %s338
          %s340 = sshll.u32 [#allocation10], 4
          %s341 = int_to_ptr.vmem [resolvable:$true] %s340
          %346 = dma.hbm_to_vmem [thread:$0]  %s6, 3072, %s341, [#allocation9], 384, 384, 24
        $region36: #{tpu_custom_call.1} parent=11 // pred_fallthru
          _
        // Predicated region
        $region37: #{tpu_custom_call.1} parent=11 // pred_check
          %p347 = pneg %p196
        $region38: #{tpu_custom_call.1} parent=11 // pred_check_branch
          %349 = sbr.rel (%p347) target = $region40
        $region39: #{tpu_custom_call.1} parent=11 // pred_region
          %s351 = ssub.s32 1536, 1536
          %352 = vsyncadd [#allocation12], %s351
          %s353 = sshll.u32 [#allocation11], 4
          %s354 = int_to_ptr.vmem [resolvable:$true] %s353
          %359 = dma.hbm_to_vmem [thread:$0]  %s7, 1536, %s354, [#allocation12], 384, 384, 24
        $region40: #{tpu_custom_call.1} parent=11 // pred_fallthru
          _
        // Predicated region
        $region41: #{tpu_custom_call.1} parent=11 // pred_check
          %p360 = pneg %p217
        $region42: #{tpu_custom_call.1} parent=11 // pred_check_branch
          %362 = sbr.rel (%p360) target = $region44
        $region43: #{tpu_custom_call.1} parent=11 // pred_region
          _
        $region44: #{tpu_custom_call.1} parent=11 // pred_fallthru
          _
        // Predicated region
        $region45: #{tpu_custom_call.1} parent=11 // pred_check
          %p363 = pneg %p238
        $region46: #{tpu_custom_call.1} parent=11 // pred_check_branch
          %365 = sbr.rel (%p363) target = $region48
        $region47: #{tpu_custom_call.1} parent=11 // pred_region
          %s367 = ssub.s32 512, 512
          %368 = vsyncadd [#allocation12], %s367
          %s369 = sshll.u32 [#allocation13], 4
          %s370 = int_to_ptr.vmem [resolvable:$true] %s369
          %375 = dma.hbm_to_vmem [thread:$0]  %s9, 512, %s370, [#allocation12], 128, 128, 8
        $region48: #{tpu_custom_call.1} parent=11 // pred_fallthru
          _
      $region12: #{tpu_custom_call.1} parent=5 // pred_fallthru
        _
      %p376 = scmp.lt.s32.totalorder %s23, 2
      // Predicated region
      $region49: #{tpu_custom_call.1} parent=5 // pred_check
        %p377 = pneg %p376
      $region50: #{tpu_custom_call.1} parent=5 // pred_check_branch
        %379 = sbr.rel (%p377) target = $region52
      $region51: #{tpu_custom_call.1} parent=5 // pred_region
        // Predicated region
        $region53: #{tpu_custom_call.1} parent=51 // pred_check
          %p380 = pneg %p43
        $region54: #{tpu_custom_call.1} parent=51 // pred_check_branch
          %382 = sbr.rel (%p380) target = $region56
        $region55: #{tpu_custom_call.1} parent=51 // pred_region
          %p383 = scmp.lt.s32.totalorder %s23, 1
          %s384 = scalar_select %p383, %s23, 1
          %s385 = smul.addr %s384, 2
          %s386 = smul.addr %s385, 8
          %s387 = scalar_lea.vmem %s0, %s386
        $region56: #{tpu_custom_call.1} parent=51 // pred_fallthru
          _
      $region52: #{tpu_custom_call.1} parent=5 // pred_fallthru
        _
      %p388 = scmp.le.s32.totalorder 1, %s23
      %p389 = scmp.lt.s32.totalorder %s23, 3
      %p390 = pnand %p388, %p389
      %p391 = pneg %p390
      // Predicated region
      $region57: #{tpu_custom_call.1} parent=5 // pred_check
        _
      $region58: #{tpu_custom_call.1} parent=5 // pred_check_branch
        %393 = sbr.rel (%p390) target = $region60
      $region59: #{tpu_custom_call.1} parent=5 // pred_region
        %s394 = ssub.s32 %s23, 1
        // Predicated region
        $region61: #{tpu_custom_call.1} parent=59 // pred_check
          %p395 = pneg %p70
        $region62: #{tpu_custom_call.1} parent=59 // pred_check_branch
          %397 = sbr.rel (%p395) target = $region64
        $region63: #{tpu_custom_call.1} parent=59 // pred_region
          %398 = dma.done [#allocation3], 1792
        $region64: #{tpu_custom_call.1} parent=59 // pred_fallthru
          _
        // Predicated region
        $region65: #{tpu_custom_call.1} parent=59 // pred_check
          %p399 = pneg %p112
        $region66: #{tpu_custom_call.1} parent=59 // pred_check_branch
          %401 = sbr.rel (%p399) target = $region68
        $region67: #{tpu_custom_call.1} parent=59 // pred_region
          %402 = dma.done [#allocation6], 1024
        $region68: #{tpu_custom_call.1} parent=59 // pred_fallthru
          _
        // Predicated region
        $region69: #{tpu_custom_call.1} parent=59 // pred_check
          %p403 = pneg %p133
        $region70: #{tpu_custom_call.1} parent=59 // pred_check_branch
          %405 = sbr.rel (%p403) target = $region72
        $region71: #{tpu_custom_call.1} parent=59 // pred_region
          %406 = dma.done [#allocation6], 1024
        $region72: #{tpu_custom_call.1} parent=59 // pred_fallthru
          _
        // Predicated region
        $region73: #{tpu_custom_call.1} parent=59 // pred_check
          %p407 = pneg %p154
        $region74: #{tpu_custom_call.1} parent=59 // pred_check_branch
          %409 = sbr.rel (%p407) target = $region76
        $region75: #{tpu_custom_call.1} parent=59 // pred_region
          %410 = dma.done [#allocation9], 2560
        $region76: #{tpu_custom_call.1} parent=59 // pred_fallthru
          _
        // Predicated region
        $region77: #{tpu_custom_call.1} parent=59 // pred_check
          %p411 = pneg %p175
        $region78: #{tpu_custom_call.1} parent=59 // pred_check_branch
          %413 = sbr.rel (%p411) target = $region80
        $region79: #{tpu_custom_call.1} parent=59 // pred_region
          %414 = dma.done [#allocation9], 3072
        $region80: #{tpu_custom_call.1} parent=59 // pred_fallthru
          _
        // Predicated region
        $region81: #{tpu_custom_call.1} parent=59 // pred_check
          %p415 = pneg %p196
        $region82: #{tpu_custom_call.1} parent=59 // pred_check_branch
          %417 = sbr.rel (%p415) target = $region84
        $region83: #{tpu_custom_call.1} parent=59 // pred_region
          %418 = dma.done [#allocation12], 1536
        $region84: #{tpu_custom_call.1} parent=59 // pred_fallthru
          _
        // Predicated region
        $region85: #{tpu_custom_call.1} parent=59 // pred_check
          %p419 = pneg %p238
        $region86: #{tpu_custom_call.1} parent=59 // pred_check_branch
          %421 = sbr.rel (%p419) target = $region88
        $region87: #{tpu_custom_call.1} parent=59 // pred_region
          %422 = dma.done [#allocation12], 512
        $region88: #{tpu_custom_call.1} parent=59 // pred_fallthru
          _
        %p423 = scmp.lt.s32.totalorder %s28, 1
        %s424 = scalar_select %p423, %s28, 1
        %s425 = smul.addr %s424, 2
        %s426 = smul.addr %s425, 8
        %s427 = scalar_lea.vmem %s0, %s426
        %p428 = pneg %p49
        %p429 = pneg %p46
        %p430 = pneg %p70
        %p431 = pneg %p67
        %p432 = pneg %p91
        %p433 = pneg %p88
        %p434 = pneg %p112
        %p435 = pneg %p109
        %p436 = pneg %p133
        %p437 = pneg %p130
        %p438 = pneg %p154
        %p439 = pneg %p151
        %p440 = pneg %p175
        %p441 = pneg %p172
        %p442 = pneg %p196
        %p443 = pneg %p193
        %p444 = pneg %p217
        %p445 = pneg %p214
        %p446 = pneg %p238
        %p447 = pneg %p235
        %p448 = pneg %p264
        %p449 = pneg %p261
        %s450 = sand.u32 %s251, 1
        %s451 = scalar_lea.sflag [#allocation4], %s450
        %s452 = sand.u32 %s251, 1
        %s453 = smul.addr %s452, 64
        %s454 = scalar_lea.vmem [#allocation14], %s453
        %p455 = scmp.lt.s32.totalorder %s28, 1
        %s456 = scalar_select %p455, %s28, 1
        %s457 = smul.addr %s456, 2
        %s458 = smul.addr %s457, 8
        %s459 = scalar_lea.vmem %s0, %s458
        %v460 = vld [vmem:[%s459] sm:$0xff]
        %v461 = vld [vmem:[%s459 + $0x8] sm:$0xff]
        %v462 = vld [vmem:[#allocation5] sm:$0xff]
        %v463 = vld [vmem:[#allocation5 + $0x8] sm:$0xff]
        %v464 = vld [vmem:[#allocation5 + $0x10] sm:$0xff]
        %v465 = vld [vmem:[#allocation5 + $0x18] sm:$0xff]
        %v466 = vld [vmem:[#allocation5 + $0x20] sm:$0xff]
        %v467 = vld [vmem:[#allocation5 + $0x28] sm:$0xff]
        %v468 = vld [vmem:[#allocation5 + $0x30] sm:$0xff]
        %v469 = vld [vmem:[#allocation5 + $0x38] sm:$0xff]
        %470 = vrot.lane.b32.xlu0 %v460, 34
        %v471 = vpop.permute.xlu0 %470
        %472 = vrot.lane.b32.xlu0 %v461, 34
        %v473 = vpop.permute.xlu0 %472
        %v474 = vlaneseq
        %v475 = vand.u32 %v474, 127
        %vm476 = vcmp.lt.s32.totalorder %v475, 34
        %v477 = vsel %vm476, %v471, %v473
        %v478 = vsel %vm476, %v473, %v471
        %v479 = vld [vmem:[#allocation2] ss:$8 sm:$0x3]
        %v481 = vlaneseq
        %v482 = vshrl.u32 %v481, 7
        %v483 = vsub.s32 0, %v482
        %v484 = vrot.slane %v479, %v483
        %v485 = vlaneseq
        %v486 = vshrl.u32 %v485, 7
        %v487 = vsub.s32 1, %v486
        %v488 = vrot.slane %v479, %v487
        %v491 = vmul.f32 %v478, %v484
        %v492 = vmul.f32 %v477, %v488
        %493 = vrot.lane.b32.xlu0 %v460, 33
        %v494 = vpop.permute.xlu0 %493
        %495 = vrot.lane.b32.xlu0 %v461, 33
        %v496 = vpop.permute.xlu0 %495
        %vm497 = vcmp.lt.s32.totalorder %v475, 33
        %v498 = vsel %vm497, %v494, %v496
        %v499 = vsel %vm497, %v496, %v494
        %s500 = scalar_lea.vmem [#allocation2], 1
        %v501 = vld [vmem:[%s500] ss:$8 sm:$0x3]
        %v503 = vlaneseq
        %v504 = vshrl.u32 %v503, 7
        %v505 = vsub.s32 0, %v504
        %v506 = vrot.slane %v501, %v505
        %v507 = vlaneseq
        %v508 = vshrl.u32 %v507, 7
        %v509 = vsub.s32 1, %v508
        %v510 = vrot.slane %v501, %v509
        %v513 = vmul.f32 %v499, %v506
        %v514 = vmul.f32 %v498, %v510
        %515 = vrot.lane.b32.xlu0 %v460, 32
        %v516 = vpop.permute.xlu0 %515
        %517 = vrot.lane.b32.xlu0 %v461, 32
        %v518 = vpop.permute.xlu0 %517
        %vm519 = vcmp.lt.s32.totalorder %v475, 32
        %v520 = vsel %vm519, %v516, %v518
        %v521 = vsel %vm519, %v518, %v516
        %s522 = scalar_lea.vmem [#allocation2], 2
        %v523 = vld [vmem:[%s522] ss:$8 sm:$0x3]
        %v525 = vlaneseq
        %v526 = vshrl.u32 %v525, 7
        %v527 = vsub.s32 0, %v526
        %v528 = vrot.slane %v523, %v527
        %v529 = vlaneseq
        %v530 = vshrl.u32 %v529, 7
        %v531 = vsub.s32 1, %v530
        %v532 = vrot.slane %v523, %v531
        %v535 = vmul.f32 %v521, %v528
        %v536 = vmul.f32 %v520, %v532
        %537 = vrot.lane.b32.xlu0 %v460, 31
        %v538 = vpop.permute.xlu0 %537
        %539 = vrot.lane.b32.xlu0 %v461, 31
        %v540 = vpop.permute.xlu0 %539
        %vm541 = vcmp.lt.s32.totalorder %v475, 31
        %v542 = vsel %vm541, %v538, %v540
        %v543 = vsel %vm541, %v540, %v538
        %s544 = scalar_lea.vmem [#allocation2], 3
        %v545 = vld [vmem:[%s544] ss:$8 sm:$0x3]
        %v547 = vlaneseq
        %v548 = vshrl.u32 %v547, 7
        %v549 = vsub.s32 0, %v548
        %v550 = vrot.slane %v545, %v549
        %v551 = vlaneseq
        %v552 = vshrl.u32 %v551, 7
        %v553 = vsub.s32 1, %v552
        %v554 = vrot.slane %v545, %v553
        %v557 = vmul.f32 %v543, %v550
        %v558 = vmul.f32 %v542, %v554
        %559 = vrot.lane.b32.xlu0 %v460, 30
        %v560 = vpop.permute.xlu0 %559
        %561 = vrot.lane.b32.xlu0 %v461, 30
        %v562 = vpop.permute.xlu0 %561
        %vm563 = vcmp.lt.s32.totalorder %v475, 30
        %v564 = vsel %vm563, %v560, %v562
        %v565 = vsel %vm563, %v562, %v560
        %s566 = scalar_lea.vmem [#allocation2], 4
        %v567 = vld [vmem:[%s566] ss:$8 sm:$0x3]
        %v569 = vlaneseq
        %v570 = vshrl.u32 %v569, 7
        %v571 = vsub.s32 0, %v570
        %v572 = vrot.slane %v567, %v571
        %v573 = vlaneseq
        %v574 = vshrl.u32 %v573, 7
        %v575 = vsub.s32 1, %v574
        %v576 = vrot.slane %v567, %v575
        %v579 = vmul.f32 %v565, %v572
        %v580 = vmul.f32 %v564, %v576
        %581 = vrot.lane.b32.xlu0 %v460, 18
        %v582 = vpop.permute.xlu0 %581
        %583 = vrot.lane.b32.xlu0 %v461, 18
        %v584 = vpop.permute.xlu0 %583
        %vm585 = vcmp.lt.s32.totalorder %v475, 18
        %v586 = vsel %vm585, %v582, %v584
        %v587 = vsel %vm585, %v584, %v582
        %s588 = scalar_lea.vmem [#allocation2], 5
        %v589 = vld [vmem:[%s588] ss:$8 sm:$0x3]
        %v591 = vlaneseq
        %v592 = vshrl.u32 %v591, 7
        %v593 = vsub.s32 0, %v592
        %v594 = vrot.slane %v589, %v593
        %v595 = vlaneseq
        %v596 = vshrl.u32 %v595, 7
        %v597 = vsub.s32 1, %v596
        %v598 = vrot.slane %v589, %v597
        %v601 = vmul.f32 %v587, %v594
        %v602 = vmul.f32 %v586, %v598
        %603 = vrot.lane.b32.xlu0 %v460, 17
        %v604 = vpop.permute.xlu0 %603
        %605 = vrot.lane.b32.xlu0 %v461, 17
        %v606 = vpop.permute.xlu0 %605
        %vm607 = vcmp.lt.s32.totalorder %v475, 17
        %v608 = vsel %vm607, %v604, %v606
        %v609 = vsel %vm607, %v606, %v604
        %s610 = scalar_lea.vmem [#allocation2], 6
        %v611 = vld [vmem:[%s610] ss:$8 sm:$0x3]
        %v613 = vlaneseq
        %v614 = vshrl.u32 %v613, 7
        %v615 = vsub.s32 0, %v614
        %v616 = vrot.slane %v611, %v615
        %v617 = vlaneseq
        %v618 = vshrl.u32 %v617, 7
        %v619 = vsub.s32 1, %v618
        %v620 = vrot.slane %v611, %v619
        %v623 = vmul.f32 %v609, %v616
        %v624 = vmul.f32 %v608, %v620
        %625 = vrot.lane.b32.xlu0 %v460, 16
        %v626 = vpop.permute.xlu0 %625
        %627 = vrot.lane.b32.xlu0 %v461, 16
        %v628 = vpop.permute.xlu0 %627
        %vm629 = vcmp.lt.s32.totalorder %v475, 16
        %v630 = vsel %vm629, %v626, %v628
        %v631 = vsel %vm629, %v628, %v626
        %s632 = scalar_lea.vmem [#allocation2], 7
        %v633 = vld [vmem:[%s632] ss:$8 sm:$0x3]
        %v635 = vlaneseq
        %v636 = vshrl.u32 %v635, 7
        %v637 = vsub.s32 0, %v636
        %v638 = vrot.slane %v633, %v637
        %v639 = vlaneseq
        %v640 = vshrl.u32 %v639, 7
        %v641 = vsub.s32 1, %v640
        %v642 = vrot.slane %v633, %v641
        %v645 = vmul.f32 %v631, %v638
        %v646 = vmul.f32 %v630, %v642
        %647 = vrot.lane.b32.xlu0 %v460, 15
        %v648 = vpop.permute.xlu0 %647
        %649 = vrot.lane.b32.xlu0 %v461, 15
        %v650 = vpop.permute.xlu0 %649
        %vm651 = vcmp.lt.s32.totalorder %v475, 15
        %v652 = vsel %vm651, %v648, %v650
        %v653 = vsel %vm651, %v650, %v648
        %s654 = scalar_lea.vmem [#allocation2], 16
        %v655 = vld [vmem:[%s654] ss:$8 sm:$0x3]
        %v657 = vlaneseq
        %v658 = vshrl.u32 %v657, 7
        %v659 = vsub.s32 0, %v658
        %v660 = vrot.slane %v655, %v659
        %v661 = vlaneseq
        %v662 = vshrl.u32 %v661, 7
        %v663 = vsub.s32 1, %v662
        %v664 = vrot.slane %v655, %v663
        %v667 = vmul.f32 %v653, %v660
        %v668 = vmul.f32 %v652, %v664
        %669 = vrot.lane.b32.xlu0 %v460, 14
        %v670 = vpop.permute.xlu0 %669
        %671 = vrot.lane.b32.xlu0 %v461, 14
        %v672 = vpop.permute.xlu0 %671
        %vm673 = vcmp.lt.s32.totalorder %v475, 14
        %v674 = vsel %vm673, %v670, %v672
        %v675 = vsel %vm673, %v672, %v670
        %s676 = scalar_lea.vmem [#allocation2], 17
        %v677 = vld [vmem:[%s676] ss:$8 sm:$0x3]
        %v679 = vlaneseq
        %v680 = vshrl.u32 %v679, 7
        %v681 = vsub.s32 0, %v680
        %v682 = vrot.slane %v677, %v681
        %v683 = vlaneseq
        %v684 = vshrl.u32 %v683, 7
        %v685 = vsub.s32 1, %v684
        %v686 = vrot.slane %v677, %v685
        %v689 = vmul.f32 %v675, %v682
        %v690 = vmul.f32 %v674, %v686
        %691 = vrot.lane.b32.xlu0 %v460, 2
        %v692 = vpop.permute.xlu0 %691
        %693 = vrot.lane.b32.xlu0 %v461, 2
        %v694 = vpop.permute.xlu0 %693
        %vm695 = vcmp.lt.s32.totalorder %v475, 2
        %v696 = vsel %vm695, %v692, %v694
        %v697 = vsel %vm695, %v694, %v692
        %s698 = scalar_lea.vmem [#allocation2], 18
        %v699 = vld [vmem:[%s698] ss:$8 sm:$0x3]
        %v701 = vlaneseq
        %v702 = vshrl.u32 %v701, 7
        %v703 = vsub.s32 0, %v702
        %v704 = vrot.slane %v699, %v703
        %v705 = vlaneseq
        %v706 = vshrl.u32 %v705, 7
        %v707 = vsub.s32 1, %v706
        %v708 = vrot.slane %v699, %v707
        %v711 = vmul.f32 %v697, %v704
        %v712 = vmul.f32 %v696, %v708
        %713 = vrot.lane.b32.xlu0 %v460, 1
        %v714 = vpop.permute.xlu0 %713
        %715 = vrot.lane.b32.xlu0 %v461, 1
        %v716 = vpop.permute.xlu0 %715
        %vm717 = vcmp.lt.s32.totalorder %v475, 1
        %v718 = vsel %vm717, %v714, %v716
        %v719 = vsel %vm717, %v716, %v714
        %s720 = scalar_lea.vmem [#allocation2], 19
        %v721 = vld [vmem:[%s720] ss:$8 sm:$0x3]
        %v723 = vlaneseq
        %v724 = vshrl.u32 %v723, 7
        %v725 = vsub.s32 0, %v724
        %v726 = vrot.slane %v721, %v725
        %v727 = vlaneseq
        %v728 = vshrl.u32 %v727, 7
        %v729 = vsub.s32 1, %v728
        %v730 = vrot.slane %v721, %v729
        %v733 = vmul.f32 %v719, %v726
        %v734 = vmul.f32 %v718, %v730
        %735 = vrot.lane.b32.xlu0 %v460, 127
        %v736 = vpop.permute.xlu0 %735
        %737 = vrot.lane.b32.xlu0 %v461, 127
        %v738 = vpop.permute.xlu0 %737
        %vm739 = vcmp.lt.s32.totalorder %v475, 127
        %v740 = vsel %vm739, %v736, %v738
        %v741 = vsel %vm739, %v738, %v736
        %s742 = scalar_lea.vmem [#allocation2], 21
        %v743 = vld [vmem:[%s742] ss:$8 sm:$0x3]
        %v745 = vlaneseq
        %v746 = vshrl.u32 %v745, 7
        %v747 = vsub.s32 0, %v746
        %v748 = vrot.slane %v743, %v747
        %v749 = vlaneseq
        %v750 = vshrl.u32 %v749, 7
        %v751 = vsub.s32 1, %v750
        %v752 = vrot.slane %v743, %v751
        %v755 = vmul.f32 %v740, %v748
        %v756 = vmul.f32 %v741, %v752
        %757 = vrot.lane.b32.xlu0 %v460, 126
        %v758 = vpop.permute.xlu0 %757
        %759 = vrot.lane.b32.xlu0 %v461, 126
        %v760 = vpop.permute.xlu0 %759
        %vm761 = vcmp.lt.s32.totalorder %v475, 126
        %v762 = vsel %vm761, %v758, %v760
        %v763 = vsel %vm761, %v760, %v758
        %s764 = scalar_lea.vmem [#allocation2], 22
        %v765 = vld [vmem:[%s764] ss:$8 sm:$0x3]
        %v767 = vlaneseq
        %v768 = vshrl.u32 %v767, 7
        %v769 = vsub.s32 0, %v768
        %v770 = vrot.slane %v765, %v769
        %v771 = vlaneseq
        %v772 = vshrl.u32 %v771, 7
        %v773 = vsub.s32 1, %v772
        %v774 = vrot.slane %v765, %v773
        %v777 = vmul.f32 %v762, %v770
        %v778 = vmul.f32 %v763, %v774
        %779 = vrot.lane.b32.xlu0 %v460, 114
        %v780 = vpop.permute.xlu0 %779
        %781 = vrot.lane.b32.xlu0 %v461, 114
        %v782 = vpop.permute.xlu0 %781
        %vm783 = vcmp.lt.s32.totalorder %v475, 114
        %v784 = vsel %vm783, %v780, %v782
        %v785 = vsel %vm783, %v782, %v780
        %s786 = scalar_lea.vmem [#allocation2], 23
        %v787 = vld [vmem:[%s786] ss:$8 sm:$0x3]
        %v789 = vlaneseq
        %v790 = vshrl.u32 %v789, 7
        %v791 = vsub.s32 0, %v790
        %v792 = vrot.slane %v787, %v791
        %v793 = vlaneseq
        %v794 = vshrl.u32 %v793, 7
        %v795 = vsub.s32 1, %v794
        %v796 = vrot.slane %v787, %v795
        %v799 = vmul.f32 %v784, %v792
        %v800 = vmul.f32 %v785, %v796
        %801 = vrot.lane.b32.xlu0 %v460, 113
        %v802 = vpop.permute.xlu0 %801
        %803 = vrot.lane.b32.xlu0 %v461, 113
        %v804 = vpop.permute.xlu0 %803
        %vm805 = vcmp.lt.s32.totalorder %v475, 113
        %v806 = vsel %vm805, %v802, %v804
        %v807 = vsel %vm805, %v804, %v802
        %s808 = scalar_lea.vmem [#allocation2], 32
        %v809 = vld [vmem:[%s808] ss:$8 sm:$0x3]
        %v811 = vlaneseq
        %v812 = vshrl.u32 %v811, 7
        %v813 = vsub.s32 0, %v812
        %v814 = vrot.slane %v809, %v813
        %v815 = vlaneseq
        %v816 = vshrl.u32 %v815, 7
        %v817 = vsub.s32 1, %v816
        %v818 = vrot.slane %v809, %v817
        %v821 = vmul.f32 %v806, %v814
        %v822 = vmul.f32 %v807, %v818
        %823 = vrot.lane.b32.xlu0 %v460, 112
        %v824 = vpop.permute.xlu0 %823
        %825 = vrot.lane.b32.xlu0 %v461, 112
        %v826 = vpop.permute.xlu0 %825
        %vm827 = vcmp.lt.s32.totalorder %v475, 112
        %v828 = vsel %vm827, %v824, %v826
        %v829 = vsel %vm827, %v826, %v824
        %s830 = scalar_lea.vmem [#allocation2], 33
        %v831 = vld [vmem:[%s830] ss:$8 sm:$0x3]
        %v833 = vlaneseq
        %v834 = vshrl.u32 %v833, 7
        %v835 = vsub.s32 0, %v834
        %v836 = vrot.slane %v831, %v835
        %v837 = vlaneseq
        %v838 = vshrl.u32 %v837, 7
        %v839 = vsub.s32 1, %v838
        %v840 = vrot.slane %v831, %v839
        %v843 = vmul.f32 %v828, %v836
        %v844 = vmul.f32 %v829, %v840
        %845 = vrot.lane.b32.xlu0 %v460, 111
        %v846 = vpop.permute.xlu0 %845
        %847 = vrot.lane.b32.xlu0 %v461, 111
        %v848 = vpop.permute.xlu0 %847
        %vm849 = vcmp.lt.s32.totalorder %v475, 111
        %v850 = vsel %vm849, %v846, %v848
        %v851 = vsel %vm849, %v848, %v846
        %s852 = scalar_lea.vmem [#allocation2], 34
        %v853 = vld [vmem:[%s852] ss:$8 sm:$0x3]
        %v855 = vlaneseq
        %v856 = vshrl.u32 %v855, 7
        %v857 = vsub.s32 0, %v856
        %v858 = vrot.slane %v853, %v857
        %v859 = vlaneseq
        %v860 = vshrl.u32 %v859, 7
        %v861 = vsub.s32 1, %v860
        %v862 = vrot.slane %v853, %v861
        %v865 = vmul.f32 %v850, %v858
        %v866 = vmul.f32 %v851, %v862
        %867 = vrot.lane.b32.xlu0 %v460, 110
        %v868 = vpop.permute.xlu0 %867
        %869 = vrot.lane.b32.xlu0 %v461, 110
        %v870 = vpop.permute.xlu0 %869
        %vm871 = vcmp.lt.s32.totalorder %v475, 110
        %v872 = vsel %vm871, %v868, %v870
        %v873 = vsel %vm871, %v870, %v868
        %s874 = scalar_lea.vmem [#allocation2], 35
        %v875 = vld [vmem:[%s874] ss:$8 sm:$0x3]
        %v877 = vlaneseq
        %v878 = vshrl.u32 %v877, 7
        %v879 = vsub.s32 0, %v878
        %v880 = vrot.slane %v875, %v879
        %v881 = vlaneseq
        %v882 = vshrl.u32 %v881, 7
        %v883 = vsub.s32 1, %v882
        %v884 = vrot.slane %v875, %v883
        %v887 = vmul.f32 %v872, %v880
        %v888 = vmul.f32 %v873, %v884
        %889 = vrot.lane.b32.xlu0 %v460, 98
        %v890 = vpop.permute.xlu0 %889
        %891 = vrot.lane.b32.xlu0 %v461, 98
        %v892 = vpop.permute.xlu0 %891
        %vm893 = vcmp.lt.s32.totalorder %v475, 98
        %v894 = vsel %vm893, %v890, %v892
        %v895 = vsel %vm893, %v892, %v890
        %s896 = scalar_lea.vmem [#allocation2], 36
        %v897 = vld [vmem:[%s896] ss:$8 sm:$0x3]
        %v899 = vlaneseq
        %v900 = vshrl.u32 %v899, 7
        %v901 = vsub.s32 0, %v900
        %v902 = vrot.slane %v897, %v901
        %v903 = vlaneseq
        %v904 = vshrl.u32 %v903, 7
        %v905 = vsub.s32 1, %v904
        %v906 = vrot.slane %v897, %v905
        %v909 = vmul.f32 %v894, %v902
        %v910 = vmul.f32 %v895, %v906
        %911 = vrot.lane.b32.xlu0 %v460, 97
        %v912 = vpop.permute.xlu0 %911
        %913 = vrot.lane.b32.xlu0 %v461, 97
        %v914 = vpop.permute.xlu0 %913
        %vm915 = vcmp.lt.s32.totalorder %v475, 97
        %v916 = vsel %vm915, %v912, %v914
        %v917 = vsel %vm915, %v914, %v912
        %s918 = scalar_lea.vmem [#allocation2], 37
        %v919 = vld [vmem:[%s918] ss:$8 sm:$0x3]
        %v921 = vlaneseq
        %v922 = vshrl.u32 %v921, 7
        %v923 = vsub.s32 0, %v922
        %v924 = vrot.slane %v919, %v923
        %v925 = vlaneseq
        %v926 = vshrl.u32 %v925, 7
        %v927 = vsub.s32 1, %v926
        %v928 = vrot.slane %v919, %v927
        %v931 = vmul.f32 %v916, %v924
        %v932 = vmul.f32 %v917, %v928
        %933 = vrot.lane.b32.xlu0 %v460, 96
        %v934 = vpop.permute.xlu0 %933
        %935 = vrot.lane.b32.xlu0 %v461, 96
        %v936 = vpop.permute.xlu0 %935
        %vm937 = vcmp.lt.s32.totalorder %v475, 96
        %v938 = vsel %vm937, %v934, %v936
        %v939 = vsel %vm937, %v936, %v934
        %s940 = scalar_lea.vmem [#allocation2], 38
        %v941 = vld [vmem:[%s940] ss:$8 sm:$0x3]
        %v943 = vlaneseq
        %v944 = vshrl.u32 %v943, 7
        %v945 = vsub.s32 0, %v944
        %v946 = vrot.slane %v941, %v945
        %v947 = vlaneseq
        %v948 = vshrl.u32 %v947, 7
        %v949 = vsub.s32 1, %v948
        %v950 = vrot.slane %v941, %v949
        %v953 = vmul.f32 %v938, %v946
        %v954 = vmul.f32 %v939, %v950
        %955 = vrot.lane.b32.xlu0 %v460, 95
        %v956 = vpop.permute.xlu0 %955
        %957 = vrot.lane.b32.xlu0 %v461, 95
        %v958 = vpop.permute.xlu0 %957
        %vm959 = vcmp.lt.s32.totalorder %v475, 95
        %v960 = vsel %vm959, %v956, %v958
        %v961 = vsel %vm959, %v958, %v956
        %s962 = scalar_lea.vmem [#allocation2], 39
        %v963 = vld [vmem:[%s962] ss:$8 sm:$0x3]
        %v965 = vlaneseq
        %v966 = vshrl.u32 %v965, 7
        %v967 = vsub.s32 0, %v966
        %v968 = vrot.slane %v963, %v967
        %v969 = vlaneseq
        %v970 = vshrl.u32 %v969, 7
        %v971 = vsub.s32 1, %v970
        %v972 = vrot.slane %v963, %v971
        %v975 = vmul.f32 %v960, %v968
        %v976 = vmul.f32 %v961, %v972
        %977 = vrot.lane.b32.xlu0 %v460, 94
        %v978 = vpop.permute.xlu0 %977
        %979 = vrot.lane.b32.xlu0 %v461, 94
        %v980 = vpop.permute.xlu0 %979
        %vm981 = vcmp.lt.s32.totalorder %v475, 94
        %v982 = vsel %vm981, %v978, %v980
        %v983 = vsel %vm981, %v980, %v978
        %s984 = scalar_lea.vmem [#allocation2], 48
        %v985 = vld [vmem:[%s984] ss:$8 sm:$0x3]
        %v987 = vlaneseq
        %v988 = vshrl.u32 %v987, 7
        %v989 = vsub.s32 0, %v988
        %v990 = vrot.slane %v985, %v989
        %v991 = vlaneseq
        %v992 = vshrl.u32 %v991, 7
        %v993 = vsub.s32 1, %v992
        %v994 = vrot.slane %v985, %v993
        %v997 = vmul.f32 %v982, %v990
        %v998 = vmul.f32 %v983, %v994
        %v999 = vld [vmem:[%s2] sm:$0xff]
        %v1000 = vld [vmem:[%s2 + $0x8] sm:$0xff]
        %v1001 = vld [vmem:[%s2 + $0x10] sm:$0xff]
        %v1002 = vld [vmem:[%s2 + $0x18] sm:$0xff]
        %1004 = vset.pattern.permute.xlu0 0
        %1005 = vperm.xlu0 %1004, %v999
        %v1006 = vpop.permute.xlu0 %1005
        %1009 = vset.pattern.permute.xlu0 0
        %1010 = vperm.xlu0 %1009, %v1000
        %v1011 = vpop.permute.xlu0 %1010
        %1014 = vset.pattern.permute.xlu0 0
        %1015 = vperm.xlu0 %1014, %v1001
        %v1016 = vpop.permute.xlu0 %1015
        %1019 = vset.pattern.permute.xlu0 0
        %1020 = vperm.xlu0 %1019, %v1002
        %v1021 = vpop.permute.xlu0 %1020
        %vm1023 = vcmask 588800
        %v1025 = vsel %vm1023, %v463, 0
        %v1028 = vsel %vm1023, %v465, 0
        %v1031 = vsel %vm1023, %v467, 0
        %v1034 = vsel %vm1023, %v469, 0
        %1036 = vmatprep.subr.mxu0 %v492
        %1037 = vmatpush1.msra.mxu0 %v491
        %1038 = vmatprep.subr.mxu0 %v514
        %1039 = vmatpush1.msra.mxu0 %v513
        %1040 = vmatprep.subr.mxu0 %v536
        %1041 = vmatpush1.msra.mxu0 %v535
        %1042 = vmatprep.subr.mxu0 %v558
        %1043 = vmatpush1.msra.mxu0 %v557
        %1044 = vmatprep.subr.mxu0 %v580
        %1045 = vmatpush1.msra.mxu0 %v579
        %1046 = vmatprep.subr.mxu0 %v602
        %1047 = vmatpush1.msra.mxu0 %v601
        %1048 = vmatprep.subr.mxu0 %v624
        %1049 = vmatpush1.msra.mxu0 %v623
        %1050 = vmatprep.subr.mxu0 %v646
        %1051 = vmatpush1.msra.mxu0 %v645
        %1052 = vmatprep.subr.mxu0 %v668
        %1053 = vmatpush1.msra.mxu0 %v667
        %1054 = vmatprep.subr.mxu0 %v690
        %1055 = vmatpush1.msra.mxu0 %v689
        %1056 = vmatprep.subr.mxu0 %v712
        %1057 = vmatpush1.msra.mxu0 %v711
        %1058 = vmatprep.subr.mxu0 %v734
        %1059 = vmatpush1.msra.mxu0 %v733
        %1060 = vmatprep.subr.mxu0 %v461
        %1061 = vmatpush1.msra.mxu0 %v460
        %1062 = vmatprep.subr.mxu0 %v756
        %1063 = vmatpush1.msra.mxu0 %v755
        %1064 = vmatprep.subr.mxu0 %v778
        %1065 = vmatpush1.msra.mxu0 %v777
        %1066 = vmatprep.subr.mxu0 %v800
        %1067 = vmatpush1.msra.mxu0 %v799
        %1068 = vmatprep.subr.mxu0 %v822
        %1069 = vmatpush1.msra.mxu0 %v821
        %1070 = vmatprep.subr.mxu0 %v844
        %1071 = vmatpush1.msra.mxu0 %v843
        %1072 = vmatprep.subr.mxu0 %v866
        %1073 = vmatpush1.msra.mxu0 %v865
        %1074 = vmatprep.subr.mxu0 %v888
        %1075 = vmatpush1.msra.mxu0 %v887
        %1076 = vmatprep.subr.mxu0 %v910
        %1077 = vmatpush1.msra.mxu0 %v909
        %1078 = vmatprep.subr.mxu0 %v932
        %1079 = vmatpush1.msra.mxu0 %v931
        %1080 = vmatprep.subr.mxu0 %v954
        %1081 = vmatpush1.msra.mxu0 %v953
        %1082 = vmatprep.subr.mxu0 %v976
        %1083 = vmatpush1.msra.mxu0 %v975
        %1084 = vmatprep.subr.mxu0 %v998
        %1085 = vmatpush1.msra.mxu0 %v997
        %1086 = vmatprep.subr.mxu0 0.0
        %1087 = vmatpush1.msra.mxu0 0.0
        %1088 = vmatprep.subr.mxu0 0.0
        %1089 = vmatpush1.msra.mxu0 0.0
        %1090 = vmatprep.subr.mxu0 0.0
        %1091 = vmatpush1.msra.mxu0 0.0
        %1092 = vmatprep.subr.mxu0 0.0
        %1093 = vmatpush1.msra.mxu0 0.0
        %1094 = vmatprep.subr.mxu0 0.0
        %1095 = vmatpush1.msra.mxu0 0.0
        %1096 = vmatprep.subr.mxu0 0.0
        %1097 = vmatpush1.msra.mxu0 0.0
        %1098 = vmatprep.subr.mxu0 0.0
        %1099 = vmatpush1.msra.mxu0 0.0
        %1100 = vmatprep.mubr.f32.mxu0 %v1025
        %1101 = vmatmul.mubr.f32.gmra.mrb[0].mxu0 %v462
        %v1102 = vpop.f32.mrb[0].mxu0
        %v1103 = vadd.f32 %v1006, %v1102
        %v1104 = vpop.f32.mrb[0].mxu0
        %v1105 = vadd.f32 %v1006, %v1104
        %1106 = vmatprep.mubr.f32.mxu0 %v1028
        %1107 = vmatmul.mubr.f32.gmra.mrb[0].mxu0 %v464
        %v1108 = vpop.f32.mrb[0].mxu0
        %v1109 = vadd.f32 %v1011, %v1108
        %v1110 = vpop.f32.mrb[0].mxu0
        %v1111 = vadd.f32 %v1011, %v1110
        %1112 = vmatprep.mubr.f32.mxu0 %v1031
        %1113 = vmatmul.mubr.f32.gmra.mrb[0].mxu0 %v466
        %v1114 = vpop.f32.mrb[0].mxu0
        %v1115 = vadd.f32 %v1016, %v1114
        %v1116 = vpop.f32.mrb[0].mxu0
        %v1117 = vadd.f32 %v1016, %v1116
        %1118 = vmatprep.mubr.f32.mxu0 %v1034
        %1119 = vmatmul.mubr.f32.gmra.mrb[0].mxu0 %v468
        %v1120 = vpop.f32.mrb[0].mxu0
        %v1121 = vadd.f32 %v1021, %v1120
        %v1122 = vpop.f32.mrb[0].mxu0
        %v1123 = vadd.f32 %v1021, %v1122
        %1124 = vdwg.mxu0
        %v1125 = vmax.f32 %v1103, 0.0
        %v1126 = vmax.f32 %v1105, 0.0
        %v1127 = vmax.f32 %v1109, 0.0
        %v1128 = vmax.f32 %v1111, 0.0
        %v1129 = vmax.f32 %v1115, 0.0
        %v1130 = vmax.f32 %v1117, 0.0
        %v1131 = vmax.f32 %v1121, 0.0
        %v1132 = vmax.f32 %v1123, 0.0
        %v1133 = vld [vmem:[#allocation7] sm:$0xff]
        %v1134 = vld [vmem:[#allocation7 + $0x8] sm:$0xff]
        %v1135 = vld [vmem:[#allocation7 + $0x10] sm:$0xff]
        %v1136 = vld [vmem:[#allocation7 + $0x18] sm:$0xff]
        %v1137 = vld [vmem:[#allocation7 + $0x20] sm:$0xff]
        %v1138 = vld [vmem:[#allocation7 + $0x28] sm:$0xff]
        %v1139 = vld [vmem:[#allocation7 + $0x30] sm:$0xff]
        %v1140 = vld [vmem:[#allocation7 + $0x38] sm:$0xff]
        %1141 = vrot.lane.b32.xlu0 %v1125, 17
        %v1142 = vpop.permute.xlu0 %1141
        %1143 = vrot.lane.b32.xlu0 %v1127, 17
        %v1144 = vpop.permute.xlu0 %1143
        %1145 = vrot.lane.b32.xlu0 %v1129, 17
        %v1146 = vpop.permute.xlu0 %1145
        %1147 = vrot.lane.b32.xlu0 %v1131, 17
        %v1148 = vpop.permute.xlu0 %1147
        %1149 = vrot.lane.b32.xlu0 %v1126, 17
        %v1150 = vpop.permute.xlu0 %1149
        %1151 = vrot.lane.b32.xlu0 %v1128, 17
        %v1152 = vpop.permute.xlu0 %1151
        %1153 = vrot.lane.b32.xlu0 %v1130, 17
        %v1154 = vpop.permute.xlu0 %1153
        %1155 = vrot.lane.b32.xlu0 %v1132, 17
        %v1156 = vpop.permute.xlu0 %1155
        %v1157 = vsel %vm607, %v1142, %v1150
        %v1158 = vsel %vm607, %v1144, %v1152
        %v1159 = vsel %vm607, %v1146, %v1154
        %v1160 = vsel %vm607, %v1148, %v1156
        %v1161 = vsel %vm607, %v1150, %v1142
        %v1162 = vsel %vm607, %v1152, %v1144
        %v1163 = vsel %vm607, %v1154, %v1146
        %v1164 = vsel %vm607, %v1156, %v1148
        %s1165 = scalar_lea.vmem [#allocation2], 49
        %v1166 = vld [vmem:[%s1165] ss:$8 sm:$0x3]
        %v1168 = vlaneseq
        %v1169 = vshrl.u32 %v1168, 7
        %v1170 = vsub.s32 0, %v1169
        %v1171 = vrot.slane %v1166, %v1170
        %v1172 = vlaneseq
        %v1173 = vshrl.u32 %v1172, 7
        %v1174 = vsub.s32 1, %v1173
        %v1175 = vrot.slane %v1166, %v1174
        %v1178 = vmul.f32 %v1161, %v1171
        %v1179 = vmul.f32 %v1157, %v1175
        %v1180 = vmul.f32 %v1162, %v1171
        %v1181 = vmul.f32 %v1158, %v1175
        %v1182 = vmul.f32 %v1163, %v1171
        %v1183 = vmul.f32 %v1159, %v1175
        %v1184 = vmul.f32 %v1164, %v1171
        %v1185 = vmul.f32 %v1160, %v1175
        %1186 = vrot.lane.b32.xlu0 %v1125, 16
        %v1187 = vpop.permute.xlu0 %1186
        %1188 = vrot.lane.b32.xlu0 %v1127, 16
        %v1189 = vpop.permute.xlu0 %1188
        %1190 = vrot.lane.b32.xlu0 %v1129, 16
        %v1191 = vpop.permute.xlu0 %1190
        %1192 = vrot.lane.b32.xlu0 %v1131, 16
        %v1193 = vpop.permute.xlu0 %1192
        %1194 = vrot.lane.b32.xlu0 %v1126, 16
        %v1195 = vpop.permute.xlu0 %1194
        %1196 = vrot.lane.b32.xlu0 %v1128, 16
        %v1197 = vpop.permute.xlu0 %1196
        %1198 = vrot.lane.b32.xlu0 %v1130, 16
        %v1199 = vpop.permute.xlu0 %1198
        %1200 = vrot.lane.b32.xlu0 %v1132, 16
        %v1201 = vpop.permute.xlu0 %1200
        %v1202 = vsel %vm629, %v1187, %v1195
        %v1203 = vsel %vm629, %v1189, %v1197
        %v1204 = vsel %vm629, %v1191, %v1199
        %v1205 = vsel %vm629, %v1193, %v1201
        %v1206 = vsel %vm629, %v1195, %v1187
        %v1207 = vsel %vm629, %v1197, %v1189
        %v1208 = vsel %vm629, %v1199, %v1191
        %v1209 = vsel %vm629, %v1201, %v1193
        %s1210 = scalar_lea.vmem [#allocation2], 50
        %v1211 = vld [vmem:[%s1210] ss:$8 sm:$0x3]
        %v1213 = vlaneseq
        %v1214 = vshrl.u32 %v1213, 7
        %v1215 = vsub.s32 0, %v1214
        %v1216 = vrot.slane %v1211, %v1215
        %v1217 = vlaneseq
        %v1218 = vshrl.u32 %v1217, 7
        %v1219 = vsub.s32 1, %v1218
        %v1220 = vrot.slane %v1211, %v1219
        %v1223 = vmul.f32 %v1206, %v1216
        %v1224 = vmul.f32 %v1202, %v1220
        %v1225 = vmul.f32 %v1207, %v1216
        %v1226 = vmul.f32 %v1203, %v1220
        %v1227 = vmul.f32 %v1208, %v1216
        %v1228 = vmul.f32 %v1204, %v1220
        %v1229 = vmul.f32 %v1209, %v1216
        %v1230 = vmul.f32 %v1205, %v1220
        %1231 = vrot.lane.b32.xlu0 %v1125, 15
        %v1232 = vpop.permute.xlu0 %1231
        %1233 = vrot.lane.b32.xlu0 %v1127, 15
        %v1234 = vpop.permute.xlu0 %1233
        %1235 = vrot.lane.b32.xlu0 %v1129, 15
        %v1236 = vpop.permute.xlu0 %1235
        %1237 = vrot.lane.b32.xlu0 %v1131, 15
        %v1238 = vpop.permute.xlu0 %1237
        %1239 = vrot.lane.b32.xlu0 %v1126, 15
        %v1240 = vpop.permute.xlu0 %1239
        %1241 = vrot.lane.b32.xlu0 %v1128, 15
        %v1242 = vpop.permute.xlu0 %1241
        %1243 = vrot.lane.b32.xlu0 %v1130, 15
        %v1244 = vpop.permute.xlu0 %1243
        %1245 = vrot.lane.b32.xlu0 %v1132, 15
        %v1246 = vpop.permute.xlu0 %1245
        %v1247 = vsel %vm651, %v1232, %v1240
        %v1248 = vsel %vm651, %v1234, %v1242
        %v1249 = vsel %vm651, %v1236, %v1244
        %v1250 = vsel %vm651, %v1238, %v1246
        %v1251 = vsel %vm651, %v1240, %v1232
        %v1252 = vsel %vm651, %v1242, %v1234
        %v1253 = vsel %vm651, %v1244, %v1236
        %v1254 = vsel %vm651, %v1246, %v1238
        %s1255 = scalar_lea.vmem [#allocation2], 51
        %v1256 = vld [vmem:[%s1255] ss:$8 sm:$0x3]
        %v1258 = vlaneseq
        %v1259 = vshrl.u32 %v1258, 7
        %v1260 = vsub.s32 0, %v1259
        %v1261 = vrot.slane %v1256, %v1260
        %v1262 = vlaneseq
        %v1263 = vshrl.u32 %v1262, 7
        %v1264 = vsub.s32 1, %v1263
        %v1265 = vrot.slane %v1256, %v1264
        %v1268 = vmul.f32 %v1251, %v1261
        %v1269 = vmul.f32 %v1247, %v1265
        %v1270 = vmul.f32 %v1252, %v1261
        %v1271 = vmul.f32 %v1248, %v1265
        %v1272 = vmul.f32 %v1253, %v1261
        %v1273 = vmul.f32 %v1249, %v1265
        %v1274 = vmul.f32 %v1254, %v1261
        %v1275 = vmul.f32 %v1250, %v1265
        %1276 = vrot.lane.b32.xlu0 %v1125, 1
        %v1277 = vpop.permute.xlu0 %1276
        %1278 = vrot.lane.b32.xlu0 %v1127, 1
        %v1279 = vpop.permute.xlu0 %1278
        %1280 = vrot.lane.b32.xlu0 %v1129, 1
        %v1281 = vpop.permute.xlu0 %1280
        %1282 = vrot.lane.b32.xlu0 %v1131, 1
        %v1283 = vpop.permute.xlu0 %1282
        %1284 = vrot.lane.b32.xlu0 %v1126, 1
        %v1285 = vpop.permute.xlu0 %1284
        %1286 = vrot.lane.b32.xlu0 %v1128, 1
        %v1287 = vpop.permute.xlu0 %1286
        %1288 = vrot.lane.b32.xlu0 %v1130, 1
        %v1289 = vpop.permute.xlu0 %1288
        %1290 = vrot.lane.b32.xlu0 %v1132, 1
        %v1291 = vpop.permute.xlu0 %1290
        %v1292 = vsel %vm717, %v1277, %v1285
        %v1293 = vsel %vm717, %v1279, %v1287
        %v1294 = vsel %vm717, %v1281, %v1289
        %v1295 = vsel %vm717, %v1283, %v1291
        %v1296 = vsel %vm717, %v1285, %v1277
        %v1297 = vsel %vm717, %v1287, %v1279
        %v1298 = vsel %vm717, %v1289, %v1281
        %v1299 = vsel %vm717, %v1291, %v1283
        %s1300 = scalar_lea.vmem [#allocation2], 52
        %v1301 = vld [vmem:[%s1300] ss:$8 sm:$0x3]
        %v1303 = vlaneseq
        %v1304 = vshrl.u32 %v1303, 7
        %v1305 = vsub.s32 0, %v1304
        %v1306 = vrot.slane %v1301, %v1305
        %v1307 = vlaneseq
        %v1308 = vshrl.u32 %v1307, 7
        %v1309 = vsub.s32 1, %v1308
        %v1310 = vrot.slane %v1301, %v1309
        %v1313 = vmul.f32 %v1296, %v1306
        %v1314 = vmul.f32 %v1292, %v1310
        %v1315 = vmul.f32 %v1297, %v1306
        %v1316 = vmul.f32 %v1293, %v1310
        %v1317 = vmul.f32 %v1298, %v1306
        %v1318 = vmul.f32 %v1294, %v1310
        %v1319 = vmul.f32 %v1299, %v1306
        %v1320 = vmul.f32 %v1295, %v1310
        %1321 = vrot.lane.b32.xlu0 %v1125, 127
        %v1322 = vpop.permute.xlu0 %1321
        %1323 = vrot.lane.b32.xlu0 %v1127, 127
        %v1324 = vpop.permute.xlu0 %1323
        %1325 = vrot.lane.b32.xlu0 %v1129, 127
        %v1326 = vpop.permute.xlu0 %1325
        %1327 = vrot.lane.b32.xlu0 %v1131, 127
        %v1328 = vpop.permute.xlu0 %1327
        %1329 = vrot.lane.b32.xlu0 %v1126, 127
        %v1330 = vpop.permute.xlu0 %1329
        %1331 = vrot.lane.b32.xlu0 %v1128, 127
        %v1332 = vpop.permute.xlu0 %1331
        %1333 = vrot.lane.b32.xlu0 %v1130, 127
        %v1334 = vpop.permute.xlu0 %1333
        %1335 = vrot.lane.b32.xlu0 %v1132, 127
        %v1336 = vpop.permute.xlu0 %1335
        %v1337 = vsel %vm739, %v1322, %v1330
        %v1338 = vsel %vm739, %v1324, %v1332
        %v1339 = vsel %vm739, %v1326, %v1334
        %v1340 = vsel %vm739, %v1328, %v1336
        %v1341 = vsel %vm739, %v1330, %v1322
        %v1342 = vsel %vm739, %v1332, %v1324
        %v1343 = vsel %vm739, %v1334, %v1326
        %v1344 = vsel %vm739, %v1336, %v1328
        %s1345 = scalar_lea.vmem [#allocation2], 53
        %v1346 = vld [vmem:[%s1345] ss:$8 sm:$0x3]
        %v1348 = vlaneseq
        %v1349 = vshrl.u32 %v1348, 7
        %v1350 = vsub.s32 0, %v1349
        %v1351 = vrot.slane %v1346, %v1350
        %v1352 = vlaneseq
        %v1353 = vshrl.u32 %v1352, 7
        %v1354 = vsub.s32 1, %v1353
        %v1355 = vrot.slane %v1346, %v1354
        %v1358 = vmul.f32 %v1337, %v1351
        %v1359 = vmul.f32 %v1341, %v1355
        %v1360 = vmul.f32 %v1338, %v1351
        %v1361 = vmul.f32 %v1342, %v1355
        %v1362 = vmul.f32 %v1339, %v1351
        %v1363 = vmul.f32 %v1343, %v1355
        %v1364 = vmul.f32 %v1340, %v1351
        %v1365 = vmul.f32 %v1344, %v1355
        %1366 = vrot.lane.b32.xlu0 %v1125, 113
        %v1367 = vpop.permute.xlu0 %1366
        %1368 = vrot.lane.b32.xlu0 %v1127, 113
        %v1369 = vpop.permute.xlu0 %1368
        %1370 = vrot.lane.b32.xlu0 %v1129, 113
        %v1371 = vpop.permute.xlu0 %1370
        %1372 = vrot.lane.b32.xlu0 %v1131, 113
        %v1373 = vpop.permute.xlu0 %1372
        %1374 = vrot.lane.b32.xlu0 %v1126, 113
        %v1375 = vpop.permute.xlu0 %1374
        %1376 = vrot.lane.b32.xlu0 %v1128, 113
        %v1377 = vpop.permute.xlu0 %1376
        %1378 = vrot.lane.b32.xlu0 %v1130, 113
        %v1379 = vpop.permute.xlu0 %1378
        %1380 = vrot.lane.b32.xlu0 %v1132, 113
        %v1381 = vpop.permute.xlu0 %1380
        %v1382 = vsel %vm805, %v1367, %v1375
        %v1383 = vsel %vm805, %v1369, %v1377
        %v1384 = vsel %vm805, %v1371, %v1379
        %v1385 = vsel %vm805, %v1373, %v1381
        %v1386 = vsel %vm805, %v1375, %v1367
        %v1387 = vsel %vm805, %v1377, %v1369
        %v1388 = vsel %vm805, %v1379, %v1371
        %v1389 = vsel %vm805, %v1381, %v1373
        %s1390 = scalar_lea.vmem [#allocation2], 54
        %v1391 = vld [vmem:[%s1390] ss:$8 sm:$0x3]
        %v1393 = vlaneseq
        %v1394 = vshrl.u32 %v1393, 7
        %v1395 = vsub.s32 0, %v1394
        %v1396 = vrot.slane %v1391, %v1395
        %v1397 = vlaneseq
        %v1398 = vshrl.u32 %v1397, 7
        %v1399 = vsub.s32 1, %v1398
        %v1400 = vrot.slane %v1391, %v1399
        %v1403 = vmul.f32 %v1382, %v1396
        %v1404 = vmul.f32 %v1386, %v1400
        %v1405 = vmul.f32 %v1383, %v1396
        %v1406 = vmul.f32 %v1387, %v1400
        %v1407 = vmul.f32 %v1384, %v1396
        %v1408 = vmul.f32 %v1388, %v1400
        %v1409 = vmul.f32 %v1385, %v1396
        %v1410 = vmul.f32 %v1389, %v1400
        %1411 = vrot.lane.b32.xlu0 %v1125, 112
        %v1412 = vpop.permute.xlu0 %1411
        %1413 = vrot.lane.b32.xlu0 %v1127, 112
        %v1414 = vpop.permute.xlu0 %1413
        %1415 = vrot.lane.b32.xlu0 %v1129, 112
        %v1416 = vpop.permute.xlu0 %1415
        %1417 = vrot.lane.b32.xlu0 %v1131, 112
        %v1418 = vpop.permute.xlu0 %1417
        %1419 = vrot.lane.b32.xlu0 %v1126, 112
        %v1420 = vpop.permute.xlu0 %1419
        %1421 = vrot.lane.b32.xlu0 %v1128, 112
        %v1422 = vpop.permute.xlu0 %1421
        %1423 = vrot.lane.b32.xlu0 %v1130, 112
        %v1424 = vpop.permute.xlu0 %1423
        %1425 = vrot.lane.b32.xlu0 %v1132, 112
        %v1426 = vpop.permute.xlu0 %1425
        %v1427 = vsel %vm827, %v1412, %v1420
        %v1428 = vsel %vm827, %v1414, %v1422
        %v1429 = vsel %vm827, %v1416, %v1424
        %v1430 = vsel %vm827, %v1418, %v1426
        %v1431 = vsel %vm827, %v1420, %v1412
        %v1432 = vsel %vm827, %v1422, %v1414
        %v1433 = vsel %vm827, %v1424, %v1416
        %v1434 = vsel %vm827, %v1426, %v1418
        %s1435 = scalar_lea.vmem [#allocation2], 55
        %v1436 = vld [vmem:[%s1435] ss:$8 sm:$0x3]
        %v1438 = vlaneseq
        %v1439 = vshrl.u32 %v1438, 7
        %v1440 = vsub.s32 0, %v1439
        %v1441 = vrot.slane %v1436, %v1440
        %v1442 = vlaneseq
        %v1443 = vshrl.u32 %v1442, 7
        %v1444 = vsub.s32 1, %v1443
        %v1445 = vrot.slane %v1436, %v1444
        %v1448 = vmul.f32 %v1427, %v1441
        %v1449 = vmul.f32 %v1431, %v1445
        %v1450 = vmul.f32 %v1428, %v1441
        %v1451 = vmul.f32 %v1432, %v1445
        %v1452 = vmul.f32 %v1429, %v1441
        %v1453 = vmul.f32 %v1433, %v1445
        %v1454 = vmul.f32 %v1430, %v1441
        %v1455 = vmul.f32 %v1434, %v1445
        %1456 = vrot.lane.b32.xlu0 %v1125, 111
        %v1457 = vpop.permute.xlu0 %1456
        %1458 = vrot.lane.b32.xlu0 %v1127, 111
        %v1459 = vpop.permute.xlu0 %1458
        %1460 = vrot.lane.b32.xlu0 %v1129, 111
        %v1461 = vpop.permute.xlu0 %1460
        %1462 = vrot.lane.b32.xlu0 %v1131, 111
        %v1463 = vpop.permute.xlu0 %1462
        %1464 = vrot.lane.b32.xlu0 %v1126, 111
        %v1465 = vpop.permute.xlu0 %1464
        %1466 = vrot.lane.b32.xlu0 %v1128, 111
        %v1467 = vpop.permute.xlu0 %1466
        %1468 = vrot.lane.b32.xlu0 %v1130, 111
        %v1469 = vpop.permute.xlu0 %1468
        %1470 = vrot.lane.b32.xlu0 %v1132, 111
        %v1471 = vpop.permute.xlu0 %1470
        %v1472 = vsel %vm849, %v1457, %v1465
        %v1473 = vsel %vm849, %v1459, %v1467
        %v1474 = vsel %vm849, %v1461, %v1469
        %v1475 = vsel %vm849, %v1463, %v1471
        %v1476 = vsel %vm849, %v1465, %v1457
        %v1477 = vsel %vm849, %v1467, %v1459
        %v1478 = vsel %vm849, %v1469, %v1461
        %v1479 = vsel %vm849, %v1471, %v1463
        %s1480 = scalar_lea.vmem [#allocation2], 64
        %v1481 = vld [vmem:[%s1480] ss:$8 sm:$0x3]
        %v1483 = vlaneseq
        %v1484 = vshrl.u32 %v1483, 7
        %v1485 = vsub.s32 0, %v1484
        %v1486 = vrot.slane %v1481, %v1485
        %v1487 = vlaneseq
        %v1488 = vshrl.u32 %v1487, 7
        %v1489 = vsub.s32 1, %v1488
        %v1490 = vrot.slane %v1481, %v1489
        %v1493 = vmul.f32 %v1472, %v1486
        %v1494 = vmul.f32 %v1476, %v1490
        %v1495 = vmul.f32 %v1473, %v1486
        %v1496 = vmul.f32 %v1477, %v1490
        %v1497 = vmul.f32 %v1474, %v1486
        %v1498 = vmul.f32 %v1478, %v1490
        %v1499 = vmul.f32 %v1475, %v1486
        %v1500 = vmul.f32 %v1479, %v1490
        %1501 = vset.pattern.permute.xlu0 1
        %1502 = vperm.xlu0 %1501, %v999
        %v1503 = vpop.permute.xlu0 %1502
        %1505 = vset.pattern.permute.xlu0 1
        %1506 = vperm.xlu0 %1505, %v1000
        %v1507 = vpop.permute.xlu0 %1506
        %1509 = vset.pattern.permute.xlu0 1
        %1510 = vperm.xlu0 %1509, %v1001
        %v1511 = vpop.permute.xlu0 %1510
        %1513 = vset.pattern.permute.xlu0 1
        %1514 = vperm.xlu0 %1513, %v1002
        %v1515 = vpop.permute.xlu0 %1514
        %1517 = vmatprep.subr.mxu0 %v1179
        %1518 = vmatpush1.msra.mxu0 %v1178
        %1519 = vmatprep.subr.mxu0 %v1181
        %1520 = vmatpush1.msra.mxu0 %v1180
        %1521 = vmatprep.subr.mxu0 %v1183
        %1522 = vmatpush1.msra.mxu0 %v1182
        %1523 = vmatprep.subr.mxu0 %v1185
        %1524 = vmatpush1.msra.mxu0 %v1184
        %1525 = vmatprep.subr.mxu0 %v1224
        %1526 = vmatpush1.msra.mxu0 %v1223
        %1527 = vmatprep.subr.mxu0 %v1226
        %1528 = vmatpush1.msra.mxu0 %v1225
        %1529 = vmatprep.subr.mxu0 %v1228
        %1530 = vmatpush1.msra.mxu0 %v1227
        %1531 = vmatprep.subr.mxu0 %v1230
        %1532 = vmatpush1.msra.mxu0 %v1229
        %1533 = vmatprep.subr.mxu0 %v1269
        %1534 = vmatpush1.msra.mxu0 %v1268
        %1535 = vmatprep.subr.mxu0 %v1271
        %1536 = vmatpush1.msra.mxu0 %v1270
        %1537 = vmatprep.subr.mxu0 %v1273
        %1538 = vmatpush1.msra.mxu0 %v1272
        %1539 = vmatprep.subr.mxu0 %v1275
        %1540 = vmatpush1.msra.mxu0 %v1274
        %1541 = vmatprep.subr.mxu0 %v1314
        %1542 = vmatpush1.msra.mxu0 %v1313
        %1543 = vmatprep.subr.mxu0 %v1316
        %1544 = vmatpush1.msra.mxu0 %v1315
        %1545 = vmatprep.subr.mxu0 %v1318
        %1546 = vmatpush1.msra.mxu0 %v1317
        %1547 = vmatprep.subr.mxu0 %v1320
        %1548 = vmatpush1.msra.mxu0 %v1319
        %1549 = vmatprep.subr.mxu0 %v1359
        %1550 = vmatpush1.msra.mxu0 %v1358
        %1551 = vmatprep.subr.mxu0 %v1361
        %1552 = vmatpush1.msra.mxu0 %v1360
        %1553 = vmatprep.subr.mxu0 %v1363
        %1554 = vmatpush1.msra.mxu0 %v1362
        %1555 = vmatprep.subr.mxu0 %v1365
        %1556 = vmatpush1.msra.mxu0 %v1364
        %1557 = vmatprep.subr.mxu0 %v1404
        %1558 = vmatpush1.msra.mxu0 %v1403
        %1559 = vmatprep.subr.mxu0 %v1406
        %1560 = vmatpush1.msra.mxu0 %v1405
        %1561 = vmatprep.subr.mxu0 %v1408
        %1562 = vmatpush1.msra.mxu0 %v1407
        %1563 = vmatprep.subr.mxu0 %v1410
        %1564 = vmatpush1.msra.mxu0 %v1409
        %1565 = vmatprep.subr.mxu0 %v1449
        %1566 = vmatpush1.msra.mxu0 %v1448
        %1567 = vmatprep.subr.mxu0 %v1451
        %1568 = vmatpush1.msra.mxu0 %v1450
        %1569 = vmatprep.subr.mxu0 %v1453
        %1570 = vmatpush1.msra.mxu0 %v1452
        %1571 = vmatprep.subr.mxu0 %v1455
        %1572 = vmatpush1.msra.mxu0 %v1454
        %1573 = vmatprep.subr.mxu0 %v1494
        %1574 = vmatpush1.msra.mxu0 %v1493
        %1575 = vmatprep.subr.mxu0 %v1496
        %1576 = vmatpush1.msra.mxu0 %v1495
        %1577 = vmatprep.subr.mxu0 %v1498
        %1578 = vmatpush1.msra.mxu0 %v1497
        %1579 = vmatprep.subr.mxu0 %v1500
        %1580 = vmatpush1.msra.mxu0 %v1499
        %1581 = vmatprep.mubr.f32.mxu0 %v1134
        %1582 = vmatmul.mubr.f32.gmra.mrb[0].mxu0 %v1133
        %v1583 = vpop.f32.mrb[0].mxu0
        %v1584 = vadd.f32 %v1503, %v1583
        %v1585 = vpop.f32.mrb[0].mxu0
        %v1586 = vadd.f32 %v1503, %v1585
        %1587 = vmatprep.mubr.f32.mxu0 %v1136
        %1588 = vmatmul.mubr.f32.gmra.mrb[0].mxu0 %v1135
        %v1589 = vpop.f32.mrb[0].mxu0
        %v1590 = vadd.f32 %v1507, %v1589
        %v1591 = vpop.f32.mrb[0].mxu0
        %v1592 = vadd.f32 %v1507, %v1591
        %1593 = vmatprep.mubr.f32.mxu0 %v1138
        %1594 = vmatmul.mubr.f32.gmra.mrb[0].mxu0 %v1137
        %v1595 = vpop.f32.mrb[0].mxu0
        %v1596 = vadd.f32 %v1511, %v1595
        %v1597 = vpop.f32.mrb[0].mxu0
        %v1598 = vadd.f32 %v1511, %v1597
        %1599 = vmatprep.mubr.f32.mxu0 %v1140
        %1600 = vmatmul.mubr.f32.gmra.mrb[0].mxu0 %v1139
        %v1601 = vpop.f32.mrb[0].mxu0
        %v1602 = vadd.f32 %v1515, %v1601
        %v1603 = vpop.f32.mrb[0].mxu0
        %v1604 = vadd.f32 %v1515, %v1603
        %1605 = vdwg.mxu0
        %v1606 = vmax.f32 %v1584, 0.0
        %v1607 = vmax.f32 %v1586, 0.0
        %v1608 = vmax.f32 %v1590, 0.0
        %v1609 = vmax.f32 %v1592, 0.0
        %v1610 = vmax.f32 %v1596, 0.0
        %v1611 = vmax.f32 %v1598, 0.0
        %v1612 = vmax.f32 %v1602, 0.0
        %v1613 = vmax.f32 %v1604, 0.0
        %v1614 = vld [vmem:[#allocation8] sm:$0xff]
        %v1615 = vld [vmem:[#allocation8 + $0x8] sm:$0xff]
        %v1616 = vld [vmem:[#allocation8 + $0x10] sm:$0xff]
        %v1617 = vld [vmem:[#allocation8 + $0x18] sm:$0xff]
        %1618 = vset.pattern.permute.xlu0 2
        %1619 = vperm.xlu0 %1618, %v999
        %v1620 = vpop.permute.xlu0 %1619
        %1622 = vset.pattern.permute.xlu0 2
        %1623 = vperm.xlu0 %1622, %v1000
        %v1624 = vpop.permute.xlu0 %1623
        %1626 = vset.pattern.permute.xlu0 2
        %1627 = vperm.xlu0 %1626, %v1001
        %v1628 = vpop.permute.xlu0 %1627
        %1630 = vset.pattern.permute.xlu0 2
        %1631 = vperm.xlu0 %1630, %v1002
        %v1632 = vpop.permute.xlu0 %1631
        %vm1634 = vcmask 261120
        %v1636 = vsel %vm1634, %v1614, 0
        %v1639 = vsel %vm1634, %v1615, 0
        %v1642 = vsel %vm1634, %v1616, 0
        %v1645 = vsel %vm1634, %v1617, 0
        %1647 = vmatprep.subr.mxu0 %v1607
        %1648 = vmatpush1.msra.mxu0 %v1606
        %1649 = vmatprep.subr.mxu0 %v1609
        %1650 = vmatpush1.msra.mxu0 %v1608
        %1651 = vmatprep.subr.mxu0 %v1611
        %1652 = vmatpush1.msra.mxu0 %v1610
        %1653 = vmatprep.subr.mxu0 %v1613
        %1654 = vmatpush1.msra.mxu0 %v1612
        %1655 = vmatprep.subr.mxu0 0.0
        %1656 = vmatpush1.msra.mxu0 0.0
        %1657 = vmatprep.subr.mxu0 0.0
        %1658 = vmatpush1.msra.mxu0 0.0
        %1659 = vmatprep.subr.mxu0 0.0
        %1660 = vmatpush1.msra.mxu0 0.0
        %1661 = vmatprep.subr.mxu0 0.0
        %1662 = vmatpush1.msra.mxu0 0.0
        %1663 = vmatprep.subr.mxu0 0.0
        %1664 = vmatpush1.msra.mxu0 0.0
        %1665 = vmatprep.subr.mxu0 0.0
        %1666 = vmatpush1.msra.mxu0 0.0
        %1667 = vmatprep.subr.mxu0 0.0
        %1668 = vmatpush1.msra.mxu0 0.0
        %1669 = vmatprep.subr.mxu0 0.0
        %1670 = vmatpush1.msra.mxu0 0.0
        %1671 = vmatprep.subr.mxu0 0.0
        %1672 = vmatpush1.msra.mxu0 0.0
        %1673 = vmatprep.subr.mxu0 0.0
        %1674 = vmatpush1.msra.mxu0 0.0
        %1675 = vmatprep.subr.mxu0 0.0
        %1676 = vmatpush1.msra.mxu0 0.0
        %1677 = vmatprep.subr.mxu0 0.0
        %1678 = vmatpush1.msra.mxu0 0.0
        %1679 = vmatprep.subr.mxu0 0.0
        %1680 = vmatpush1.msra.mxu0 0.0
        %1681 = vmatprep.subr.mxu0 0.0
        %1682 = vmatpush1.msra.mxu0 0.0
        %1683 = vmatprep.subr.mxu0 0.0
        %1684 = vmatpush1.msra.mxu0 0.0
        %1685 = vmatprep.subr.mxu0 0.0
        %1686 = vmatpush1.msra.mxu0 0.0
        %1687 = vmatprep.subr.mxu0 0.0
        %1688 = vmatpush1.msra.mxu0 0.0
        %1689 = vmatprep.subr.mxu0 0.0
        %1690 = vmatpush1.msra.mxu0 0.0
        %1691 = vmatprep.subr.mxu0 0.0
        %1692 = vmatpush1.msra.mxu0 0.0
        %1693 = vmatprep.subr.mxu0 0.0
        %1694 = vmatpush1.msra.mxu0 0.0
        %1695 = vmatprep.subr.mxu0 0.0
        %1696 = vmatpush1.msra.mxu0 0.0
        %1697 = vmatprep.subr.mxu0 0.0
        %1698 = vmatpush1.msra.mxu0 0.0
        %1699 = vmatprep.subr.mxu0 0.0
        %1700 = vmatpush1.msra.mxu0 0.0
        %1701 = vmatprep.subr.mxu0 0.0
        %1702 = vmatpush1.msra.mxu0 0.0
        %1703 = vmatprep.subr.mxu0 0.0
        %1704 = vmatpush1.msra.mxu0 0.0
        %1705 = vmatprep.subr.mxu0 0.0
        %1706 = vmatpush1.msra.mxu0 0.0
        %1707 = vmatprep.subr.mxu0 0.0
        %1708 = vmatpush1.msra.mxu0 0.0
        %1709 = vmatprep.subr.mxu0 0.0
        %1710 = vmatpush1.msra.mxu0 0.0
        %1711 = vmatprep.mubr.f32.mxu0 0.0
        %1712 = vmatmul.mubr.f32.gmra.mrb[0].mxu0 %v1636
        %v1713 = vpop.f32.mrb[0].mxu0
        %v1714 = vadd.f32 %v1620, %v1713
        %v1715 = vpop.f32.mrb[0].mxu0
        %v1716 = vadd.f32 %v1620, %v1715
        %1717 = vmatprep.mubr.f32.mxu0 0.0
        %1718 = vmatmul.mubr.f32.gmra.mrb[0].mxu0 %v1639
        %v1719 = vpop.f32.mrb[0].mxu0
        %v1720 = vadd.f32 %v1624, %v1719
        %v1721 = vpop.f32.mrb[0].mxu0
        %v1722 = vadd.f32 %v1624, %v1721
        %1723 = vmatprep.mubr.f32.mxu0 0.0
        %1724 = vmatmul.mubr.f32.gmra.mrb[0].mxu0 %v1642
        %v1725 = vpop.f32.mrb[0].mxu0
        %v1726 = vadd.f32 %v1628, %v1725
        %v1727 = vpop.f32.mrb[0].mxu0
        %v1728 = vadd.f32 %v1628, %v1727
        %1729 = vmatprep.mubr.f32.mxu0 0.0
        %1730 = vmatmul.mubr.f32.gmra.mrb[0].mxu0 %v1645
        %v1731 = vpop.f32.mrb[0].mxu0
        %v1732 = vadd.f32 %v1632, %v1731
        %v1733 = vpop.f32.mrb[0].mxu0
        %v1734 = vadd.f32 %v1632, %v1733
        %1735 = vdwg.mxu0
        %v1736 = vmax.f32 %v1714, 0.0
        %v1737 = vmax.f32 %v1716, 0.0
        %v1738 = vmax.f32 %v1720, 0.0
        %v1739 = vmax.f32 %v1722, 0.0
        %v1740 = vmax.f32 %v1726, 0.0
        %v1741 = vmax.f32 %v1728, 0.0
        %v1742 = vmax.f32 %v1732, 0.0
        %v1743 = vmax.f32 %v1734, 0.0
        %s1744 = scalar_lea.vmem [#allocation8], 32
        %v1745 = vld [vmem:[%s1744] sm:$0xff]
        %v1746 = vld [vmem:[%s1744 + $0x8] sm:$0xff]
        %v1747 = vld [vmem:[%s1744 + $0x10] sm:$0xff]
        %v1748 = vld [vmem:[%s1744 + $0x18] sm:$0xff]
        %1749 = vset.pattern.permute.xlu0 3
        %1750 = vperm.xlu0 %1749, %v999
        %v1751 = vpop.permute.xlu0 %1750
        %1753 = vset.pattern.permute.xlu0 3
        %1754 = vperm.xlu0 %1753, %v1000
        %v1755 = vpop.permute.xlu0 %1754
        %1757 = vset.pattern.permute.xlu0 3
        %1758 = vperm.xlu0 %1757, %v1001
        %v1759 = vpop.permute.xlu0 %1758
        %1761 = vset.pattern.permute.xlu0 3
        %1762 = vperm.xlu0 %1761, %v1002
        %v1763 = vpop.permute.xlu0 %1762
        %v1766 = vsel %vm1634, %v1745, 0
        %v1769 = vsel %vm1634, %v1746, 0
        %v1772 = vsel %vm1634, %v1747, 0
        %v1775 = vsel %vm1634, %v1748, 0
        %1777 = vmatprep.subr.mxu0 %v1737
        %1778 = vmatpush1.msra.mxu0 %v1736
        %1779 = vmatprep.subr.mxu0 %v1739
        %1780 = vmatpush1.msra.mxu0 %v1738
        %1781 = vmatprep.subr.mxu0 %v1741
        %1782 = vmatpush1.msra.mxu0 %v1740
        %1783 = vmatprep.subr.mxu0 %v1743
        %1784 = vmatpush1.msra.mxu0 %v1742
        %1785 = vmatprep.subr.mxu0 0.0
        %1786 = vmatpush1.msra.mxu0 0.0
        %1787 = vmatprep.subr.mxu0 0.0
        %1788 = vmatpush1.msra.mxu0 0.0
        %1789 = vmatprep.subr.mxu0 0.0
        %1790 = vmatpush1.msra.mxu0 0.0
        %1791 = vmatprep.subr.mxu0 0.0
        %1792 = vmatpush1.msra.mxu0 0.0
        %1793 = vmatprep.subr.mxu0 0.0
        %1794 = vmatpush1.msra.mxu0 0.0
        %1795 = vmatprep.subr.mxu0 0.0
        %1796 = vmatpush1.msra.mxu0 0.0
        %1797 = vmatprep.subr.mxu0 0.0
        %1798 = vmatpush1.msra.mxu0 0.0
        %1799 = vmatprep.subr.mxu0 0.0
        %1800 = vmatpush1.msra.mxu0 0.0
        %1801 = vmatprep.subr.mxu0 0.0
        %1802 = vmatpush1.msra.mxu0 0.0
        %1803 = vmatprep.subr.mxu0 0.0
        %1804 = vmatpush1.msra.mxu0 0.0
        %1805 = vmatprep.subr.mxu0 0.0
        %1806 = vmatpush1.msra.mxu0 0.0
        %1807 = vmatprep.subr.mxu0 0.0
        %1808 = vmatpush1.msra.mxu0 0.0
        %1809 = vmatprep.subr.mxu0 0.0
        %1810 = vmatpush1.msra.mxu0 0.0
        %1811 = vmatprep.subr.mxu0 0.0
        %1812 = vmatpush1.msra.mxu0 0.0
        %1813 = vmatprep.subr.mxu0 0.0
        %1814 = vmatpush1.msra.mxu0 0.0
        %1815 = vmatprep.subr.mxu0 0.0
        %1816 = vmatpush1.msra.mxu0 0.0
        %1817 = vmatprep.subr.mxu0 0.0
        %1818 = vmatpush1.msra.mxu0 0.0
        %1819 = vmatprep.subr.mxu0 0.0
        %1820 = vmatpush1.msra.mxu0 0.0
        %1821 = vmatprep.subr.mxu0 0.0
        %1822 = vmatpush1.msra.mxu0 0.0
        %1823 = vmatprep.subr.mxu0 0.0
        %1824 = vmatpush1.msra.mxu0 0.0
        %1825 = vmatprep.subr.mxu0 0.0
        %1826 = vmatpush1.msra.mxu0 0.0
        %1827 = vmatprep.subr.mxu0 0.0
        %1828 = vmatpush1.msra.mxu0 0.0
        %1829 = vmatprep.subr.mxu0 0.0
        %1830 = vmatpush1.msra.mxu0 0.0
        %1831 = vmatprep.subr.mxu0 0.0
        %1832 = vmatpush1.msra.mxu0 0.0
        %1833 = vmatprep.subr.mxu0 0.0
        %1834 = vmatpush1.msra.mxu0 0.0
        %1835 = vmatprep.subr.mxu0 0.0
        %1836 = vmatpush1.msra.mxu0 0.0
        %1837 = vmatprep.subr.mxu0 0.0
        %1838 = vmatpush1.msra.mxu0 0.0
        %1839 = vmatprep.subr.mxu0 0.0
        %1840 = vmatpush1.msra.mxu0 0.0
        %1841 = vmatprep.mubr.f32.mxu0 0.0
        %1842 = vmatmul.mubr.f32.gmra.mrb[0].mxu0 %v1766
        %v1843 = vpop.f32.mrb[0].mxu0
        %v1844 = vadd.f32 %v1751, %v1843
        %v1845 = vpop.f32.mrb[0].mxu0
        %v1846 = vadd.f32 %v1751, %v1845
        %1847 = vmatprep.mubr.f32.mxu0 0.0
        %1848 = vmatmul.mubr.f32.gmra.mrb[0].mxu0 %v1769
        %v1849 = vpop.f32.mrb[0].mxu0
        %v1850 = vadd.f32 %v1755, %v1849
        %v1851 = vpop.f32.mrb[0].mxu0
        %v1852 = vadd.f32 %v1755, %v1851
        %1853 = vmatprep.mubr.f32.mxu0 0.0
        %1854 = vmatmul.mubr.f32.gmra.mrb[0].mxu0 %v1772
        %v1855 = vpop.f32.mrb[0].mxu0
        %v1856 = vadd.f32 %v1759, %v1855
        %v1857 = vpop.f32.mrb[0].mxu0
        %v1858 = vadd.f32 %v1759, %v1857
        %1859 = vmatprep.mubr.f32.mxu0 0.0
        %1860 = vmatmul.mubr.f32.gmra.mrb[0].mxu0 %v1775
        %v1861 = vpop.f32.mrb[0].mxu0
        %v1862 = vadd.f32 %v1763, %v1861
        %v1863 = vpop.f32.mrb[0].mxu0
        %v1864 = vadd.f32 %v1763, %v1863
        %1865 = vdwg.mxu0
        %v1866 = vmax.f32 %v1844, 0.0
        %v1867 = vmax.f32 %v1846, 0.0
        %v1868 = vmax.f32 %v1850, 0.0
        %v1869 = vmax.f32 %v1852, 0.0
        %v1870 = vmax.f32 %v1856, 0.0
        %v1871 = vmax.f32 %v1858, 0.0
        %v1872 = vmax.f32 %v1862, 0.0
        %v1873 = vmax.f32 %v1864, 0.0
        %v1874 = vld [vmem:[#allocation10] sm:$0xff]
        %v1875 = vld [vmem:[#allocation10 + $0x8] sm:$0xff]
        %v1876 = vld [vmem:[#allocation10 + $0x10] sm:$0xff]
        %v1877 = vld [vmem:[#allocation10 + $0x18] sm:$0xff]
        %v1878 = vld [vmem:[#allocation10 + $0x20] sm:$0xff]
        %v1879 = vld [vmem:[#allocation10 + $0x28] sm:$0xff]
        %v1880 = vld [vmem:[#allocation10 + $0x30] sm:$0xff]
        %v1881 = vld [vmem:[#allocation10 + $0x38] sm:$0xff]
        %v1882 = vld [vmem:[#allocation10 + $0x40] sm:$0xff]
        %v1883 = vld [vmem:[#allocation10 + $0x48] sm:$0xff]
        %v1884 = vld [vmem:[#allocation10 + $0x50] sm:$0xff]
        %v1885 = vld [vmem:[#allocation10 + $0x58] sm:$0xff]
        %1886 = vrot.lane.b32.xlu0 %v1866, 34
        %v1887 = vpop.permute.xlu0 %1886
        %1888 = vrot.lane.b32.xlu0 %v1868, 34
        %v1889 = vpop.permute.xlu0 %1888
        %1890 = vrot.lane.b32.xlu0 %v1870, 34
        %v1891 = vpop.permute.xlu0 %1890
        %1892 = vrot.lane.b32.xlu0 %v1872, 34
        %v1893 = vpop.permute.xlu0 %1892
        %1894 = vrot.lane.b32.xlu0 %v1867, 34
        %v1895 = vpop.permute.xlu0 %1894
        %1896 = vrot.lane.b32.xlu0 %v1869, 34
        %v1897 = vpop.permute.xlu0 %1896
        %1898 = vrot.lane.b32.xlu0 %v1871, 34
        %v1899 = vpop.permute.xlu0 %1898
        %1900 = vrot.lane.b32.xlu0 %v1873, 34
        %v1901 = vpop.permute.xlu0 %1900
        %v1902 = vsel %vm476, %v1887, %v1895
        %v1903 = vsel %vm476, %v1889, %v1897
        %v1904 = vsel %vm476, %v1891, %v1899
        %v1905 = vsel %vm476, %v1893, %v1901
        %v1906 = vsel %vm476, %v1895, %v1887
        %v1907 = vsel %vm476, %v1897, %v1889
        %v1908 = vsel %vm476, %v1899, %v1891
        %v1909 = vsel %vm476, %v1901, %v1893
        %s1910 = scalar_lea.vmem [#allocation2], 65
        %v1911 = vld [vmem:[%s1910] ss:$8 sm:$0x3]
        %v1913 = vlaneseq
        %v1914 = vshrl.u32 %v1913, 7
        %v1915 = vsub.s32 0, %v1914
        %v1916 = vrot.slane %v1911, %v1915
        %v1917 = vlaneseq
        %v1918 = vshrl.u32 %v1917, 7
        %v1919 = vsub.s32 1, %v1918
        %v1920 = vrot.slane %v1911, %v1919
        %v1923 = vmul.f32 %v1906, %v1916
        %v1924 = vmul.f32 %v1902, %v1920
        %v1925 = vmul.f32 %v1907, %v1916
        %v1926 = vmul.f32 %v1903, %v1920
        %v1927 = vmul.f32 %v1908, %v1916
        %v1928 = vmul.f32 %v1904, %v1920
        %v1929 = vmul.f32 %v1909, %v1916
        %v1930 = vmul.f32 %v1905, %v1920
        %1931 = vrot.lane.b32.xlu0 %v1866, 32
        %v1932 = vpop.permute.xlu0 %1931
        %1933 = vrot.lane.b32.xlu0 %v1868, 32
        %v1934 = vpop.permute.xlu0 %1933
        %1935 = vrot.lane.b32.xlu0 %v1870, 32
        %v1936 = vpop.permute.xlu0 %1935
        %1937 = vrot.lane.b32.xlu0 %v1872, 32
        %v1938 = vpop.permute.xlu0 %1937
        %1939 = vrot.lane.b32.xlu0 %v1867, 32
        %v1940 = vpop.permute.xlu0 %1939
        %1941 = vrot.lane.b32.xlu0 %v1869, 32
        %v1942 = vpop.permute.xlu0 %1941
        %1943 = vrot.lane.b32.xlu0 %v1871, 32
        %v1944 = vpop.permute.xlu0 %1943
        %1945 = vrot.lane.b32.xlu0 %v1873, 32
        %v1946 = vpop.permute.xlu0 %1945
        %v1947 = vsel %vm519, %v1932, %v1940
        %v1948 = vsel %vm519, %v1934, %v1942
        %v1949 = vsel %vm519, %v1936, %v1944
        %v1950 = vsel %vm519, %v1938, %v1946
        %v1951 = vsel %vm519, %v1940, %v1932
        %v1952 = vsel %vm519, %v1942, %v1934
        %v1953 = vsel %vm519, %v1944, %v1936
        %v1954 = vsel %vm519, %v1946, %v1938
        %s1955 = scalar_lea.vmem [#allocation2], 66
        %v1956 = vld [vmem:[%s1955] ss:$8 sm:$0x3]
        %v1958 = vlaneseq
        %v1959 = vshrl.u32 %v1958, 7
        %v1960 = vsub.s32 0, %v1959
        %v1961 = vrot.slane %v1956, %v1960
        %v1962 = vlaneseq
        %v1963 = vshrl.u32 %v1962, 7
        %v1964 = vsub.s32 1, %v1963
        %v1965 = vrot.slane %v1956, %v1964
        %v1968 = vmul.f32 %v1951, %v1961
        %v1969 = vmul.f32 %v1947, %v1965
        %v1970 = vmul.f32 %v1952, %v1961
        %v1971 = vmul.f32 %v1948, %v1965
        %v1972 = vmul.f32 %v1953, %v1961
        %v1973 = vmul.f32 %v1949, %v1965
        %v1974 = vmul.f32 %v1954, %v1961
        %v1975 = vmul.f32 %v1950, %v1965
        %1976 = vrot.lane.b32.xlu0 %v1866, 30
        %v1977 = vpop.permute.xlu0 %1976
        %1978 = vrot.lane.b32.xlu0 %v1868, 30
        %v1979 = vpop.permute.xlu0 %1978
        %1980 = vrot.lane.b32.xlu0 %v1870, 30
        %v1981 = vpop.permute.xlu0 %1980
        %1982 = vrot.lane.b32.xlu0 %v1872, 30
        %v1983 = vpop.permute.xlu0 %1982
        %1984 = vrot.lane.b32.xlu0 %v1867, 30
        %v1985 = vpop.permute.xlu0 %1984
        %1986 = vrot.lane.b32.xlu0 %v1869, 30
        %v1987 = vpop.permute.xlu0 %1986
        %1988 = vrot.lane.b32.xlu0 %v1871, 30
        %v1989 = vpop.permute.xlu0 %1988
        %1990 = vrot.lane.b32.xlu0 %v1873, 30
        %v1991 = vpop.permute.xlu0 %1990
        %v1992 = vsel %vm563, %v1977, %v1985
        %v1993 = vsel %vm563, %v1979, %v1987
        %v1994 = vsel %vm563, %v1981, %v1989
        %v1995 = vsel %vm563, %v1983, %v1991
        %v1996 = vsel %vm563, %v1985, %v1977
        %v1997 = vsel %vm563, %v1987, %v1979
        %v1998 = vsel %vm563, %v1989, %v1981
        %v1999 = vsel %vm563, %v1991, %v1983
        %s2000 = scalar_lea.vmem [#allocation2], 67
        %v2001 = vld [vmem:[%s2000] ss:$8 sm:$0x3]
        %v2003 = vlaneseq
        %v2004 = vshrl.u32 %v2003, 7
        %v2005 = vsub.s32 0, %v2004
        %v2006 = vrot.slane %v2001, %v2005
        %v2007 = vlaneseq
        %v2008 = vshrl.u32 %v2007, 7
        %v2009 = vsub.s32 1, %v2008
        %v2010 = vrot.slane %v2001, %v2009
        %v2013 = vmul.f32 %v1996, %v2006
        %v2014 = vmul.f32 %v1992, %v2010
        %v2015 = vmul.f32 %v1997, %v2006
        %v2016 = vmul.f32 %v1993, %v2010
        %v2017 = vmul.f32 %v1998, %v2006
        %v2018 = vmul.f32 %v1994, %v2010
        %v2019 = vmul.f32 %v1999, %v2006
        %v2020 = vmul.f32 %v1995, %v2010
        %2021 = vrot.lane.b32.xlu0 %v1866, 2
        %v2022 = vpop.permute.xlu0 %2021
        %2023 = vrot.lane.b32.xlu0 %v1868, 2
        %v2024 = vpop.permute.xlu0 %2023
        %2025 = vrot.lane.b32.xlu0 %v1870, 2
        %v2026 = vpop.permute.xlu0 %2025
        %2027 = vrot.lane.b32.xlu0 %v1872, 2
        %v2028 = vpop.permute.xlu0 %2027
        %2029 = vrot.lane.b32.xlu0 %v1867, 2
        %v2030 = vpop.permute.xlu0 %2029
        %2031 = vrot.lane.b32.xlu0 %v1869, 2
        %v2032 = vpop.permute.xlu0 %2031
        %2033 = vrot.lane.b32.xlu0 %v1871, 2
        %v2034 = vpop.permute.xlu0 %2033
        %2035 = vrot.lane.b32.xlu0 %v1873, 2
        %v2036 = vpop.permute.xlu0 %2035
        %v2037 = vsel %vm695, %v2022, %v2030
        %v2038 = vsel %vm695, %v2024, %v2032
        %v2039 = vsel %vm695, %v2026, %v2034
        %v2040 = vsel %vm695, %v2028, %v2036
        %v2041 = vsel %vm695, %v2030, %v2022
        %v2042 = vsel %vm695, %v2032, %v2024
        %v2043 = vsel %vm695, %v2034, %v2026
        %v2044 = vsel %vm695, %v2036, %v2028
        %s2045 = scalar_lea.vmem [#allocation2], 68
        %v2046 = vld [vmem:[%s2045] ss:$8 sm:$0x3]
        %v2048 = vlaneseq
        %v2049 = vshrl.u32 %v2048, 7
        %v2050 = vsub.s32 0, %v2049
        %v2051 = vrot.slane %v2046, %v2050
        %v2052 = vlaneseq
        %v2053 = vshrl.u32 %v2052, 7
        %v2054 = vsub.s32 1, %v2053
        %v2055 = vrot.slane %v2046, %v2054
        %v2058 = vmul.f32 %v2041, %v2051
        %v2059 = vmul.f32 %v2037, %v2055
        %v2060 = vmul.f32 %v2042, %v2051
        %v2061 = vmul.f32 %v2038, %v2055
        %v2062 = vmul.f32 %v2043, %v2051
        %v2063 = vmul.f32 %v2039, %v2055
        %v2064 = vmul.f32 %v2044, %v2051
        %v2065 = vmul.f32 %v2040, %v2055
        %2066 = vrot.lane.b32.xlu0 %v1866, 126
        %v2067 = vpop.permute.xlu0 %2066
        %2068 = vrot.lane.b32.xlu0 %v1868, 126
        %v2069 = vpop.permute.xlu0 %2068
        %2070 = vrot.lane.b32.xlu0 %v1870, 126
        %v2071 = vpop.permute.xlu0 %2070
        %2072 = vrot.lane.b32.xlu0 %v1872, 126
        %v2073 = vpop.permute.xlu0 %2072
        %2074 = vrot.lane.b32.xlu0 %v1867, 126
        %v2075 = vpop.permute.xlu0 %2074
        %2076 = vrot.lane.b32.xlu0 %v1869, 126
        %v2077 = vpop.permute.xlu0 %2076
        %2078 = vrot.lane.b32.xlu0 %v1871, 126
        %v2079 = vpop.permute.xlu0 %2078
        %2080 = vrot.lane.b32.xlu0 %v1873, 126
        %v2081 = vpop.permute.xlu0 %2080
        %v2082 = vsel %vm761, %v2067, %v2075
        %v2083 = vsel %vm761, %v2069, %v2077
        %v2084 = vsel %vm761, %v2071, %v2079
        %v2085 = vsel %vm761, %v2073, %v2081
        %v2086 = vsel %vm761, %v2075, %v2067
        %v2087 = vsel %vm761, %v2077, %v2069
        %v2088 = vsel %vm761, %v2079, %v2071
        %v2089 = vsel %vm761, %v2081, %v2073
        %s2090 = scalar_lea.vmem [#allocation2], 70
        %v2091 = vld [vmem:[%s2090] ss:$8 sm:$0x3]
        %v2093 = vlaneseq
        %v2094 = vshrl.u32 %v2093, 7
        %v2095 = vsub.s32 0, %v2094
        %v2096 = vrot.slane %v2091, %v2095
        %v2097 = vlaneseq
        %v2098 = vshrl.u32 %v2097, 7
        %v2099 = vsub.s32 1, %v2098
        %v2100 = vrot.slane %v2091, %v2099
        %v2103 = vmul.f32 %v2082, %v2096
        %v2104 = vmul.f32 %v2086, %v2100
        %v2105 = vmul.f32 %v2083, %v2096
        %v2106 = vmul.f32 %v2087, %v2100
        %v2107 = vmul.f32 %v2084, %v2096
        %v2108 = vmul.f32 %v2088, %v2100
        %v2109 = vmul.f32 %v2085, %v2096
        %v2110 = vmul.f32 %v2089, %v2100
        %2111 = vrot.lane.b32.xlu0 %v1866, 98
        %v2112 = vpop.permute.xlu0 %2111
        %2113 = vrot.lane.b32.xlu0 %v1868, 98
        %v2114 = vpop.permute.xlu0 %2113
        %2115 = vrot.lane.b32.xlu0 %v1870, 98
        %v2116 = vpop.permute.xlu0 %2115
        %2117 = vrot.lane.b32.xlu0 %v1872, 98
        %v2118 = vpop.permute.xlu0 %2117
        %2119 = vrot.lane.b32.xlu0 %v1867, 98
        %v2120 = vpop.permute.xlu0 %2119
        %2121 = vrot.lane.b32.xlu0 %v1869, 98
        %v2122 = vpop.permute.xlu0 %2121
        %2123 = vrot.lane.b32.xlu0 %v1871, 98
        %v2124 = vpop.permute.xlu0 %2123
        %2125 = vrot.lane.b32.xlu0 %v1873, 98
        %v2126 = vpop.permute.xlu0 %2125
        %v2127 = vsel %vm893, %v2112, %v2120
        %v2128 = vsel %vm893, %v2114, %v2122
        %v2129 = vsel %vm893, %v2116, %v2124
        %v2130 = vsel %vm893, %v2118, %v2126
        %v2131 = vsel %vm893, %v2120, %v2112
        %v2132 = vsel %vm893, %v2122, %v2114
        %v2133 = vsel %vm893, %v2124, %v2116
        %v2134 = vsel %vm893, %v2126, %v2118
        %s2135 = scalar_lea.vmem [#allocation2], 71
        %v2136 = vld [vmem:[%s2135] ss:$8 sm:$0x3]
        %v2138 = vlaneseq
        %v2139 = vshrl.u32 %v2138, 7
        %v2140 = vsub.s32 0, %v2139
        %v2141 = vrot.slane %v2136, %v2140
        %v2142 = vlaneseq
        %v2143 = vshrl.u32 %v2142, 7
        %v2144 = vsub.s32 1, %v2143
        %v2145 = vrot.slane %v2136, %v2144
        %v2148 = vmul.f32 %v2127, %v2141
        %v2149 = vmul.f32 %v2131, %v2145
        %v2150 = vmul.f32 %v2128, %v2141
        %v2151 = vmul.f32 %v2132, %v2145
        %v2152 = vmul.f32 %v2129, %v2141
        %v2153 = vmul.f32 %v2133, %v2145
        %v2154 = vmul.f32 %v2130, %v2141
        %v2155 = vmul.f32 %v2134, %v2145
        %2156 = vrot.lane.b32.xlu0 %v1866, 96
        %v2157 = vpop.permute.xlu0 %2156
        %2158 = vrot.lane.b32.xlu0 %v1868, 96
        %v2159 = vpop.permute.xlu0 %2158
        %2160 = vrot.lane.b32.xlu0 %v1870, 96
        %v2161 = vpop.permute.xlu0 %2160
        %2162 = vrot.lane.b32.xlu0 %v1872, 96
        %v2163 = vpop.permute.xlu0 %2162
        %2164 = vrot.lane.b32.xlu0 %v1867, 96
        %v2165 = vpop.permute.xlu0 %2164
        %2166 = vrot.lane.b32.xlu0 %v1869, 96
        %v2167 = vpop.permute.xlu0 %2166
        %2168 = vrot.lane.b32.xlu0 %v1871, 96
        %v2169 = vpop.permute.xlu0 %2168
        %2170 = vrot.lane.b32.xlu0 %v1873, 96
        %v2171 = vpop.permute.xlu0 %2170
        %v2172 = vsel %vm937, %v2157, %v2165
        %v2173 = vsel %vm937, %v2159, %v2167
        %v2174 = vsel %vm937, %v2161, %v2169
        %v2175 = vsel %vm937, %v2163, %v2171
        %v2176 = vsel %vm937, %v2165, %v2157
        %v2177 = vsel %vm937, %v2167, %v2159
        %v2178 = vsel %vm937, %v2169, %v2161
        %v2179 = vsel %vm937, %v2171, %v2163
        %s2180 = scalar_lea.vmem [#allocation2], 80
        %v2181 = vld [vmem:[%s2180] ss:$8 sm:$0x3]
        %v2183 = vlaneseq
        %v2184 = vshrl.u32 %v2183, 7
        %v2185 = vsub.s32 0, %v2184
        %v2186 = vrot.slane %v2181, %v2185
        %v2187 = vlaneseq
        %v2188 = vshrl.u32 %v2187, 7
        %v2189 = vsub.s32 1, %v2188
        %v2190 = vrot.slane %v2181, %v2189
        %v2193 = vmul.f32 %v2172, %v2186
        %v2194 = vmul.f32 %v2176, %v2190
        %v2195 = vmul.f32 %v2173, %v2186
        %v2196 = vmul.f32 %v2177, %v2190
        %v2197 = vmul.f32 %v2174, %v2186
        %v2198 = vmul.f32 %v2178, %v2190
        %v2199 = vmul.f32 %v2175, %v2186
        %v2200 = vmul.f32 %v2179, %v2190
        %2201 = vrot.lane.b32.xlu0 %v1866, 94
        %v2202 = vpop.permute.xlu0 %2201
        %2203 = vrot.lane.b32.xlu0 %v1868, 94
        %v2204 = vpop.permute.xlu0 %2203
        %2205 = vrot.lane.b32.xlu0 %v1870, 94
        %v2206 = vpop.permute.xlu0 %2205
        %2207 = vrot.lane.b32.xlu0 %v1872, 94
        %v2208 = vpop.permute.xlu0 %2207
        %2209 = vrot.lane.b32.xlu0 %v1867, 94
        %v2210 = vpop.permute.xlu0 %2209
        %2211 = vrot.lane.b32.xlu0 %v1869, 94
        %v2212 = vpop.permute.xlu0 %2211
        %2213 = vrot.lane.b32.xlu0 %v1871, 94
        %v2214 = vpop.permute.xlu0 %2213
        %2215 = vrot.lane.b32.xlu0 %v1873, 94
        %v2216 = vpop.permute.xlu0 %2215
        %v2217 = vsel %vm981, %v2202, %v2210
        %v2218 = vsel %vm981, %v2204, %v2212
        %v2219 = vsel %vm981, %v2206, %v2214
        %v2220 = vsel %vm981, %v2208, %v2216
        %v2221 = vsel %vm981, %v2210, %v2202
        %v2222 = vsel %vm981, %v2212, %v2204
        %v2223 = vsel %vm981, %v2214, %v2206
        %v2224 = vsel %vm981, %v2216, %v2208
        %s2225 = scalar_lea.vmem [#allocation2], 81
        %v2226 = vld [vmem:[%s2225] ss:$8 sm:$0x3]
        %v2228 = vlaneseq
        %v2229 = vshrl.u32 %v2228, 7
        %v2230 = vsub.s32 0, %v2229
        %v2231 = vrot.slane %v2226, %v2230
        %v2232 = vlaneseq
        %v2233 = vshrl.u32 %v2232, 7
        %v2234 = vsub.s32 1, %v2233
        %v2235 = vrot.slane %v2226, %v2234
        %v2238 = vmul.f32 %v2217, %v2231
        %v2239 = vmul.f32 %v2221, %v2235
        %v2240 = vmul.f32 %v2218, %v2231
        %v2241 = vmul.f32 %v2222, %v2235
        %v2242 = vmul.f32 %v2219, %v2231
        %v2243 = vmul.f32 %v2223, %v2235
        %v2244 = vmul.f32 %v2220, %v2231
        %v2245 = vmul.f32 %v2224, %v2235
        %2246 = vset.pattern.permute.xlu0 7
        %2247 = vperm.xlu0 %2246, %v999
        %v2248 = vpop.permute.xlu0 %2247
        %2250 = vset.pattern.permute.xlu0 7
        %2251 = vperm.xlu0 %2250, %v1000
        %v2252 = vpop.permute.xlu0 %2251
        %2254 = vset.pattern.permute.xlu0 7
        %2255 = vperm.xlu0 %2254, %v1001
        %v2256 = vpop.permute.xlu0 %2255
        %2258 = vset.pattern.permute.xlu0 7
        %2259 = vperm.xlu0 %2258, %v1002
        %v2260 = vpop.permute.xlu0 %2259
        %v2263 = vsel %vm1634, %v1876, 0
        %v2266 = vsel %vm1634, %v1879, 0
        %v2269 = vsel %vm1634, %v1882, 0
        %v2272 = vsel %vm1634, %v1885, 0
        %2274 = vmatprep.subr.mxu0 %v1924
        %2275 = vmatpush1.msra.mxu0 %v1923
        %2276 = vmatprep.subr.mxu0 %v1926
        %2277 = vmatpush1.msra.mxu0 %v1925
        %2278 = vmatprep.subr.mxu0 %v1928
        %2279 = vmatpush1.msra.mxu0 %v1927
        %2280 = vmatprep.subr.mxu0 %v1930
        %2281 = vmatpush1.msra.mxu0 %v1929
        %2282 = vmatprep.subr.mxu0 %v1969
        %2283 = vmatpush1.msra.mxu0 %v1968
        %2284 = vmatprep.subr.mxu0 %v1971
        %2285 = vmatpush1.msra.mxu0 %v1970
        %2286 = vmatprep.subr.mxu0 %v1973
        %2287 = vmatpush1.msra.mxu0 %v1972
        %2288 = vmatprep.subr.mxu0 %v1975
        %2289 = vmatpush1.msra.mxu0 %v1974
        %2290 = vmatprep.subr.mxu0 %v2014
        %2291 = vmatpush1.msra.mxu0 %v2013
        %2292 = vmatprep.subr.mxu0 %v2016
        %2293 = vmatpush1.msra.mxu0 %v2015
        %2294 = vmatprep.subr.mxu0 %v2018
        %2295 = vmatpush1.msra.mxu0 %v2017
        %2296 = vmatprep.subr.mxu0 %v2020
        %2297 = vmatpush1.msra.mxu0 %v2019
        %2298 = vmatprep.subr.mxu0 %v2059
        %2299 = vmatpush1.msra.mxu0 %v2058
        %2300 = vmatprep.subr.mxu0 %v2061
        %2301 = vmatpush1.msra.mxu0 %v2060
        %2302 = vmatprep.subr.mxu0 %v2063
        %2303 = vmatpush1.msra.mxu0 %v2062
        %2304 = vmatprep.subr.mxu0 %v2065
        %2305 = vmatpush1.msra.mxu0 %v2064
        %2306 = vmatprep.subr.mxu0 %v1867
        %2307 = vmatpush1.msra.mxu0 %v1866
        %2308 = vmatprep.subr.mxu0 %v1869
        %2309 = vmatpush1.msra.mxu0 %v1868
        %2310 = vmatprep.subr.mxu0 %v1871
        %2311 = vmatpush1.msra.mxu0 %v1870
        %2312 = vmatprep.subr.mxu0 %v1873
        %2313 = vmatpush1.msra.mxu0 %v1872
        %2314 = vmatprep.subr.mxu0 %v2104
        %2315 = vmatpush1.msra.mxu0 %v2103
        %2316 = vmatprep.subr.mxu0 %v2106
        %2317 = vmatpush1.msra.mxu0 %v2105
        %2318 = vmatprep.subr.mxu0 %v2108
        %2319 = vmatpush1.msra.mxu0 %v2107
        %2320 = vmatprep.subr.mxu0 %v2110
        %2321 = vmatpush1.msra.mxu0 %v2109
        %2322 = vmatprep.subr.mxu0 %v2149
        %2323 = vmatpush1.msra.mxu0 %v2148
        %2324 = vmatprep.subr.mxu0 %v2151
        %2325 = vmatpush1.msra.mxu0 %v2150
        %2326 = vmatprep.subr.mxu0 %v2153
        %2327 = vmatpush1.msra.mxu0 %v2152
        %2328 = vmatprep.subr.mxu0 %v2155
        %2329 = vmatpush1.msra.mxu0 %v2154
        %2330 = vmatprep.subr.mxu0 %v2194
        %2331 = vmatpush1.msra.mxu0 %v2193
        %2332 = vmatprep.subr.mxu0 %v2196
        %2333 = vmatpush1.msra.mxu0 %v2195
        %2334 = vmatprep.subr.mxu0 %v2198
        %2335 = vmatpush1.msra.mxu0 %v2197
        %2336 = vmatprep.subr.mxu0 %v2200
        %2337 = vmatpush1.msra.mxu0 %v2199
        %2338 = vmatprep.mubr.f32.mxu0 %v1875
        %2339 = vmatmul.mubr.f32.gmra.mrb[0].mxu0 %v1874
        %v2340 = vpop.f32.mrb[0].mxu0
        %v2341 = vadd.f32 %v2248, %v2340
        %v2342 = vpop.f32.mrb[0].mxu0
        %v2343 = vadd.f32 %v2248, %v2342
        %2344 = vmatprep.mubr.f32.mxu0 %v1878
        %2345 = vmatmul.mubr.f32.gmra.mrb[0].mxu0 %v1877
        %v2346 = vpop.f32.mrb[0].mxu0
        %v2347 = vadd.f32 %v2252, %v2346
        %v2348 = vpop.f32.mrb[0].mxu0
        %v2349 = vadd.f32 %v2252, %v2348
        %2350 = vmatprep.mubr.f32.mxu0 %v1881
        %2351 = vmatmul.mubr.f32.gmra.mrb[0].mxu0 %v1880
        %v2352 = vpop.f32.mrb[0].mxu0
        %v2353 = vadd.f32 %v2256, %v2352
        %v2354 = vpop.f32.mrb[0].mxu0
        %v2355 = vadd.f32 %v2256, %v2354
        %2356 = vmatprep.mubr.f32.mxu0 %v1884
        %2357 = vmatmul.mubr.f32.gmra.mrb[0].mxu0 %v1883
        %v2358 = vpop.f32.mrb[0].mxu0
        %v2359 = vadd.f32 %v2260, %v2358
        %v2360 = vpop.f32.mrb[0].mxu0
        %v2361 = vadd.f32 %v2260, %v2360
        %2362 = vdwg.mxu0
        %2363 = vmatprep.subr.mxu0 %v2239
        %2364 = vmatpush1.msra.mxu0 %v2238
        %2365 = vmatprep.subr.mxu0 %v2241
        %2366 = vmatpush1.msra.mxu0 %v2240
        %2367 = vmatprep.subr.mxu0 %v2243
        %2368 = vmatpush1.msra.mxu0 %v2242
        %2369 = vmatprep.subr.mxu0 %v2245
        %2370 = vmatpush1.msra.mxu0 %v2244
        %2371 = vmatprep.subr.mxu0 0.0
        %2372 = vmatpush1.msra.mxu0 0.0
        %2373 = vmatprep.subr.mxu0 0.0
        %2374 = vmatpush1.msra.mxu0 0.0
        %2375 = vmatprep.subr.mxu0 0.0
        %2376 = vmatpush1.msra.mxu0 0.0
        %2377 = vmatprep.subr.mxu0 0.0
        %2378 = vmatpush1.msra.mxu0 0.0
        %2379 = vmatprep.subr.mxu0 0.0
        %2380 = vmatpush1.msra.mxu0 0.0
        %2381 = vmatprep.subr.mxu0 0.0
        %2382 = vmatpush1.msra.mxu0 0.0
        %2383 = vmatprep.subr.mxu0 0.0
        %2384 = vmatpush1.msra.mxu0 0.0
        %2385 = vmatprep.subr.mxu0 0.0
        %2386 = vmatpush1.msra.mxu0 0.0
        %2387 = vmatprep.subr.mxu0 0.0
        %2388 = vmatpush1.msra.mxu0 0.0
        %2389 = vmatprep.subr.mxu0 0.0
        %2390 = vmatpush1.msra.mxu0 0.0
        %2391 = vmatprep.subr.mxu0 0.0
        %2392 = vmatpush1.msra.mxu0 0.0
        %2393 = vmatprep.subr.mxu0 0.0
        %2394 = vmatpush1.msra.mxu0 0.0
        %2395 = vmatprep.subr.mxu0 0.0
        %2396 = vmatpush1.msra.mxu0 0.0
        %2397 = vmatprep.subr.mxu0 0.0
        %2398 = vmatpush1.msra.mxu0 0.0
        %2399 = vmatprep.subr.mxu0 0.0
        %2400 = vmatpush1.msra.mxu0 0.0
        %2401 = vmatprep.subr.mxu0 0.0
        %2402 = vmatpush1.msra.mxu0 0.0
        %2403 = vmatprep.subr.mxu0 0.0
        %2404 = vmatpush1.msra.mxu0 0.0
        %2405 = vmatprep.subr.mxu0 0.0
        %2406 = vmatpush1.msra.mxu0 0.0
        %2407 = vmatprep.subr.mxu0 0.0
        %2408 = vmatpush1.msra.mxu0 0.0
        %2409 = vmatprep.subr.mxu0 0.0
        %2410 = vmatpush1.msra.mxu0 0.0
        %2411 = vmatprep.subr.mxu0 0.0
        %2412 = vmatpush1.msra.mxu0 0.0
        %2413 = vmatprep.subr.mxu0 0.0
        %2414 = vmatpush1.msra.mxu0 0.0
        %2415 = vmatprep.subr.mxu0 0.0
        %2416 = vmatpush1.msra.mxu0 0.0
        %2417 = vmatprep.subr.mxu0 0.0
        %2418 = vmatpush1.msra.mxu0 0.0
        %2419 = vmatprep.subr.mxu0 0.0
        %2420 = vmatpush1.msra.mxu0 0.0
        %2421 = vmatprep.subr.mxu0 0.0
        %2422 = vmatpush1.msra.mxu0 0.0
        %2423 = vmatprep.subr.mxu0 0.0
        %2424 = vmatpush1.msra.mxu0 0.0
        %2425 = vmatprep.subr.mxu0 0.0
        %2426 = vmatpush1.msra.mxu0 0.0
        %2427 = vmatprep.mubr.f32.mxu0 0.0
        %2428 = vmatmul.mubr.f32.gmra.mrb[0].mxu0 %v2263
        %v2429 = vpop.f32.mrb[0].mxu0
        %v2430 = vadd.f32 %v2341, %v2429
        %v2431 = vpop.f32.mrb[0].mxu0
        %v2432 = vadd.f32 %v2343, %v2431
        %2433 = vmatprep.mubr.f32.mxu0 0.0
        %2434 = vmatmul.mubr.f32.gmra.mrb[0].mxu0 %v2266
        %v2435 = vpop.f32.mrb[0].mxu0
        %v2436 = vadd.f32 %v2347, %v2435
        %v2437 = vpop.f32.mrb[0].mxu0
        %v2438 = vadd.f32 %v2349, %v2437
        %2439 = vmatprep.mubr.f32.mxu0 0.0
        %2440 = vmatmul.mubr.f32.gmra.mrb[0].mxu0 %v2269
        %v2441 = vpop.f32.mrb[0].mxu0
        %v2442 = vadd.f32 %v2353, %v2441
        %v2443 = vpop.f32.mrb[0].mxu0
        %v2444 = vadd.f32 %v2355, %v2443
        %2445 = vmatprep.mubr.f32.mxu0 0.0
        %2446 = vmatmul.mubr.f32.gmra.mrb[0].mxu0 %v2272
        %v2447 = vpop.f32.mrb[0].mxu0
        %v2448 = vadd.f32 %v2359, %v2447
        %v2449 = vpop.f32.mrb[0].mxu0
        %v2450 = vadd.f32 %v2361, %v2449
        %2451 = vdwg.mxu0
        %v2452 = vmax.f32 %v2430, 0.0
        %v2453 = vmax.f32 %v2432, 0.0
        %v2454 = vmax.f32 %v2436, 0.0
        %v2455 = vmax.f32 %v2438, 0.0
        %v2456 = vmax.f32 %v2442, 0.0
        %v2457 = vmax.f32 %v2444, 0.0
        %v2458 = vmax.f32 %v2448, 0.0
        %v2459 = vmax.f32 %v2450, 0.0
        %s2460 = scalar_lea.vmem [#allocation8], 64
        %v2461 = vld [vmem:[%s2460] sm:$0xff]
        %v2462 = vld [vmem:[%s2460 + $0x8] sm:$0xff]
        %v2463 = vld [vmem:[%s2460 + $0x10] sm:$0xff]
        %v2464 = vld [vmem:[%s2460 + $0x18] sm:$0xff]
        %2465 = vset.pattern.permute.xlu0 4
        %2466 = vperm.xlu0 %2465, %v999
        %v2467 = vpop.permute.xlu0 %2466
        %2469 = vset.pattern.permute.xlu0 4
        %2470 = vperm.xlu0 %2469, %v1000
        %v2471 = vpop.permute.xlu0 %2470
        %2473 = vset.pattern.permute.xlu0 4
        %2474 = vperm.xlu0 %2473, %v1001
        %v2475 = vpop.permute.xlu0 %2474
        %2477 = vset.pattern.permute.xlu0 4
        %2478 = vperm.xlu0 %2477, %v1002
        %v2479 = vpop.permute.xlu0 %2478
        %v2482 = vsel %vm1634, %v2461, 0
        %v2485 = vsel %vm1634, %v2462, 0
        %v2488 = vsel %vm1634, %v2463, 0
        %v2491 = vsel %vm1634, %v2464, 0
        %2493 = vmatprep.subr.mxu0 %v2453
        %2494 = vmatpush1.msra.mxu0 %v2452
        %2495 = vmatprep.subr.mxu0 %v2455
        %2496 = vmatpush1.msra.mxu0 %v2454
        %2497 = vmatprep.subr.mxu0 %v2457
        %2498 = vmatpush1.msra.mxu0 %v2456
        %2499 = vmatprep.subr.mxu0 %v2459
        %2500 = vmatpush1.msra.mxu0 %v2458
        %2501 = vmatprep.subr.mxu0 0.0
        %2502 = vmatpush1.msra.mxu0 0.0
        %2503 = vmatprep.subr.mxu0 0.0
        %2504 = vmatpush1.msra.mxu0 0.0
        %2505 = vmatprep.subr.mxu0 0.0
        %2506 = vmatpush1.msra.mxu0 0.0
        %2507 = vmatprep.subr.mxu0 0.0
        %2508 = vmatpush1.msra.mxu0 0.0
        %2509 = vmatprep.subr.mxu0 0.0
        %2510 = vmatpush1.msra.mxu0 0.0
        %2511 = vmatprep.subr.mxu0 0.0
        %2512 = vmatpush1.msra.mxu0 0.0
        %2513 = vmatprep.subr.mxu0 0.0
        %2514 = vmatpush1.msra.mxu0 0.0
        %2515 = vmatprep.subr.mxu0 0.0
        %2516 = vmatpush1.msra.mxu0 0.0
        %2517 = vmatprep.subr.mxu0 0.0
        %2518 = vmatpush1.msra.mxu0 0.0
        %2519 = vmatprep.subr.mxu0 0.0
        %2520 = vmatpush1.msra.mxu0 0.0
        %2521 = vmatprep.subr.mxu0 0.0
        %2522 = vmatpush1.msra.mxu0 0.0
        %2523 = vmatprep.subr.mxu0 0.0
        %2524 = vmatpush1.msra.mxu0 0.0
        %2525 = vmatprep.subr.mxu0 0.0
        %2526 = vmatpush1.msra.mxu0 0.0
        %2527 = vmatprep.subr.mxu0 0.0
        %2528 = vmatpush1.msra.mxu0 0.0
        %2529 = vmatprep.subr.mxu0 0.0
        %2530 = vmatpush1.msra.mxu0 0.0
        %2531 = vmatprep.subr.mxu0 0.0
        %2532 = vmatpush1.msra.mxu0 0.0
        %2533 = vmatprep.subr.mxu0 0.0
        %2534 = vmatpush1.msra.mxu0 0.0
        %2535 = vmatprep.subr.mxu0 0.0
        %2536 = vmatpush1.msra.mxu0 0.0
        %2537 = vmatprep.subr.mxu0 0.0
        %2538 = vmatpush1.msra.mxu0 0.0
        %2539 = vmatprep.subr.mxu0 0.0
        %2540 = vmatpush1.msra.mxu0 0.0
        %2541 = vmatprep.subr.mxu0 0.0
        %2542 = vmatpush1.msra.mxu0 0.0
        %2543 = vmatprep.subr.mxu0 0.0
        %2544 = vmatpush1.msra.mxu0 0.0
        %2545 = vmatprep.subr.mxu0 0.0
        %2546 = vmatpush1.msra.mxu0 0.0
        %2547 = vmatprep.subr.mxu0 0.0
        %2548 = vmatpush1.msra.mxu0 0.0
        %2549 = vmatprep.subr.mxu0 0.0
        %2550 = vmatpush1.msra.mxu0 0.0
        %2551 = vmatprep.subr.mxu0 0.0
        %2552 = vmatpush1.msra.mxu0 0.0
        %2553 = vmatprep.subr.mxu0 0.0
        %2554 = vmatpush1.msra.mxu0 0.0
        %2555 = vmatprep.subr.mxu0 0.0
        %2556 = vmatpush1.msra.mxu0 0.0
        %2557 = vmatprep.mubr.f32.mxu0 0.0
        %2558 = vmatmul.mubr.f32.gmra.mrb[0].mxu0 %v2482
        %v2559 = vpop.f32.mrb[0].mxu0
        %v2560 = vadd.f32 %v2467, %v2559
        %v2561 = vpop.f32.mrb[0].mxu0
        %v2562 = vadd.f32 %v2467, %v2561
        %2563 = vmatprep.mubr.f32.mxu0 0.0
        %2564 = vmatmul.mubr.f32.gmra.mrb[0].mxu0 %v2485
        %v2565 = vpop.f32.mrb[0].mxu0
        %v2566 = vadd.f32 %v2471, %v2565
        %v2567 = vpop.f32.mrb[0].mxu0
        %v2568 = vadd.f32 %v2471, %v2567
        %2569 = vmatprep.mubr.f32.mxu0 0.0
        %2570 = vmatmul.mubr.f32.gmra.mrb[0].mxu0 %v2488
        %v2571 = vpop.f32.mrb[0].mxu0
        %v2572 = vadd.f32 %v2475, %v2571
        %v2573 = vpop.f32.mrb[0].mxu0
        %v2574 = vadd.f32 %v2475, %v2573
        %2575 = vmatprep.mubr.f32.mxu0 0.0
        %2576 = vmatmul.mubr.f32.gmra.mrb[0].mxu0 %v2491
        %v2577 = vpop.f32.mrb[0].mxu0
        %v2578 = vadd.f32 %v2479, %v2577
        %v2579 = vpop.f32.mrb[0].mxu0
        %v2580 = vadd.f32 %v2479, %v2579
        %2581 = vdwg.mxu0
        %v2582 = vadd.f32 %v1866, %v2560
        %v2583 = vadd.f32 %v1867, %v2562
        %v2584 = vadd.f32 %v1868, %v2566
        %v2585 = vadd.f32 %v1869, %v2568
        %v2586 = vadd.f32 %v1870, %v2572
        %v2587 = vadd.f32 %v1871, %v2574
        %v2588 = vadd.f32 %v1872, %v2578
        %v2589 = vadd.f32 %v1873, %v2580
        %s2590 = scalar_lea.vmem [#allocation10], 96
        %v2591 = vld [vmem:[%s2590] sm:$0xff]
        %v2592 = vld [vmem:[%s2590 + $0x8] sm:$0xff]
        %v2593 = vld [vmem:[%s2590 + $0x10] sm:$0xff]
        %v2594 = vld [vmem:[%s2590 + $0x18] sm:$0xff]
        %v2595 = vld [vmem:[%s2590 + $0x20] sm:$0xff]
        %v2596 = vld [vmem:[%s2590 + $0x28] sm:$0xff]
        %v2597 = vld [vmem:[%s2590 + $0x30] sm:$0xff]
        %v2598 = vld [vmem:[%s2590 + $0x38] sm:$0xff]
        %v2599 = vld [vmem:[%s2590 + $0x40] sm:$0xff]
        %v2600 = vld [vmem:[%s2590 + $0x48] sm:$0xff]
        %v2601 = vld [vmem:[%s2590 + $0x50] sm:$0xff]
        %v2602 = vld [vmem:[%s2590 + $0x58] sm:$0xff]
        %2603 = vrot.lane.b32.xlu0 %v2582, 34
        %v2604 = vpop.permute.xlu0 %2603
        %2605 = vrot.lane.b32.xlu0 %v2584, 34
        %v2606 = vpop.permute.xlu0 %2605
        %2607 = vrot.lane.b32.xlu0 %v2586, 34
        %v2608 = vpop.permute.xlu0 %2607
        %2609 = vrot.lane.b32.xlu0 %v2588, 34
        %v2610 = vpop.permute.xlu0 %2609
        %2611 = vrot.lane.b32.xlu0 %v2583, 34
        %v2612 = vpop.permute.xlu0 %2611
        %2613 = vrot.lane.b32.xlu0 %v2585, 34
        %v2614 = vpop.permute.xlu0 %2613
        %2615 = vrot.lane.b32.xlu0 %v2587, 34
        %v2616 = vpop.permute.xlu0 %2615
        %2617 = vrot.lane.b32.xlu0 %v2589, 34
        %v2618 = vpop.permute.xlu0 %2617
        %v2619 = vsel %vm476, %v2604, %v2612
        %v2620 = vsel %vm476, %v2606, %v2614
        %v2621 = vsel %vm476, %v2608, %v2616
        %v2622 = vsel %vm476, %v2610, %v2618
        %v2623 = vsel %vm476, %v2612, %v2604
        %v2624 = vsel %vm476, %v2614, %v2606
        %v2625 = vsel %vm476, %v2616, %v2608
        %v2626 = vsel %vm476, %v2618, %v2610
        %v2627 = vmul.f32 %v2623, %v1916
        %v2628 = vmul.f32 %v2619, %v1920
        %v2629 = vmul.f32 %v2624, %v1916
        %v2630 = vmul.f32 %v2620, %v1920
        %v2631 = vmul.f32 %v2625, %v1916
        %v2632 = vmul.f32 %v2621, %v1920
        %v2633 = vmul.f32 %v2626, %v1916
        %v2634 = vmul.f32 %v2622, %v1920
        %2635 = vrot.lane.b32.xlu0 %v2582, 32
        %v2636 = vpop.permute.xlu0 %2635
        %2637 = vrot.lane.b32.xlu0 %v2584, 32
        %v2638 = vpop.permute.xlu0 %2637
        %2639 = vrot.lane.b32.xlu0 %v2586, 32
        %v2640 = vpop.permute.xlu0 %2639
        %2641 = vrot.lane.b32.xlu0 %v2588, 32
        %v2642 = vpop.permute.xlu0 %2641
        %2643 = vrot.lane.b32.xlu0 %v2583, 32
        %v2644 = vpop.permute.xlu0 %2643
        %2645 = vrot.lane.b32.xlu0 %v2585, 32
        %v2646 = vpop.permute.xlu0 %2645
        %2647 = vrot.lane.b32.xlu0 %v2587, 32
        %v2648 = vpop.permute.xlu0 %2647
        %2649 = vrot.lane.b32.xlu0 %v2589, 32
        %v2650 = vpop.permute.xlu0 %2649
        %v2651 = vsel %vm519, %v2636, %v2644
        %v2652 = vsel %vm519, %v2638, %v2646
        %v2653 = vsel %vm519, %v2640, %v2648
        %v2654 = vsel %vm519, %v2642, %v2650
        %v2655 = vsel %vm519, %v2644, %v2636
        %v2656 = vsel %vm519, %v2646, %v2638
        %v2657 = vsel %vm519, %v2648, %v2640
        %v2658 = vsel %vm519, %v2650, %v2642
        %v2659 = vmul.f32 %v2655, %v1961
        %v2660 = vmul.f32 %v2651, %v1965
        %v2661 = vmul.f32 %v2656, %v1961
        %v2662 = vmul.f32 %v2652, %v1965
        %v2663 = vmul.f32 %v2657, %v1961
        %v2664 = vmul.f32 %v2653, %v1965
        %v2665 = vmul.f32 %v2658, %v1961
        %v2666 = vmul.f32 %v2654, %v1965
        %2667 = vrot.lane.b32.xlu0 %v2582, 30
        %v2668 = vpop.permute.xlu0 %2667
        %2669 = vrot.lane.b32.xlu0 %v2584, 30
        %v2670 = vpop.permute.xlu0 %2669
        %2671 = vrot.lane.b32.xlu0 %v2586, 30
        %v2672 = vpop.permute.xlu0 %2671
        %2673 = vrot.lane.b32.xlu0 %v2588, 30
        %v2674 = vpop.permute.xlu0 %2673
        %2675 = vrot.lane.b32.xlu0 %v2583, 30
        %v2676 = vpop.permute.xlu0 %2675
        %2677 = vrot.lane.b32.xlu0 %v2585, 30
        %v2678 = vpop.permute.xlu0 %2677
        %2679 = vrot.lane.b32.xlu0 %v2587, 30
        %v2680 = vpop.permute.xlu0 %2679
        %2681 = vrot.lane.b32.xlu0 %v2589, 30
        %v2682 = vpop.permute.xlu0 %2681
        %v2683 = vsel %vm563, %v2668, %v2676
        %v2684 = vsel %vm563, %v2670, %v2678
        %v2685 = vsel %vm563, %v2672, %v2680
        %v2686 = vsel %vm563, %v2674, %v2682
        %v2687 = vsel %vm563, %v2676, %v2668
        %v2688 = vsel %vm563, %v2678, %v2670
        %v2689 = vsel %vm563, %v2680, %v2672
        %v2690 = vsel %vm563, %v2682, %v2674
        %v2691 = vmul.f32 %v2687, %v2006
        %v2692 = vmul.f32 %v2683, %v2010
        %v2693 = vmul.f32 %v2688, %v2006
        %v2694 = vmul.f32 %v2684, %v2010
        %v2695 = vmul.f32 %v2689, %v2006
        %v2696 = vmul.f32 %v2685, %v2010
        %v2697 = vmul.f32 %v2690, %v2006
        %v2698 = vmul.f32 %v2686, %v2010
        %2699 = vrot.lane.b32.xlu0 %v2582, 2
        %v2700 = vpop.permute.xlu0 %2699
        %2701 = vrot.lane.b32.xlu0 %v2584, 2
        %v2702 = vpop.permute.xlu0 %2701
        %2703 = vrot.lane.b32.xlu0 %v2586, 2
        %v2704 = vpop.permute.xlu0 %2703
        %2705 = vrot.lane.b32.xlu0 %v2588, 2
        %v2706 = vpop.permute.xlu0 %2705
        %2707 = vrot.lane.b32.xlu0 %v2583, 2
        %v2708 = vpop.permute.xlu0 %2707
        %2709 = vrot.lane.b32.xlu0 %v2585, 2
        %v2710 = vpop.permute.xlu0 %2709
        %2711 = vrot.lane.b32.xlu0 %v2587, 2
        %v2712 = vpop.permute.xlu0 %2711
        %2713 = vrot.lane.b32.xlu0 %v2589, 2
        %v2714 = vpop.permute.xlu0 %2713
        %v2715 = vsel %vm695, %v2700, %v2708
        %v2716 = vsel %vm695, %v2702, %v2710
        %v2717 = vsel %vm695, %v2704, %v2712
        %v2718 = vsel %vm695, %v2706, %v2714
        %v2719 = vsel %vm695, %v2708, %v2700
        %v2720 = vsel %vm695, %v2710, %v2702
        %v2721 = vsel %vm695, %v2712, %v2704
        %v2722 = vsel %vm695, %v2714, %v2706
        %v2723 = vmul.f32 %v2719, %v2051
        %v2724 = vmul.f32 %v2715, %v2055
        %v2725 = vmul.f32 %v2720, %v2051
        %v2726 = vmul.f32 %v2716, %v2055
        %v2727 = vmul.f32 %v2721, %v2051
        %v2728 = vmul.f32 %v2717, %v2055
        %v2729 = vmul.f32 %v2722, %v2051
        %v2730 = vmul.f32 %v2718, %v2055
        %2731 = vrot.lane.b32.xlu0 %v2582, 126
        %v2732 = vpop.permute.xlu0 %2731
        %2733 = vrot.lane.b32.xlu0 %v2584, 126
        %v2734 = vpop.permute.xlu0 %2733
        %2735 = vrot.lane.b32.xlu0 %v2586, 126
        %v2736 = vpop.permute.xlu0 %2735
        %2737 = vrot.lane.b32.xlu0 %v2588, 126
        %v2738 = vpop.permute.xlu0 %2737
        %2739 = vrot.lane.b32.xlu0 %v2583, 126
        %v2740 = vpop.permute.xlu0 %2739
        %2741 = vrot.lane.b32.xlu0 %v2585, 126
        %v2742 = vpop.permute.xlu0 %2741
        %2743 = vrot.lane.b32.xlu0 %v2587, 126
        %v2744 = vpop.permute.xlu0 %2743
        %2745 = vrot.lane.b32.xlu0 %v2589, 126
        %v2746 = vpop.permute.xlu0 %2745
        %v2747 = vsel %vm761, %v2732, %v2740
        %v2748 = vsel %vm761, %v2734, %v2742
        %v2749 = vsel %vm761, %v2736, %v2744
        %v2750 = vsel %vm761, %v2738, %v2746
        %v2751 = vsel %vm761, %v2740, %v2732
        %v2752 = vsel %vm761, %v2742, %v2734
        %v2753 = vsel %vm761, %v2744, %v2736
        %v2754 = vsel %vm761, %v2746, %v2738
        %v2755 = vmul.f32 %v2747, %v2096
        %v2756 = vmul.f32 %v2751, %v2100
        %v2757 = vmul.f32 %v2748, %v2096
        %v2758 = vmul.f32 %v2752, %v2100
        %v2759 = vmul.f32 %v2749, %v2096
        %v2760 = vmul.f32 %v2753, %v2100
        %v2761 = vmul.f32 %v2750, %v2096
        %v2762 = vmul.f32 %v2754, %v2100
        %2763 = vrot.lane.b32.xlu0 %v2582, 98
        %v2764 = vpop.permute.xlu0 %2763
        %2765 = vrot.lane.b32.xlu0 %v2584, 98
        %v2766 = vpop.permute.xlu0 %2765
        %2767 = vrot.lane.b32.xlu0 %v2586, 98
        %v2768 = vpop.permute.xlu0 %2767
        %2769 = vrot.lane.b32.xlu0 %v2588, 98
        %v2770 = vpop.permute.xlu0 %2769
        %2771 = vrot.lane.b32.xlu0 %v2583, 98
        %v2772 = vpop.permute.xlu0 %2771
        %2773 = vrot.lane.b32.xlu0 %v2585, 98
        %v2774 = vpop.permute.xlu0 %2773
        %2775 = vrot.lane.b32.xlu0 %v2587, 98
        %v2776 = vpop.permute.xlu0 %2775
        %2777 = vrot.lane.b32.xlu0 %v2589, 98
        %v2778 = vpop.permute.xlu0 %2777
        %v2779 = vsel %vm893, %v2764, %v2772
        %v2780 = vsel %vm893, %v2766, %v2774
        %v2781 = vsel %vm893, %v2768, %v2776
        %v2782 = vsel %vm893, %v2770, %v2778
        %v2783 = vsel %vm893, %v2772, %v2764
        %v2784 = vsel %vm893, %v2774, %v2766
        %v2785 = vsel %vm893, %v2776, %v2768
        %v2786 = vsel %vm893, %v2778, %v2770
        %v2787 = vmul.f32 %v2779, %v2141
        %v2788 = vmul.f32 %v2783, %v2145
        %v2789 = vmul.f32 %v2780, %v2141
        %v2790 = vmul.f32 %v2784, %v2145
        %v2791 = vmul.f32 %v2781, %v2141
        %v2792 = vmul.f32 %v2785, %v2145
        %v2793 = vmul.f32 %v2782, %v2141
        %v2794 = vmul.f32 %v2786, %v2145
        %2795 = vrot.lane.b32.xlu0 %v2582, 96
        %v2796 = vpop.permute.xlu0 %2795
        %2797 = vrot.lane.b32.xlu0 %v2584, 96
        %v2798 = vpop.permute.xlu0 %2797
        %2799 = vrot.lane.b32.xlu0 %v2586, 96
        %v2800 = vpop.permute.xlu0 %2799
        %2801 = vrot.lane.b32.xlu0 %v2588, 96
        %v2802 = vpop.permute.xlu0 %2801
        %2803 = vrot.lane.b32.xlu0 %v2583, 96
        %v2804 = vpop.permute.xlu0 %2803
        %2805 = vrot.lane.b32.xlu0 %v2585, 96
        %v2806 = vpop.permute.xlu0 %2805
        %2807 = vrot.lane.b32.xlu0 %v2587, 96
        %v2808 = vpop.permute.xlu0 %2807
        %2809 = vrot.lane.b32.xlu0 %v2589, 96
        %v2810 = vpop.permute.xlu0 %2809
        %v2811 = vsel %vm937, %v2796, %v2804
        %v2812 = vsel %vm937, %v2798, %v2806
        %v2813 = vsel %vm937, %v2800, %v2808
        %v2814 = vsel %vm937, %v2802, %v2810
        %v2815 = vsel %vm937, %v2804, %v2796
        %v2816 = vsel %vm937, %v2806, %v2798
        %v2817 = vsel %vm937, %v2808, %v2800
        %v2818 = vsel %vm937, %v2810, %v2802
        %v2819 = vmul.f32 %v2811, %v2186
        %v2820 = vmul.f32 %v2815, %v2190
        %v2821 = vmul.f32 %v2812, %v2186
        %v2822 = vmul.f32 %v2816, %v2190
        %v2823 = vmul.f32 %v2813, %v2186
        %v2824 = vmul.f32 %v2817, %v2190
        %v2825 = vmul.f32 %v2814, %v2186
        %v2826 = vmul.f32 %v2818, %v2190
        %2827 = vrot.lane.b32.xlu0 %v2582, 94
        %v2828 = vpop.permute.xlu0 %2827
        %2829 = vrot.lane.b32.xlu0 %v2584, 94
        %v2830 = vpop.permute.xlu0 %2829
        %2831 = vrot.lane.b32.xlu0 %v2586, 94
        %v2832 = vpop.permute.xlu0 %2831
        %2833 = vrot.lane.b32.xlu0 %v2588, 94
        %v2834 = vpop.permute.xlu0 %2833
        %2835 = vrot.lane.b32.xlu0 %v2583, 94
        %v2836 = vpop.permute.xlu0 %2835
        %2837 = vrot.lane.b32.xlu0 %v2585, 94
        %v2838 = vpop.permute.xlu0 %2837
        %2839 = vrot.lane.b32.xlu0 %v2587, 94
        %v2840 = vpop.permute.xlu0 %2839
        %2841 = vrot.lane.b32.xlu0 %v2589, 94
        %v2842 = vpop.permute.xlu0 %2841
        %v2843 = vsel %vm981, %v2828, %v2836
        %v2844 = vsel %vm981, %v2830, %v2838
        %v2845 = vsel %vm981, %v2832, %v2840
        %v2846 = vsel %vm981, %v2834, %v2842
        %v2847 = vsel %vm981, %v2836, %v2828
        %v2848 = vsel %vm981, %v2838, %v2830
        %v2849 = vsel %vm981, %v2840, %v2832
        %v2850 = vsel %vm981, %v2842, %v2834
        %v2851 = vmul.f32 %v2843, %v2231
        %v2852 = vmul.f32 %v2847, %v2235
        %v2853 = vmul.f32 %v2844, %v2231
        %v2854 = vmul.f32 %v2848, %v2235
        %v2855 = vmul.f32 %v2845, %v2231
        %v2856 = vmul.f32 %v2849, %v2235
        %v2857 = vmul.f32 %v2846, %v2231
        %v2858 = vmul.f32 %v2850, %v2235
        %2859 = vset.pattern.permute.xlu0 8
        %2860 = vperm.xlu0 %2859, %v999
        %v2861 = vpop.permute.xlu0 %2860
        %2863 = vset.pattern.permute.xlu0 8
        %2864 = vperm.xlu0 %2863, %v1000
        %v2865 = vpop.permute.xlu0 %2864
        %2867 = vset.pattern.permute.xlu0 8
        %2868 = vperm.xlu0 %2867, %v1001
        %v2869 = vpop.permute.xlu0 %2868
        %2871 = vset.pattern.permute.xlu0 8
        %2872 = vperm.xlu0 %2871, %v1002
        %v2873 = vpop.permute.xlu0 %2872
        %v2876 = vsel %vm1634, %v2593, 0
        %v2879 = vsel %vm1634, %v2596, 0
        %v2882 = vsel %vm1634, %v2599, 0
        %v2885 = vsel %vm1634, %v2602, 0
        %2887 = vmatprep.subr.mxu0 %v2628
        %2888 = vmatpush1.msra.mxu0 %v2627
        %2889 = vmatprep.subr.mxu0 %v2630
        %2890 = vmatpush1.msra.mxu0 %v2629
        %2891 = vmatprep.subr.mxu0 %v2632
        %2892 = vmatpush1.msra.mxu0 %v2631
        %2893 = vmatprep.subr.mxu0 %v2634
        %2894 = vmatpush1.msra.mxu0 %v2633
        %2895 = vmatprep.subr.mxu0 %v2660
        %2896 = vmatpush1.msra.mxu0 %v2659
        %2897 = vmatprep.subr.mxu0 %v2662
        %2898 = vmatpush1.msra.mxu0 %v2661
        %2899 = vmatprep.subr.mxu0 %v2664
        %2900 = vmatpush1.msra.mxu0 %v2663
        %2901 = vmatprep.subr.mxu0 %v2666
        %2902 = vmatpush1.msra.mxu0 %v2665
        %2903 = vmatprep.subr.mxu0 %v2692
        %2904 = vmatpush1.msra.mxu0 %v2691
        %2905 = vmatprep.subr.mxu0 %v2694
        %2906 = vmatpush1.msra.mxu0 %v2693
        %2907 = vmatprep.subr.mxu0 %v2696
        %2908 = vmatpush1.msra.mxu0 %v2695
        %2909 = vmatprep.subr.mxu0 %v2698
        %2910 = vmatpush1.msra.mxu0 %v2697
        %2911 = vmatprep.subr.mxu0 %v2724
        %2912 = vmatpush1.msra.mxu0 %v2723
        %2913 = vmatprep.subr.mxu0 %v2726
        %2914 = vmatpush1.msra.mxu0 %v2725
        %2915 = vmatprep.subr.mxu0 %v2728
        %2916 = vmatpush1.msra.mxu0 %v2727
        %2917 = vmatprep.subr.mxu0 %v2730
        %2918 = vmatpush1.msra.mxu0 %v2729
        %2919 = vmatprep.subr.mxu0 %v2583
        %2920 = vmatpush1.msra.mxu0 %v2582
        %2921 = vmatprep.subr.mxu0 %v2585
        %2922 = vmatpush1.msra.mxu0 %v2584
        %2923 = vmatprep.subr.mxu0 %v2587
        %2924 = vmatpush1.msra.mxu0 %v2586
        %2925 = vmatprep.subr.mxu0 %v2589
        %2926 = vmatpush1.msra.mxu0 %v2588
        %2927 = vmatprep.subr.mxu0 %v2756
        %2928 = vmatpush1.msra.mxu0 %v2755
        %2929 = vmatprep.subr.mxu0 %v2758
        %2930 = vmatpush1.msra.mxu0 %v2757
        %2931 = vmatprep.subr.mxu0 %v2760
        %2932 = vmatpush1.msra.mxu0 %v2759
        %2933 = vmatprep.subr.mxu0 %v2762
        %2934 = vmatpush1.msra.mxu0 %v2761
        %2935 = vmatprep.subr.mxu0 %v2788
        %2936 = vmatpush1.msra.mxu0 %v2787
        %2937 = vmatprep.subr.mxu0 %v2790
        %2938 = vmatpush1.msra.mxu0 %v2789
        %2939 = vmatprep.subr.mxu0 %v2792
        %2940 = vmatpush1.msra.mxu0 %v2791
        %2941 = vmatprep.subr.mxu0 %v2794
        %2942 = vmatpush1.msra.mxu0 %v2793
        %2943 = vmatprep.subr.mxu0 %v2820
        %2944 = vmatpush1.msra.mxu0 %v2819
        %2945 = vmatprep.subr.mxu0 %v2822
        %2946 = vmatpush1.msra.mxu0 %v2821
        %2947 = vmatprep.subr.mxu0 %v2824
        %2948 = vmatpush1.msra.mxu0 %v2823
        %2949 = vmatprep.subr.mxu0 %v2826
        %2950 = vmatpush1.msra.mxu0 %v2825
        %2951 = vmatprep.mubr.f32.mxu0 %v2592
        %2952 = vmatmul.mubr.f32.gmra.mrb[0].mxu0 %v2591
        %v2953 = vpop.f32.mrb[0].mxu0
        %v2954 = vadd.f32 %v2861, %v2953
        %v2955 = vpop.f32.mrb[0].mxu0
        %v2956 = vadd.f32 %v2861, %v2955
        %2957 = vmatprep.mubr.f32.mxu0 %v2595
        %2958 = vmatmul.mubr.f32.gmra.mrb[0].mxu0 %v2594
        %v2959 = vpop.f32.mrb[0].mxu0
        %v2960 = vadd.f32 %v2865, %v2959
        %v2961 = vpop.f32.mrb[0].mxu0
        %v2962 = vadd.f32 %v2865, %v2961
        %2963 = vmatprep.mubr.f32.mxu0 %v2598
        %2964 = vmatmul.mubr.f32.gmra.mrb[0].mxu0 %v2597
        %v2965 = vpop.f32.mrb[0].mxu0
        %v2966 = vadd.f32 %v2869, %v2965
        %v2967 = vpop.f32.mrb[0].mxu0
        %v2968 = vadd.f32 %v2869, %v2967
        %2969 = vmatprep.mubr.f32.mxu0 %v2601
        %2970 = vmatmul.mubr.f32.gmra.mrb[0].mxu0 %v2600
        %v2971 = vpop.f32.mrb[0].mxu0
        %v2972 = vadd.f32 %v2873, %v2971
        %v2973 = vpop.f32.mrb[0].mxu0
        %v2974 = vadd.f32 %v2873, %v2973
        %2975 = vdwg.mxu0
        %2976 = vmatprep.subr.mxu0 %v2852
        %2977 = vmatpush1.msra.mxu0 %v2851
        %2978 = vmatprep.subr.mxu0 %v2854
        %2979 = vmatpush1.msra.mxu0 %v2853
        %2980 = vmatprep.subr.mxu0 %v2856
        %2981 = vmatpush1.msra.mxu0 %v2855
        %2982 = vmatprep.subr.mxu0 %v2858
        %2983 = vmatpush1.msra.mxu0 %v2857
        %2984 = vmatprep.subr.mxu0 0.0
        %2985 = vmatpush1.msra.mxu0 0.0
        %2986 = vmatprep.subr.mxu0 0.0
        %2987 = vmatpush1.msra.mxu0 0.0
        %2988 = vmatprep.subr.mxu0 0.0
        %2989 = vmatpush1.msra.mxu0 0.0
        %2990 = vmatprep.subr.mxu0 0.0
        %2991 = vmatpush1.msra.mxu0 0.0
        %2992 = vmatprep.subr.mxu0 0.0
        %2993 = vmatpush1.msra.mxu0 0.0
        %2994 = vmatprep.subr.mxu0 0.0
        %2995 = vmatpush1.msra.mxu0 0.0
        %2996 = vmatprep.subr.mxu0 0.0
        %2997 = vmatpush1.msra.mxu0 0.0
        %2998 = vmatprep.subr.mxu0 0.0
        %2999 = vmatpush1.msra.mxu0 0.0
        %3000 = vmatprep.subr.mxu0 0.0
        %3001 = vmatpush1.msra.mxu0 0.0
        %3002 = vmatprep.subr.mxu0 0.0
        %3003 = vmatpush1.msra.mxu0 0.0
        %3004 = vmatprep.subr.mxu0 0.0
        %3005 = vmatpush1.msra.mxu0 0.0
        %3006 = vmatprep.subr.mxu0 0.0
        %3007 = vmatpush1.msra.mxu0 0.0
        %3008 = vmatprep.subr.mxu0 0.0
        %3009 = vmatpush1.msra.mxu0 0.0
        %3010 = vmatprep.subr.mxu0 0.0
        %3011 = vmatpush1.msra.mxu0 0.0
        %3012 = vmatprep.subr.mxu0 0.0
        %3013 = vmatpush1.msra.mxu0 0.0
        %3014 = vmatprep.subr.mxu0 0.0
        %3015 = vmatpush1.msra.mxu0 0.0
        %3016 = vmatprep.subr.mxu0 0.0
        %3017 = vmatpush1.msra.mxu0 0.0
        %3018 = vmatprep.subr.mxu0 0.0
        %3019 = vmatpush1.msra.mxu0 0.0
        %3020 = vmatprep.subr.mxu0 0.0
        %3021 = vmatpush1.msra.mxu0 0.0
        %3022 = vmatprep.subr.mxu0 0.0
        %3023 = vmatpush1.msra.mxu0 0.0
        %3024 = vmatprep.subr.mxu0 0.0
        %3025 = vmatpush1.msra.mxu0 0.0
        %3026 = vmatprep.subr.mxu0 0.0
        %3027 = vmatpush1.msra.mxu0 0.0
        %3028 = vmatprep.subr.mxu0 0.0
        %3029 = vmatpush1.msra.mxu0 0.0
        %3030 = vmatprep.subr.mxu0 0.0
        %3031 = vmatpush1.msra.mxu0 0.0
        %3032 = vmatprep.subr.mxu0 0.0
        %3033 = vmatpush1.msra.mxu0 0.0
        %3034 = vmatprep.subr.mxu0 0.0
        %3035 = vmatpush1.msra.mxu0 0.0
        %3036 = vmatprep.subr.mxu0 0.0
        %3037 = vmatpush1.msra.mxu0 0.0
        %3038 = vmatprep.subr.mxu0 0.0
        %3039 = vmatpush1.msra.mxu0 0.0
        %3040 = vmatprep.mubr.f32.mxu0 0.0
        %3041 = vmatmul.mubr.f32.gmra.mrb[0].mxu0 %v2876
        %v3042 = vpop.f32.mrb[0].mxu0
        %v3043 = vadd.f32 %v2954, %v3042
        %v3044 = vpop.f32.mrb[0].mxu0
        %v3045 = vadd.f32 %v2956, %v3044
        %3046 = vmatprep.mubr.f32.mxu0 0.0
        %3047 = vmatmul.mubr.f32.gmra.mrb[0].mxu0 %v2879
        %v3048 = vpop.f32.mrb[0].mxu0
        %v3049 = vadd.f32 %v2960, %v3048
        %v3050 = vpop.f32.mrb[0].mxu0
        %v3051 = vadd.f32 %v2962, %v3050
        %3052 = vmatprep.mubr.f32.mxu0 0.0
        %3053 = vmatmul.mubr.f32.gmra.mrb[0].mxu0 %v2882
        %v3054 = vpop.f32.mrb[0].mxu0
        %v3055 = vadd.f32 %v2966, %v3054
        %v3056 = vpop.f32.mrb[0].mxu0
        %v3057 = vadd.f32 %v2968, %v3056
        %3058 = vmatprep.mubr.f32.mxu0 0.0
        %3059 = vmatmul.mubr.f32.gmra.mrb[0].mxu0 %v2885
        %v3060 = vpop.f32.mrb[0].mxu0
        %v3061 = vadd.f32 %v2972, %v3060
        %v3062 = vpop.f32.mrb[0].mxu0
        %v3063 = vadd.f32 %v2974, %v3062
        %3064 = vdwg.mxu0
        %v3065 = vmax.f32 %v3043, 0.0
        %v3066 = vmax.f32 %v3045, 0.0
        %v3067 = vmax.f32 %v3049, 0.0
        %v3068 = vmax.f32 %v3051, 0.0
        %v3069 = vmax.f32 %v3055, 0.0
        %v3070 = vmax.f32 %v3057, 0.0
        %v3071 = vmax.f32 %v3061, 0.0
        %v3072 = vmax.f32 %v3063, 0.0
        %s3073 = scalar_lea.vmem [#allocation8], 96
        %v3074 = vld [vmem:[%s3073] sm:$0xff]
        %v3075 = vld [vmem:[%s3073 + $0x8] sm:$0xff]
        %v3076 = vld [vmem:[%s3073 + $0x10] sm:$0xff]
        %v3077 = vld [vmem:[%s3073 + $0x18] sm:$0xff]
        %3078 = vset.pattern.permute.xlu0 5
        %3079 = vperm.xlu0 %3078, %v999
        %v3080 = vpop.permute.xlu0 %3079
        %3082 = vset.pattern.permute.xlu0 5
        %3083 = vperm.xlu0 %3082, %v1000
        %v3084 = vpop.permute.xlu0 %3083
        %3086 = vset.pattern.permute.xlu0 5
        %3087 = vperm.xlu0 %3086, %v1001
        %v3088 = vpop.permute.xlu0 %3087
        %3090 = vset.pattern.permute.xlu0 5
        %3091 = vperm.xlu0 %3090, %v1002
        %v3092 = vpop.permute.xlu0 %3091
        %v3095 = vsel %vm1634, %v3074, 0
        %v3098 = vsel %vm1634, %v3075, 0
        %v3101 = vsel %vm1634, %v3076, 0
        %v3104 = vsel %vm1634, %v3077, 0
        %3106 = vmatprep.subr.mxu0 %v3066
        %3107 = vmatpush1.msra.mxu0 %v3065
        %3108 = vmatprep.subr.mxu0 %v3068
        %3109 = vmatpush1.msra.mxu0 %v3067
        %3110 = vmatprep.subr.mxu0 %v3070
        %3111 = vmatpush1.msra.mxu0 %v3069
        %3112 = vmatprep.subr.mxu0 %v3072
        %3113 = vmatpush1.msra.mxu0 %v3071
        %3114 = vmatprep.subr.mxu0 0.0
        %3115 = vmatpush1.msra.mxu0 0.0
        %3116 = vmatprep.subr.mxu0 0.0
        %3117 = vmatpush1.msra.mxu0 0.0
        %3118 = vmatprep.subr.mxu0 0.0
        %3119 = vmatpush1.msra.mxu0 0.0
        %3120 = vmatprep.subr.mxu0 0.0
        %3121 = vmatpush1.msra.mxu0 0.0
        %3122 = vmatprep.subr.mxu0 0.0
        %3123 = vmatpush1.msra.mxu0 0.0
        %3124 = vmatprep.subr.mxu0 0.0
        %3125 = vmatpush1.msra.mxu0 0.0
        %3126 = vmatprep.subr.mxu0 0.0
        %3127 = vmatpush1.msra.mxu0 0.0
        %3128 = vmatprep.subr.mxu0 0.0
        %3129 = vmatpush1.msra.mxu0 0.0
        %3130 = vmatprep.subr.mxu0 0.0
        %3131 = vmatpush1.msra.mxu0 0.0
        %3132 = vmatprep.subr.mxu0 0.0
        %3133 = vmatpush1.msra.mxu0 0.0
        %3134 = vmatprep.subr.mxu0 0.0
        %3135 = vmatpush1.msra.mxu0 0.0
        %3136 = vmatprep.subr.mxu0 0.0
        %3137 = vmatpush1.msra.mxu0 0.0
        %3138 = vmatprep.subr.mxu0 0.0
        %3139 = vmatpush1.msra.mxu0 0.0
        %3140 = vmatprep.subr.mxu0 0.0
        %3141 = vmatpush1.msra.mxu0 0.0
        %3142 = vmatprep.subr.mxu0 0.0
        %3143 = vmatpush1.msra.mxu0 0.0
        %3144 = vmatprep.subr.mxu0 0.0
        %3145 = vmatpush1.msra.mxu0 0.0
        %3146 = vmatprep.subr.mxu0 0.0
        %3147 = vmatpush1.msra.mxu0 0.0
        %3148 = vmatprep.subr.mxu0 0.0
        %3149 = vmatpush1.msra.mxu0 0.0
        %3150 = vmatprep.subr.mxu0 0.0
        %3151 = vmatpush1.msra.mxu0 0.0
        %3152 = vmatprep.subr.mxu0 0.0
        %3153 = vmatpush1.msra.mxu0 0.0
        %3154 = vmatprep.subr.mxu0 0.0
        %3155 = vmatpush1.msra.mxu0 0.0
        %3156 = vmatprep.subr.mxu0 0.0
        %3157 = vmatpush1.msra.mxu0 0.0
        %3158 = vmatprep.subr.mxu0 0.0
        %3159 = vmatpush1.msra.mxu0 0.0
        %3160 = vmatprep.subr.mxu0 0.0
        %3161 = vmatpush1.msra.mxu0 0.0
        %3162 = vmatprep.subr.mxu0 0.0
        %3163 = vmatpush1.msra.mxu0 0.0
        %3164 = vmatprep.subr.mxu0 0.0
        %3165 = vmatpush1.msra.mxu0 0.0
        %3166 = vmatprep.subr.mxu0 0.0
        %3167 = vmatpush1.msra.mxu0 0.0
        %3168 = vmatprep.subr.mxu0 0.0
        %3169 = vmatpush1.msra.mxu0 0.0
        %3170 = vmatprep.mubr.f32.mxu0 0.0
        %3171 = vmatmul.mubr.f32.gmra.mrb[0].mxu0 %v3095
        %v3172 = vpop.f32.mrb[0].mxu0
        %v3173 = vadd.f32 %v3080, %v3172
        %v3174 = vpop.f32.mrb[0].mxu0
        %v3175 = vadd.f32 %v3080, %v3174
        %3176 = vmatprep.mubr.f32.mxu0 0.0
        %3177 = vmatmul.mubr.f32.gmra.mrb[0].mxu0 %v3098
        %v3178 = vpop.f32.mrb[0].mxu0
        %v3179 = vadd.f32 %v3084, %v3178
        %v3180 = vpop.f32.mrb[0].mxu0
        %v3181 = vadd.f32 %v3084, %v3180
        %3182 = vmatprep.mubr.f32.mxu0 0.0
        %3183 = vmatmul.mubr.f32.gmra.mrb[0].mxu0 %v3101
        %v3184 = vpop.f32.mrb[0].mxu0
        %v3185 = vadd.f32 %v3088, %v3184
        %v3186 = vpop.f32.mrb[0].mxu0
        %v3187 = vadd.f32 %v3088, %v3186
        %3188 = vmatprep.mubr.f32.mxu0 0.0
        %3189 = vmatmul.mubr.f32.gmra.mrb[0].mxu0 %v3104
        %v3190 = vpop.f32.mrb[0].mxu0
        %v3191 = vadd.f32 %v3092, %v3190
        %v3192 = vpop.f32.mrb[0].mxu0
        %v3193 = vadd.f32 %v3092, %v3192
        %3194 = vdwg.mxu0
        %v3195 = vadd.f32 %v2582, %v3173
        %v3196 = vadd.f32 %v2583, %v3175
        %v3197 = vadd.f32 %v2584, %v3179
        %v3198 = vadd.f32 %v2585, %v3181
        %v3199 = vadd.f32 %v2586, %v3185
        %v3200 = vadd.f32 %v2587, %v3187
        %v3201 = vadd.f32 %v2588, %v3191
        %v3202 = vadd.f32 %v2589, %v3193
        %s3203 = scalar_lea.vmem [#allocation8], 128
        %v3204 = vld [vmem:[%s3203] sm:$0xff]
        %v3205 = vld [vmem:[%s3203 + $0x8] sm:$0xff]
        %v3206 = vld [vmem:[%s3203 + $0x10] sm:$0xff]
        %v3207 = vld [vmem:[%s3203 + $0x18] sm:$0xff]
        %3208 = vset.pattern.permute.xlu0 6
        %3209 = vperm.xlu0 %3208, %v999
        %v3210 = vpop.permute.xlu0 %3209
        %3212 = vset.pattern.permute.xlu0 6
        %3213 = vperm.xlu0 %3212, %v1000
        %v3214 = vpop.permute.xlu0 %3213
        %3216 = vset.pattern.permute.xlu0 6
        %3217 = vperm.xlu0 %3216, %v1001
        %v3218 = vpop.permute.xlu0 %3217
        %3220 = vset.pattern.permute.xlu0 6
        %3221 = vperm.xlu0 %3220, %v1002
        %v3222 = vpop.permute.xlu0 %3221
        %v3225 = vsel %vm1634, %v3204, 0
        %v3228 = vsel %vm1634, %v3205, 0
        %v3231 = vsel %vm1634, %v3206, 0
        %v3234 = vsel %vm1634, %v3207, 0
        %3236 = vmatprep.subr.mxu0 %v3196
        %3237 = vmatpush1.msra.mxu0 %v3195
        %3238 = vmatprep.subr.mxu0 %v3198
        %3239 = vmatpush1.msra.mxu0 %v3197
        %3240 = vmatprep.subr.mxu0 %v3200
        %3241 = vmatpush1.msra.mxu0 %v3199
        %3242 = vmatprep.subr.mxu0 %v3202
        %3243 = vmatpush1.msra.mxu0 %v3201
        %3244 = vmatprep.subr.mxu0 0.0
        %3245 = vmatpush1.msra.mxu0 0.0
        %3246 = vmatprep.subr.mxu0 0.0
        %3247 = vmatpush1.msra.mxu0 0.0
        %3248 = vmatprep.subr.mxu0 0.0
        %3249 = vmatpush1.msra.mxu0 0.0
        %3250 = vmatprep.subr.mxu0 0.0
        %3251 = vmatpush1.msra.mxu0 0.0
        %3252 = vmatprep.subr.mxu0 0.0
        %3253 = vmatpush1.msra.mxu0 0.0
        %3254 = vmatprep.subr.mxu0 0.0
        %3255 = vmatpush1.msra.mxu0 0.0
        %3256 = vmatprep.subr.mxu0 0.0
        %3257 = vmatpush1.msra.mxu0 0.0
        %3258 = vmatprep.subr.mxu0 0.0
        %3259 = vmatpush1.msra.mxu0 0.0
        %3260 = vmatprep.subr.mxu0 0.0
        %3261 = vmatpush1.msra.mxu0 0.0
        %3262 = vmatprep.subr.mxu0 0.0
        %3263 = vmatpush1.msra.mxu0 0.0
        %3264 = vmatprep.subr.mxu0 0.0
        %3265 = vmatpush1.msra.mxu0 0.0
        %3266 = vmatprep.subr.mxu0 0.0
        %3267 = vmatpush1.msra.mxu0 0.0
        %3268 = vmatprep.subr.mxu0 0.0
        %3269 = vmatpush1.msra.mxu0 0.0
        %3270 = vmatprep.subr.mxu0 0.0
        %3271 = vmatpush1.msra.mxu0 0.0
        %3272 = vmatprep.subr.mxu0 0.0
        %3273 = vmatpush1.msra.mxu0 0.0
        %3274 = vmatprep.subr.mxu0 0.0
        %3275 = vmatpush1.msra.mxu0 0.0
        %3276 = vmatprep.subr.mxu0 0.0
        %3277 = vmatpush1.msra.mxu0 0.0
        %3278 = vmatprep.subr.mxu0 0.0
        %3279 = vmatpush1.msra.mxu0 0.0
        %3280 = vmatprep.subr.mxu0 0.0
        %3281 = vmatpush1.msra.mxu0 0.0
        %3282 = vmatprep.subr.mxu0 0.0
        %3283 = vmatpush1.msra.mxu0 0.0
        %3284 = vmatprep.subr.mxu0 0.0
        %3285 = vmatpush1.msra.mxu0 0.0
        %3286 = vmatprep.subr.mxu0 0.0
        %3287 = vmatpush1.msra.mxu0 0.0
        %3288 = vmatprep.subr.mxu0 0.0
        %3289 = vmatpush1.msra.mxu0 0.0
        %3290 = vmatprep.subr.mxu0 0.0
        %3291 = vmatpush1.msra.mxu0 0.0
        %3292 = vmatprep.subr.mxu0 0.0
        %3293 = vmatpush1.msra.mxu0 0.0
        %3294 = vmatprep.subr.mxu0 0.0
        %3295 = vmatpush1.msra.mxu0 0.0
        %3296 = vmatprep.subr.mxu0 0.0
        %3297 = vmatpush1.msra.mxu0 0.0
        %3298 = vmatprep.subr.mxu0 0.0
        %3299 = vmatpush1.msra.mxu0 0.0
        %3300 = vmatprep.mubr.f32.mxu0 0.0
        %3301 = vmatmul.mubr.f32.gmra.mrb[0].mxu0 %v3225
        %v3302 = vpop.f32.mrb[0].mxu0
        %v3303 = vadd.f32 %v3210, %v3302
        %v3304 = vpop.f32.mrb[0].mxu0
        %v3305 = vadd.f32 %v3210, %v3304
        %3306 = vmatprep.mubr.f32.mxu0 0.0
        %3307 = vmatmul.mubr.f32.gmra.mrb[0].mxu0 %v3228
        %v3308 = vpop.f32.mrb[0].mxu0
        %v3309 = vadd.f32 %v3214, %v3308
        %v3310 = vpop.f32.mrb[0].mxu0
        %v3311 = vadd.f32 %v3214, %v3310
        %3312 = vmatprep.mubr.f32.mxu0 0.0
        %3313 = vmatmul.mubr.f32.gmra.mrb[0].mxu0 %v3231
        %v3314 = vpop.f32.mrb[0].mxu0
        %v3315 = vadd.f32 %v3218, %v3314
        %v3316 = vpop.f32.mrb[0].mxu0
        %v3317 = vadd.f32 %v3218, %v3316
        %3318 = vmatprep.mubr.f32.mxu0 0.0
        %3319 = vmatmul.mubr.f32.gmra.mrb[0].mxu0 %v3234
        %v3320 = vpop.f32.mrb[0].mxu0
        %v3321 = vadd.f32 %v3222, %v3320
        %v3322 = vpop.f32.mrb[0].mxu0
        %v3323 = vadd.f32 %v3222, %v3322
        %3324 = vdwg.mxu0
        %v3325 = vmax.f32 %v3303, 0.0
        %v3326 = vmax.f32 %v3305, 0.0
        %v3327 = vmax.f32 %v3309, 0.0
        %v3328 = vmax.f32 %v3311, 0.0
        %v3329 = vmax.f32 %v3315, 0.0
        %v3330 = vmax.f32 %v3317, 0.0
        %v3331 = vmax.f32 %v3321, 0.0
        %v3332 = vmax.f32 %v3323, 0.0
        %v3333 = vld [vmem:[#allocation11] sm:$0xff]
        %v3334 = vld [vmem:[#allocation11 + $0x8] sm:$0xff]
        %v3335 = vld [vmem:[#allocation11 + $0x10] sm:$0xff]
        %v3336 = vld [vmem:[#allocation11 + $0x18] sm:$0xff]
        %v3337 = vld [vmem:[#allocation11 + $0x20] sm:$0xff]
        %v3338 = vld [vmem:[#allocation11 + $0x28] sm:$0xff]
        %v3339 = vld [vmem:[#allocation11 + $0x30] sm:$0xff]
        %v3340 = vld [vmem:[#allocation11 + $0x38] sm:$0xff]
        %v3341 = vld [vmem:[#allocation11 + $0x40] sm:$0xff]
        %v3342 = vld [vmem:[#allocation11 + $0x48] sm:$0xff]
        %v3343 = vld [vmem:[#allocation11 + $0x50] sm:$0xff]
        %v3344 = vld [vmem:[#allocation11 + $0x58] sm:$0xff]
        %3345 = vrot.lane.b32.xlu0 %v3325, 17
        %v3346 = vpop.permute.xlu0 %3345
        %3347 = vrot.lane.b32.xlu0 %v3327, 17
        %v3348 = vpop.permute.xlu0 %3347
        %3349 = vrot.lane.b32.xlu0 %v3329, 17
        %v3350 = vpop.permute.xlu0 %3349
        %3351 = vrot.lane.b32.xlu0 %v3331, 17
        %v3352 = vpop.permute.xlu0 %3351
        %3353 = vrot.lane.b32.xlu0 %v3326, 17
        %v3354 = vpop.permute.xlu0 %3353
        %3355 = vrot.lane.b32.xlu0 %v3328, 17
        %v3356 = vpop.permute.xlu0 %3355
        %3357 = vrot.lane.b32.xlu0 %v3330, 17
        %v3358 = vpop.permute.xlu0 %3357
        %3359 = vrot.lane.b32.xlu0 %v3332, 17
        %v3360 = vpop.permute.xlu0 %3359
        %v3361 = vsel %vm607, %v3346, %v3354
        %v3362 = vsel %vm607, %v3348, %v3356
        %v3363 = vsel %vm607, %v3350, %v3358
        %v3364 = vsel %vm607, %v3352, %v3360
        %v3365 = vsel %vm607, %v3354, %v3346
        %v3366 = vsel %vm607, %v3356, %v3348
        %v3367 = vsel %vm607, %v3358, %v3350
        %v3368 = vsel %vm607, %v3360, %v3352
        %s3369 = scalar_lea.vmem [#allocation2], 82
        %v3370 = vld [vmem:[%s3369] ss:$8 sm:$0x3]
        %v3372 = vlaneseq
        %v3373 = vshrl.u32 %v3372, 7
        %v3374 = vsub.s32 0, %v3373
        %v3375 = vrot.slane %v3370, %v3374
        %v3376 = vlaneseq
        %v3377 = vshrl.u32 %v3376, 7
        %v3378 = vsub.s32 1, %v3377
        %v3379 = vrot.slane %v3370, %v3378
        %v3382 = vmul.f32 %v3365, %v3375
        %v3383 = vmul.f32 %v3361, %v3379
        %v3384 = vmul.f32 %v3366, %v3375
        %v3385 = vmul.f32 %v3362, %v3379
        %v3386 = vmul.f32 %v3367, %v3375
        %v3387 = vmul.f32 %v3363, %v3379
        %v3388 = vmul.f32 %v3368, %v3375
        %v3389 = vmul.f32 %v3364, %v3379
        %3390 = vrot.lane.b32.xlu0 %v3325, 16
        %v3391 = vpop.permute.xlu0 %3390
        %3392 = vrot.lane.b32.xlu0 %v3327, 16
        %v3393 = vpop.permute.xlu0 %3392
        %3394 = vrot.lane.b32.xlu0 %v3329, 16
        %v3395 = vpop.permute.xlu0 %3394
        %3396 = vrot.lane.b32.xlu0 %v3331, 16
        %v3397 = vpop.permute.xlu0 %3396
        %3398 = vrot.lane.b32.xlu0 %v3326, 16
        %v3399 = vpop.permute.xlu0 %3398
        %3400 = vrot.lane.b32.xlu0 %v3328, 16
        %v3401 = vpop.permute.xlu0 %3400
        %3402 = vrot.lane.b32.xlu0 %v3330, 16
        %v3403 = vpop.permute.xlu0 %3402
        %3404 = vrot.lane.b32.xlu0 %v3332, 16
        %v3405 = vpop.permute.xlu0 %3404
        %v3406 = vsel %vm629, %v3391, %v3399
        %v3407 = vsel %vm629, %v3393, %v3401
        %v3408 = vsel %vm629, %v3395, %v3403
        %v3409 = vsel %vm629, %v3397, %v3405
        %v3410 = vsel %vm629, %v3399, %v3391
        %v3411 = vsel %vm629, %v3401, %v3393
        %v3412 = vsel %vm629, %v3403, %v3395
        %v3413 = vsel %vm629, %v3405, %v3397
        %s3414 = scalar_lea.vmem [#allocation2], 83
        %v3415 = vld [vmem:[%s3414] ss:$8 sm:$0x3]
        %v3417 = vlaneseq
        %v3418 = vshrl.u32 %v3417, 7
        %v3419 = vsub.s32 0, %v3418
        %v3420 = vrot.slane %v3415, %v3419
        %v3421 = vlaneseq
        %v3422 = vshrl.u32 %v3421, 7
        %v3423 = vsub.s32 1, %v3422
        %v3424 = vrot.slane %v3415, %v3423
        %v3427 = vmul.f32 %v3410, %v3420
        %v3428 = vmul.f32 %v3406, %v3424
        %v3429 = vmul.f32 %v3411, %v3420
        %v3430 = vmul.f32 %v3407, %v3424
        %v3431 = vmul.f32 %v3412, %v3420
        %v3432 = vmul.f32 %v3408, %v3424
        %v3433 = vmul.f32 %v3413, %v3420
        %v3434 = vmul.f32 %v3409, %v3424
        %3435 = vrot.lane.b32.xlu0 %v3325, 15
        %v3436 = vpop.permute.xlu0 %3435
        %3437 = vrot.lane.b32.xlu0 %v3327, 15
        %v3438 = vpop.permute.xlu0 %3437
        %3439 = vrot.lane.b32.xlu0 %v3329, 15
        %v3440 = vpop.permute.xlu0 %3439
        %3441 = vrot.lane.b32.xlu0 %v3331, 15
        %v3442 = vpop.permute.xlu0 %3441
        %3443 = vrot.lane.b32.xlu0 %v3326, 15
        %v3444 = vpop.permute.xlu0 %3443
        %3445 = vrot.lane.b32.xlu0 %v3328, 15
        %v3446 = vpop.permute.xlu0 %3445
        %3447 = vrot.lane.b32.xlu0 %v3330, 15
        %v3448 = vpop.permute.xlu0 %3447
        %3449 = vrot.lane.b32.xlu0 %v3332, 15
        %v3450 = vpop.permute.xlu0 %3449
        %v3451 = vsel %vm651, %v3436, %v3444
        %v3452 = vsel %vm651, %v3438, %v3446
        %v3453 = vsel %vm651, %v3440, %v3448
        %v3454 = vsel %vm651, %v3442, %v3450
        %v3455 = vsel %vm651, %v3444, %v3436
        %v3456 = vsel %vm651, %v3446, %v3438
        %v3457 = vsel %vm651, %v3448, %v3440
        %v3458 = vsel %vm651, %v3450, %v3442
        %s3459 = scalar_lea.vmem [#allocation2], 84
        %v3460 = vld [vmem:[%s3459] ss:$8 sm:$0x3]
        %v3462 = vlaneseq
        %v3463 = vshrl.u32 %v3462, 7
        %v3464 = vsub.s32 0, %v3463
        %v3465 = vrot.slane %v3460, %v3464
        %v3466 = vlaneseq
        %v3467 = vshrl.u32 %v3466, 7
        %v3468 = vsub.s32 1, %v3467
        %v3469 = vrot.slane %v3460, %v3468
        %v3472 = vmul.f32 %v3455, %v3465
        %v3473 = vmul.f32 %v3451, %v3469
        %v3474 = vmul.f32 %v3456, %v3465
        %v3475 = vmul.f32 %v3452, %v3469
        %v3476 = vmul.f32 %v3457, %v3465
        %v3477 = vmul.f32 %v3453, %v3469
        %v3478 = vmul.f32 %v3458, %v3465
        %v3479 = vmul.f32 %v3454, %v3469
        %3480 = vrot.lane.b32.xlu0 %v3325, 1
        %v3481 = vpop.permute.xlu0 %3480
        %3482 = vrot.lane.b32.xlu0 %v3327, 1
        %v3483 = vpop.permute.xlu0 %3482
        %3484 = vrot.lane.b32.xlu0 %v3329, 1
        %v3485 = vpop.permute.xlu0 %3484
        %3486 = vrot.lane.b32.xlu0 %v3331, 1
        %v3487 = vpop.permute.xlu0 %3486
        %3488 = vrot.lane.b32.xlu0 %v3326, 1
        %v3489 = vpop.permute.xlu0 %3488
        %3490 = vrot.lane.b32.xlu0 %v3328, 1
        %v3491 = vpop.permute.xlu0 %3490
        %3492 = vrot.lane.b32.xlu0 %v3330, 1
        %v3493 = vpop.permute.xlu0 %3492
        %3494 = vrot.lane.b32.xlu0 %v3332, 1
        %v3495 = vpop.permute.xlu0 %3494
        %v3496 = vsel %vm717, %v3481, %v3489
        %v3497 = vsel %vm717, %v3483, %v3491
        %v3498 = vsel %vm717, %v3485, %v3493
        %v3499 = vsel %vm717, %v3487, %v3495
        %v3500 = vsel %vm717, %v3489, %v3481
        %v3501 = vsel %vm717, %v3491, %v3483
        %v3502 = vsel %vm717, %v3493, %v3485
        %v3503 = vsel %vm717, %v3495, %v3487
        %s3504 = scalar_lea.vmem [#allocation2], 85
        %v3505 = vld [vmem:[%s3504] ss:$8 sm:$0x3]
        %v3507 = vlaneseq
        %v3508 = vshrl.u32 %v3507, 7
        %v3509 = vsub.s32 0, %v3508
        %v3510 = vrot.slane %v3505, %v3509
        %v3511 = vlaneseq
        %v3512 = vshrl.u32 %v3511, 7
        %v3513 = vsub.s32 1, %v3512
        %v3514 = vrot.slane %v3505, %v3513
        %v3517 = vmul.f32 %v3500, %v3510
        %v3518 = vmul.f32 %v3496, %v3514
        %v3519 = vmul.f32 %v3501, %v3510
        %v3520 = vmul.f32 %v3497, %v3514
        %v3521 = vmul.f32 %v3502, %v3510
        %v3522 = vmul.f32 %v3498, %v3514
        %v3523 = vmul.f32 %v3503, %v3510
        %v3524 = vmul.f32 %v3499, %v3514
        %3525 = vrot.lane.b32.xlu0 %v3325, 127
        %v3526 = vpop.permute.xlu0 %3525
        %3527 = vrot.lane.b32.xlu0 %v3327, 127
        %v3528 = vpop.permute.xlu0 %3527
        %3529 = vrot.lane.b32.xlu0 %v3329, 127
        %v3530 = vpop.permute.xlu0 %3529
        %3531 = vrot.lane.b32.xlu0 %v3331, 127
        %v3532 = vpop.permute.xlu0 %3531
        %3533 = vrot.lane.b32.xlu0 %v3326, 127
        %v3534 = vpop.permute.xlu0 %3533
        %3535 = vrot.lane.b32.xlu0 %v3328, 127
        %v3536 = vpop.permute.xlu0 %3535
        %3537 = vrot.lane.b32.xlu0 %v3330, 127
        %v3538 = vpop.permute.xlu0 %3537
        %3539 = vrot.lane.b32.xlu0 %v3332, 127
        %v3540 = vpop.permute.xlu0 %3539
        %v3541 = vsel %vm739, %v3526, %v3534
        %v3542 = vsel %vm739, %v3528, %v3536
        %v3543 = vsel %vm739, %v3530, %v3538
        %v3544 = vsel %vm739, %v3532, %v3540
        %v3545 = vsel %vm739, %v3534, %v3526
        %v3546 = vsel %vm739, %v3536, %v3528
        %v3547 = vsel %vm739, %v3538, %v3530
        %v3548 = vsel %vm739, %v3540, %v3532
        %s3549 = scalar_lea.vmem [#allocation2], 87
        %v3550 = vld [vmem:[%s3549] ss:$8 sm:$0x3]
        %v3552 = vlaneseq
        %v3553 = vshrl.u32 %v3552, 7
        %v3554 = vsub.s32 0, %v3553
        %v3555 = vrot.slane %v3550, %v3554
        %v3556 = vlaneseq
        %v3557 = vshrl.u32 %v3556, 7
        %v3558 = vsub.s32 1, %v3557
        %v3559 = vrot.slane %v3550, %v3558
        %v3562 = vmul.f32 %v3541, %v3555
        %v3563 = vmul.f32 %v3545, %v3559
        %v3564 = vmul.f32 %v3542, %v3555
        %v3565 = vmul.f32 %v3546, %v3559
        %v3566 = vmul.f32 %v3543, %v3555
        %v3567 = vmul.f32 %v3547, %v3559
        %v3568 = vmul.f32 %v3544, %v3555
        %v3569 = vmul.f32 %v3548, %v3559
        %3570 = vrot.lane.b32.xlu0 %v3325, 113
        %v3571 = vpop.permute.xlu0 %3570
        %3572 = vrot.lane.b32.xlu0 %v3327, 113
        %v3573 = vpop.permute.xlu0 %3572
        %3574 = vrot.lane.b32.xlu0 %v3329, 113
        %v3575 = vpop.permute.xlu0 %3574
        %3576 = vrot.lane.b32.xlu0 %v3331, 113
        %v3577 = vpop.permute.xlu0 %3576
        %3578 = vrot.lane.b32.xlu0 %v3326, 113
        %v3579 = vpop.permute.xlu0 %3578
        %3580 = vrot.lane.b32.xlu0 %v3328, 113
        %v3581 = vpop.permute.xlu0 %3580
        %3582 = vrot.lane.b32.xlu0 %v3330, 113
        %v3583 = vpop.permute.xlu0 %3582
        %3584 = vrot.lane.b32.xlu0 %v3332, 113
        %v3585 = vpop.permute.xlu0 %3584
        %v3586 = vsel %vm805, %v3571, %v3579
        %v3587 = vsel %vm805, %v3573, %v3581
        %v3588 = vsel %vm805, %v3575, %v3583
        %v3589 = vsel %vm805, %v3577, %v3585
        %v3590 = vsel %vm805, %v3579, %v3571
        %v3591 = vsel %vm805, %v3581, %v3573
        %v3592 = vsel %vm805, %v3583, %v3575
        %v3593 = vsel %vm805, %v3585, %v3577
        %s3594 = scalar_lea.vmem [#allocation2], 96
        %v3595 = vld [vmem:[%s3594] ss:$8 sm:$0x3]
        %v3597 = vlaneseq
        %v3598 = vshrl.u32 %v3597, 7
        %v3599 = vsub.s32 0, %v3598
        %v3600 = vrot.slane %v3595, %v3599
        %v3601 = vlaneseq
        %v3602 = vshrl.u32 %v3601, 7
        %v3603 = vsub.s32 1, %v3602
        %v3604 = vrot.slane %v3595, %v3603
        %v3607 = vmul.f32 %v3586, %v3600
        %v3608 = vmul.f32 %v3590, %v3604
        %v3609 = vmul.f32 %v3587, %v3600
        %v3610 = vmul.f32 %v3591, %v3604
        %v3611 = vmul.f32 %v3588, %v3600
        %v3612 = vmul.f32 %v3592, %v3604
        %v3613 = vmul.f32 %v3589, %v3600
        %v3614 = vmul.f32 %v3593, %v3604
        %3615 = vrot.lane.b32.xlu0 %v3325, 112
        %v3616 = vpop.permute.xlu0 %3615
        %3617 = vrot.lane.b32.xlu0 %v3327, 112
        %v3618 = vpop.permute.xlu0 %3617
        %3619 = vrot.lane.b32.xlu0 %v3329, 112
        %v3620 = vpop.permute.xlu0 %3619
        %3621 = vrot.lane.b32.xlu0 %v3331, 112
        %v3622 = vpop.permute.xlu0 %3621
        %3623 = vrot.lane.b32.xlu0 %v3326, 112
        %v3624 = vpop.permute.xlu0 %3623
        %3625 = vrot.lane.b32.xlu0 %v3328, 112
        %v3626 = vpop.permute.xlu0 %3625
        %3627 = vrot.lane.b32.xlu0 %v3330, 112
        %v3628 = vpop.permute.xlu0 %3627
        %3629 = vrot.lane.b32.xlu0 %v3332, 112
        %v3630 = vpop.permute.xlu0 %3629
        %v3631 = vsel %vm827, %v3616, %v3624
        %v3632 = vsel %vm827, %v3618, %v3626
        %v3633 = vsel %vm827, %v3620, %v3628
        %v3634 = vsel %vm827, %v3622, %v3630
        %v3635 = vsel %vm827, %v3624, %v3616
        %v3636 = vsel %vm827, %v3626, %v3618
        %v3637 = vsel %vm827, %v3628, %v3620
        %v3638 = vsel %vm827, %v3630, %v3622
        %s3639 = scalar_lea.vmem [#allocation2], 97
        %v3640 = vld [vmem:[%s3639] ss:$8 sm:$0x3]
        %v3642 = vlaneseq
        %v3643 = vshrl.u32 %v3642, 7
        %v3644 = vsub.s32 0, %v3643
        %v3645 = vrot.slane %v3640, %v3644
        %v3646 = vlaneseq
        %v3647 = vshrl.u32 %v3646, 7
        %v3648 = vsub.s32 1, %v3647
        %v3649 = vrot.slane %v3640, %v3648
        %v3652 = vmul.f32 %v3631, %v3645
        %v3653 = vmul.f32 %v3635, %v3649
        %v3654 = vmul.f32 %v3632, %v3645
        %v3655 = vmul.f32 %v3636, %v3649
        %v3656 = vmul.f32 %v3633, %v3645
        %v3657 = vmul.f32 %v3637, %v3649
        %v3658 = vmul.f32 %v3634, %v3645
        %v3659 = vmul.f32 %v3638, %v3649
        %3660 = vrot.lane.b32.xlu0 %v3325, 111
        %v3661 = vpop.permute.xlu0 %3660
        %3662 = vrot.lane.b32.xlu0 %v3327, 111
        %v3663 = vpop.permute.xlu0 %3662
        %3664 = vrot.lane.b32.xlu0 %v3329, 111
        %v3665 = vpop.permute.xlu0 %3664
        %3666 = vrot.lane.b32.xlu0 %v3331, 111
        %v3667 = vpop.permute.xlu0 %3666
        %3668 = vrot.lane.b32.xlu0 %v3326, 111
        %v3669 = vpop.permute.xlu0 %3668
        %3670 = vrot.lane.b32.xlu0 %v3328, 111
        %v3671 = vpop.permute.xlu0 %3670
        %3672 = vrot.lane.b32.xlu0 %v3330, 111
        %v3673 = vpop.permute.xlu0 %3672
        %3674 = vrot.lane.b32.xlu0 %v3332, 111
        %v3675 = vpop.permute.xlu0 %3674
        %v3676 = vsel %vm849, %v3661, %v3669
        %v3677 = vsel %vm849, %v3663, %v3671
        %v3678 = vsel %vm849, %v3665, %v3673
        %v3679 = vsel %vm849, %v3667, %v3675
        %v3680 = vsel %vm849, %v3669, %v3661
        %v3681 = vsel %vm849, %v3671, %v3663
        %v3682 = vsel %vm849, %v3673, %v3665
        %v3683 = vsel %vm849, %v3675, %v3667
        %s3684 = scalar_lea.vmem [#allocation2], 98
        %v3685 = vld [vmem:[%s3684] ss:$8 sm:$0x3]
        %v3687 = vlaneseq
        %v3688 = vshrl.u32 %v3687, 7
        %v3689 = vsub.s32 0, %v3688
        %v3690 = vrot.slane %v3685, %v3689
        %v3691 = vlaneseq
        %v3692 = vshrl.u32 %v3691, 7
        %v3693 = vsub.s32 1, %v3692
        %v3694 = vrot.slane %v3685, %v3693
        %v3697 = vmul.f32 %v3676, %v3690
        %v3698 = vmul.f32 %v3680, %v3694
        %v3699 = vmul.f32 %v3677, %v3690
        %v3700 = vmul.f32 %v3681, %v3694
        %v3701 = vmul.f32 %v3678, %v3690
        %v3702 = vmul.f32 %v3682, %v3694
        %v3703 = vmul.f32 %v3679, %v3690
        %v3704 = vmul.f32 %v3683, %v3694
        %3705 = vset.pattern.permute.xlu0 9
        %3706 = vperm.xlu0 %3705, %v999
        %v3707 = vpop.permute.xlu0 %3706
        %3709 = vset.pattern.permute.xlu0 9
        %3710 = vperm.xlu0 %3709, %v1000
        %v3711 = vpop.permute.xlu0 %3710
        %3713 = vset.pattern.permute.xlu0 9
        %3714 = vperm.xlu0 %3713, %v1001
        %v3715 = vpop.permute.xlu0 %3714
        %3717 = vset.pattern.permute.xlu0 9
        %3718 = vperm.xlu0 %3717, %v1002
        %v3719 = vpop.permute.xlu0 %3718
        %v3722 = vsel %vm1634, %v3335, 0
        %v3725 = vsel %vm1634, %v3338, 0
        %v3728 = vsel %vm1634, %v3341, 0
        %v3731 = vsel %vm1634, %v3344, 0
        %3733 = vmatprep.subr.mxu0 %v3383
        %3734 = vmatpush1.msra.mxu0 %v3382
        %3735 = vmatprep.subr.mxu0 %v3385
        %3736 = vmatpush1.msra.mxu0 %v3384
        %3737 = vmatprep.subr.mxu0 %v3387
        %3738 = vmatpush1.msra.mxu0 %v3386
        %3739 = vmatprep.subr.mxu0 %v3389
        %3740 = vmatpush1.msra.mxu0 %v3388
        %3741 = vmatprep.subr.mxu0 %v3428
        %3742 = vmatpush1.msra.mxu0 %v3427
        %3743 = vmatprep.subr.mxu0 %v3430
        %3744 = vmatpush1.msra.mxu0 %v3429
        %3745 = vmatprep.subr.mxu0 %v3432
        %3746 = vmatpush1.msra.mxu0 %v3431
        %3747 = vmatprep.subr.mxu0 %v3434
        %3748 = vmatpush1.msra.mxu0 %v3433
        %3749 = vmatprep.subr.mxu0 %v3473
        %3750 = vmatpush1.msra.mxu0 %v3472
        %3751 = vmatprep.subr.mxu0 %v3475
        %3752 = vmatpush1.msra.mxu0 %v3474
        %3753 = vmatprep.subr.mxu0 %v3477
        %3754 = vmatpush1.msra.mxu0 %v3476
        %3755 = vmatprep.subr.mxu0 %v3479
        %3756 = vmatpush1.msra.mxu0 %v3478
        %3757 = vmatprep.subr.mxu0 %v3518
        %3758 = vmatpush1.msra.mxu0 %v3517
        %3759 = vmatprep.subr.mxu0 %v3520
        %3760 = vmatpush1.msra.mxu0 %v3519
        %3761 = vmatprep.subr.mxu0 %v3522
        %3762 = vmatpush1.msra.mxu0 %v3521
        %3763 = vmatprep.subr.mxu0 %v3524
        %3764 = vmatpush1.msra.mxu0 %v3523
        %3765 = vmatprep.subr.mxu0 %v3326
        %3766 = vmatpush1.msra.mxu0 %v3325
        %3767 = vmatprep.subr.mxu0 %v3328
        %3768 = vmatpush1.msra.mxu0 %v3327
        %3769 = vmatprep.subr.mxu0 %v3330
        %3770 = vmatpush1.msra.mxu0 %v3329
        %3771 = vmatprep.subr.mxu0 %v3332
        %3772 = vmatpush1.msra.mxu0 %v3331
        %3773 = vmatprep.subr.mxu0 %v3563
        %3774 = vmatpush1.msra.mxu0 %v3562
        %3775 = vmatprep.subr.mxu0 %v3565
        %3776 = vmatpush1.msra.mxu0 %v3564
        %3777 = vmatprep.subr.mxu0 %v3567
        %3778 = vmatpush1.msra.mxu0 %v3566
        %3779 = vmatprep.subr.mxu0 %v3569
        %3780 = vmatpush1.msra.mxu0 %v3568
        %3781 = vmatprep.subr.mxu0 %v3608
        %3782 = vmatpush1.msra.mxu0 %v3607
        %3783 = vmatprep.subr.mxu0 %v3610
        %3784 = vmatpush1.msra.mxu0 %v3609
        %3785 = vmatprep.subr.mxu0 %v3612
        %3786 = vmatpush1.msra.mxu0 %v3611
        %3787 = vmatprep.subr.mxu0 %v3614
        %3788 = vmatpush1.msra.mxu0 %v3613
        %3789 = vmatprep.subr.mxu0 %v3653
        %3790 = vmatpush1.msra.mxu0 %v3652
        %3791 = vmatprep.subr.mxu0 %v3655
        %3792 = vmatpush1.msra.mxu0 %v3654
        %3793 = vmatprep.subr.mxu0 %v3657
        %3794 = vmatpush1.msra.mxu0 %v3656
        %3795 = vmatprep.subr.mxu0 %v3659
        %3796 = vmatpush1.msra.mxu0 %v3658
        %3797 = vmatprep.mubr.f32.mxu0 %v3334
        %3798 = vmatmul.mubr.f32.gmra.mrb[0].mxu0 %v3333
        %v3799 = vpop.f32.mrb[0].mxu0
        %v3800 = vadd.f32 %v3707, %v3799
        %v3801 = vpop.f32.mrb[0].mxu0
        %v3802 = vadd.f32 %v3707, %v3801
        %3803 = vmatprep.mubr.f32.mxu0 %v3337
        %3804 = vmatmul.mubr.f32.gmra.mrb[0].mxu0 %v3336
        %v3805 = vpop.f32.mrb[0].mxu0
        %v3806 = vadd.f32 %v3711, %v3805
        %v3807 = vpop.f32.mrb[0].mxu0
        %v3808 = vadd.f32 %v3711, %v3807
        %3809 = vmatprep.mubr.f32.mxu0 %v3340
        %3810 = vmatmul.mubr.f32.gmra.mrb[0].mxu0 %v3339
        %v3811 = vpop.f32.mrb[0].mxu0
        %v3812 = vadd.f32 %v3715, %v3811
        %v3813 = vpop.f32.mrb[0].mxu0
        %v3814 = vadd.f32 %v3715, %v3813
        %3815 = vmatprep.mubr.f32.mxu0 %v3343
        %3816 = vmatmul.mubr.f32.gmra.mrb[0].mxu0 %v3342
        %v3817 = vpop.f32.mrb[0].mxu0
        %v3818 = vadd.f32 %v3719, %v3817
        %v3819 = vpop.f32.mrb[0].mxu0
        %v3820 = vadd.f32 %v3719, %v3819
        %3821 = vdwg.mxu0
        %3822 = vmatprep.subr.mxu0 %v3698
        %3823 = vmatpush1.msra.mxu0 %v3697
        %3824 = vmatprep.subr.mxu0 %v3700
        %3825 = vmatpush1.msra.mxu0 %v3699
        %3826 = vmatprep.subr.mxu0 %v3702
        %3827 = vmatpush1.msra.mxu0 %v3701
        %3828 = vmatprep.subr.mxu0 %v3704
        %3829 = vmatpush1.msra.mxu0 %v3703
        %3830 = vmatprep.subr.mxu0 0.0
        %3831 = vmatpush1.msra.mxu0 0.0
        %3832 = vmatprep.subr.mxu0 0.0
        %3833 = vmatpush1.msra.mxu0 0.0
        %3834 = vmatprep.subr.mxu0 0.0
        %3835 = vmatpush1.msra.mxu0 0.0
        %3836 = vmatprep.subr.mxu0 0.0
        %3837 = vmatpush1.msra.mxu0 0.0
        %3838 = vmatprep.subr.mxu0 0.0
        %3839 = vmatpush1.msra.mxu0 0.0
        %3840 = vmatprep.subr.mxu0 0.0
        %3841 = vmatpush1.msra.mxu0 0.0
        %3842 = vmatprep.subr.mxu0 0.0
        %3843 = vmatpush1.msra.mxu0 0.0
        %3844 = vmatprep.subr.mxu0 0.0
        %3845 = vmatpush1.msra.mxu0 0.0
        %3846 = vmatprep.subr.mxu0 0.0
        %3847 = vmatpush1.msra.mxu0 0.0
        %3848 = vmatprep.subr.mxu0 0.0
        %3849 = vmatpush1.msra.mxu0 0.0
        %3850 = vmatprep.subr.mxu0 0.0
        %3851 = vmatpush1.msra.mxu0 0.0
        %3852 = vmatprep.subr.mxu0 0.0
        %3853 = vmatpush1.msra.mxu0 0.0
        %3854 = vmatprep.subr.mxu0 0.0
        %3855 = vmatpush1.msra.mxu0 0.0
        %3856 = vmatprep.subr.mxu0 0.0
        %3857 = vmatpush1.msra.mxu0 0.0
        %3858 = vmatprep.subr.mxu0 0.0
        %3859 = vmatpush1.msra.mxu0 0.0
        %3860 = vmatprep.subr.mxu0 0.0
        %3861 = vmatpush1.msra.mxu0 0.0
        %3862 = vmatprep.subr.mxu0 0.0
        %3863 = vmatpush1.msra.mxu0 0.0
        %3864 = vmatprep.subr.mxu0 0.0
        %3865 = vmatpush1.msra.mxu0 0.0
        %3866 = vmatprep.subr.mxu0 0.0
        %3867 = vmatpush1.msra.mxu0 0.0
        %3868 = vmatprep.subr.mxu0 0.0
        %3869 = vmatpush1.msra.mxu0 0.0
        %3870 = vmatprep.subr.mxu0 0.0
        %3871 = vmatpush1.msra.mxu0 0.0
        %3872 = vmatprep.subr.mxu0 0.0
        %3873 = vmatpush1.msra.mxu0 0.0
        %3874 = vmatprep.subr.mxu0 0.0
        %3875 = vmatpush1.msra.mxu0 0.0
        %3876 = vmatprep.subr.mxu0 0.0
        %3877 = vmatpush1.msra.mxu0 0.0
        %3878 = vmatprep.subr.mxu0 0.0
        %3879 = vmatpush1.msra.mxu0 0.0
        %3880 = vmatprep.subr.mxu0 0.0
        %3881 = vmatpush1.msra.mxu0 0.0
        %3882 = vmatprep.subr.mxu0 0.0
        %3883 = vmatpush1.msra.mxu0 0.0
        %3884 = vmatprep.subr.mxu0 0.0
        %3885 = vmatpush1.msra.mxu0 0.0
        %3886 = vmatprep.mubr.f32.mxu0 0.0
        %3887 = vmatmul.mubr.f32.gmra.mrb[0].mxu0 %v3722
        %v3888 = vpop.f32.mrb[0].mxu0
        %v3889 = vadd.f32 %v3800, %v3888
        %v3890 = vpop.f32.mrb[0].mxu0
        %v3891 = vadd.f32 %v3802, %v3890
        %3892 = vmatprep.mubr.f32.mxu0 0.0
        %3893 = vmatmul.mubr.f32.gmra.mrb[0].mxu0 %v3725
        %v3894 = vpop.f32.mrb[0].mxu0
        %v3895 = vadd.f32 %v3806, %v3894
        %v3896 = vpop.f32.mrb[0].mxu0
        %v3897 = vadd.f32 %v3808, %v3896
        %3898 = vmatprep.mubr.f32.mxu0 0.0
        %3899 = vmatmul.mubr.f32.gmra.mrb[0].mxu0 %v3728
        %v3900 = vpop.f32.mrb[0].mxu0
        %v3901 = vadd.f32 %v3812, %v3900
        %v3902 = vpop.f32.mrb[0].mxu0
        %v3903 = vadd.f32 %v3814, %v3902
        %3904 = vmatprep.mubr.f32.mxu0 0.0
        %3905 = vmatmul.mubr.f32.gmra.mrb[0].mxu0 %v3731
        %v3906 = vpop.f32.mrb[0].mxu0
        %v3907 = vadd.f32 %v3818, %v3906
        %v3908 = vpop.f32.mrb[0].mxu0
        %v3909 = vadd.f32 %v3820, %v3908
        %3910 = vdwg.mxu0
        %v3911 = vld [vmem:[%s8] sm:$0xff]
        %v3912 = vld [vmem:[%s8 + $0x8] sm:$0xff]
        %v3913 = vld [vmem:[%s8 + $0x10] sm:$0xff]
        %v3914 = vld [vmem:[%s8 + $0x18] sm:$0xff]
        %3915 = vset.pattern.permute.xlu0 10
        %3916 = vperm.xlu0 %3915, %v999
        %v3917 = vpop.permute.xlu0 %3916
        %3919 = vset.pattern.permute.xlu0 10
        %3920 = vperm.xlu0 %3919, %v1000
        %v3921 = vpop.permute.xlu0 %3920
        %3923 = vset.pattern.permute.xlu0 10
        %3924 = vperm.xlu0 %3923, %v1001
        %v3925 = vpop.permute.xlu0 %3924
        %3927 = vset.pattern.permute.xlu0 10
        %3928 = vperm.xlu0 %3927, %v1002
        %v3929 = vpop.permute.xlu0 %3928
        %v3932 = vsel %vm1634, %v3911, 0
        %v3935 = vsel %vm1634, %v3912, 0
        %v3938 = vsel %vm1634, %v3913, 0
        %v3941 = vsel %vm1634, %v3914, 0
        %3943 = vmatprep.subr.mxu0 %v3891
        %3944 = vmatpush1.msra.mxu0 %v3889
        %3945 = vmatprep.subr.mxu0 %v3897
        %3946 = vmatpush1.msra.mxu0 %v3895
        %3947 = vmatprep.subr.mxu0 %v3903
        %3948 = vmatpush1.msra.mxu0 %v3901
        %3949 = vmatprep.subr.mxu0 %v3909
        %3950 = vmatpush1.msra.mxu0 %v3907
        %3951 = vmatprep.subr.mxu0 0.0
        %3952 = vmatpush1.msra.mxu0 0.0
        %3953 = vmatprep.subr.mxu0 0.0
        %3954 = vmatpush1.msra.mxu0 0.0
        %3955 = vmatprep.subr.mxu0 0.0
        %3956 = vmatpush1.msra.mxu0 0.0
        %3957 = vmatprep.subr.mxu0 0.0
        %3958 = vmatpush1.msra.mxu0 0.0
        %3959 = vmatprep.subr.mxu0 0.0
        %3960 = vmatpush1.msra.mxu0 0.0
        %3961 = vmatprep.subr.mxu0 0.0
        %3962 = vmatpush1.msra.mxu0 0.0
        %3963 = vmatprep.subr.mxu0 0.0
        %3964 = vmatpush1.msra.mxu0 0.0
        %3965 = vmatprep.subr.mxu0 0.0
        %3966 = vmatpush1.msra.mxu0 0.0
        %3967 = vmatprep.subr.mxu0 0.0
        %3968 = vmatpush1.msra.mxu0 0.0
        %3969 = vmatprep.subr.mxu0 0.0
        %3970 = vmatpush1.msra.mxu0 0.0
        %3971 = vmatprep.subr.mxu0 0.0
        %3972 = vmatpush1.msra.mxu0 0.0
        %3973 = vmatprep.subr.mxu0 0.0
        %3974 = vmatpush1.msra.mxu0 0.0
        %3975 = vmatprep.subr.mxu0 0.0
        %3976 = vmatpush1.msra.mxu0 0.0
        %3977 = vmatprep.subr.mxu0 0.0
        %3978 = vmatpush1.msra.mxu0 0.0
        %3979 = vmatprep.subr.mxu0 0.0
        %3980 = vmatpush1.msra.mxu0 0.0
        %3981 = vmatprep.subr.mxu0 0.0
        %3982 = vmatpush1.msra.mxu0 0.0
        %3983 = vmatprep.subr.mxu0 0.0
        %3984 = vmatpush1.msra.mxu0 0.0
        %3985 = vmatprep.subr.mxu0 0.0
        %3986 = vmatpush1.msra.mxu0 0.0
        %3987 = vmatprep.subr.mxu0 0.0
        %3988 = vmatpush1.msra.mxu0 0.0
        %3989 = vmatprep.subr.mxu0 0.0
        %3990 = vmatpush1.msra.mxu0 0.0
        %3991 = vmatprep.subr.mxu0 0.0
        %3992 = vmatpush1.msra.mxu0 0.0
        %3993 = vmatprep.subr.mxu0 0.0
        %3994 = vmatpush1.msra.mxu0 0.0
        %3995 = vmatprep.subr.mxu0 0.0
        %3996 = vmatpush1.msra.mxu0 0.0
        %3997 = vmatprep.subr.mxu0 0.0
        %3998 = vmatpush1.msra.mxu0 0.0
        %3999 = vmatprep.subr.mxu0 0.0
        %4000 = vmatpush1.msra.mxu0 0.0
        %4001 = vmatprep.subr.mxu0 0.0
        %4002 = vmatpush1.msra.mxu0 0.0
        %4003 = vmatprep.subr.mxu0 0.0
        %4004 = vmatpush1.msra.mxu0 0.0
        %4005 = vmatprep.subr.mxu0 0.0
        %4006 = vmatpush1.msra.mxu0 0.0
        %4007 = vmatprep.mubr.f32.mxu0 0.0
        %4008 = vmatmul.mubr.f32.gmra.mrb[0].mxu0 %v3932
        %v4009 = vpop.f32.mrb[0].mxu0
        %v4010 = vadd.f32 %v3917, %v4009
        %v4011 = vpop.f32.mrb[0].mxu0
        %v4012 = vadd.f32 %v3917, %v4011
        %4013 = vmatprep.mubr.f32.mxu0 0.0
        %4014 = vmatmul.mubr.f32.gmra.mrb[0].mxu0 %v3935
        %v4015 = vpop.f32.mrb[0].mxu0
        %v4016 = vadd.f32 %v3921, %v4015
        %v4017 = vpop.f32.mrb[0].mxu0
        %v4018 = vadd.f32 %v3921, %v4017
        %4019 = vmatprep.mubr.f32.mxu0 0.0
        %4020 = vmatmul.mubr.f32.gmra.mrb[0].mxu0 %v3938
        %v4021 = vpop.f32.mrb[0].mxu0
        %v4022 = vadd.f32 %v3925, %v4021
        %v4023 = vpop.f32.mrb[0].mxu0
        %v4024 = vadd.f32 %v3925, %v4023
        %4025 = vmatprep.mubr.f32.mxu0 0.0
        %4026 = vmatmul.mubr.f32.gmra.mrb[0].mxu0 %v3941
        %v4027 = vpop.f32.mrb[0].mxu0
        %v4028 = vadd.f32 %v3929, %v4027
        %v4029 = vpop.f32.mrb[0].mxu0
        %v4030 = vadd.f32 %v3929, %v4029
        %4031 = vdwg.mxu0
        %v4032 = vld [vmem:[#allocation13] sm:$0xff]
        %v4033 = vld [vmem:[#allocation13 + $0x8] sm:$0xff]
        %v4034 = vld [vmem:[#allocation13 + $0x10] sm:$0xff]
        %v4035 = vld [vmem:[#allocation13 + $0x18] sm:$0xff]
        %4036 = vset.pattern.permute.xlu0 11
        %4037 = vperm.xlu0 %4036, %v999
        %v4038 = vpop.permute.xlu0 %4037
        %4040 = vset.pattern.permute.xlu0 11
        %4041 = vperm.xlu0 %4040, %v1000
        %v4042 = vpop.permute.xlu0 %4041
        %4044 = vset.pattern.permute.xlu0 11
        %4045 = vperm.xlu0 %4044, %v1001
        %v4046 = vpop.permute.xlu0 %4045
        %4048 = vset.pattern.permute.xlu0 11
        %4049 = vperm.xlu0 %4048, %v1002
        %v4050 = vpop.permute.xlu0 %4049
        %v4053 = vsel %vm1634, %v4032, 0
        %v4056 = vsel %vm1634, %v4033, 0
        %v4059 = vsel %vm1634, %v4034, 0
        %v4062 = vsel %vm1634, %v4035, 0
        %4064 = vmatprep.subr.mxu0 %v3326
        %4065 = vmatpush1.msra.mxu0 %v3325
        %4066 = vmatprep.subr.mxu0 %v3328
        %4067 = vmatpush1.msra.mxu0 %v3327
        %4068 = vmatprep.subr.mxu0 %v3330
        %4069 = vmatpush1.msra.mxu0 %v3329
        %4070 = vmatprep.subr.mxu0 %v3332
        %4071 = vmatpush1.msra.mxu0 %v3331
        %4072 = vmatprep.subr.mxu0 0.0
        %4073 = vmatpush1.msra.mxu0 0.0
        %4074 = vmatprep.subr.mxu0 0.0
        %4075 = vmatpush1.msra.mxu0 0.0
        %4076 = vmatprep.subr.mxu0 0.0
        %4077 = vmatpush1.msra.mxu0 0.0
        %4078 = vmatprep.subr.mxu0 0.0
        %4079 = vmatpush1.msra.mxu0 0.0
        %4080 = vmatprep.subr.mxu0 0.0
        %4081 = vmatpush1.msra.mxu0 0.0
        %4082 = vmatprep.subr.mxu0 0.0
        %4083 = vmatpush1.msra.mxu0 0.0
        %4084 = vmatprep.subr.mxu0 0.0
        %4085 = vmatpush1.msra.mxu0 0.0
        %4086 = vmatprep.subr.mxu0 0.0
        %4087 = vmatpush1.msra.mxu0 0.0
        %4088 = vmatprep.subr.mxu0 0.0
        %4089 = vmatpush1.msra.mxu0 0.0
        %4090 = vmatprep.subr.mxu0 0.0
        %4091 = vmatpush1.msra.mxu0 0.0
        %4092 = vmatprep.subr.mxu0 0.0
        %4093 = vmatpush1.msra.mxu0 0.0
        %4094 = vmatprep.subr.mxu0 0.0
        %4095 = vmatpush1.msra.mxu0 0.0
        %4096 = vmatprep.subr.mxu0 0.0
        %4097 = vmatpush1.msra.mxu0 0.0
        %4098 = vmatprep.subr.mxu0 0.0
        %4099 = vmatpush1.msra.mxu0 0.0
        %4100 = vmatprep.subr.mxu0 0.0
        %4101 = vmatpush1.msra.mxu0 0.0
        %4102 = vmatprep.subr.mxu0 0.0
        %4103 = vmatpush1.msra.mxu0 0.0
        %4104 = vmatprep.subr.mxu0 0.0
        %4105 = vmatpush1.msra.mxu0 0.0
        %4106 = vmatprep.subr.mxu0 0.0
        %4107 = vmatpush1.msra.mxu0 0.0
        %4108 = vmatprep.subr.mxu0 0.0
        %4109 = vmatpush1.msra.mxu0 0.0
        %4110 = vmatprep.subr.mxu0 0.0
        %4111 = vmatpush1.msra.mxu0 0.0
        %4112 = vmatprep.subr.mxu0 0.0
        %4113 = vmatpush1.msra.mxu0 0.0
        %4114 = vmatprep.subr.mxu0 0.0
        %4115 = vmatpush1.msra.mxu0 0.0
        %4116 = vmatprep.subr.mxu0 0.0
        %4117 = vmatpush1.msra.mxu0 0.0
        %4118 = vmatprep.subr.mxu0 0.0
        %4119 = vmatpush1.msra.mxu0 0.0
        %4120 = vmatprep.subr.mxu0 0.0
        %4121 = vmatpush1.msra.mxu0 0.0
        %4122 = vmatprep.subr.mxu0 0.0
        %4123 = vmatpush1.msra.mxu0 0.0
        %4124 = vmatprep.subr.mxu0 0.0
        %4125 = vmatpush1.msra.mxu0 0.0
        %4126 = vmatprep.subr.mxu0 0.0
        %4127 = vmatpush1.msra.mxu0 0.0
        %4128 = vmatprep.mubr.f32.mxu0 0.0
        %4129 = vmatmul.mubr.f32.gmra.mrb[0].mxu0 %v4053
        %v4130 = vpop.f32.mrb[0].mxu0
        %v4131 = vadd.f32 %v4038, %v4130
        %v4132 = vpop.f32.mrb[0].mxu0
        %v4133 = vadd.f32 %v4038, %v4132
        %4134 = vmatprep.mubr.f32.mxu0 0.0
        %4135 = vmatmul.mubr.f32.gmra.mrb[0].mxu0 %v4056
        %v4136 = vpop.f32.mrb[0].mxu0
        %v4137 = vadd.f32 %v4042, %v4136
        %v4138 = vpop.f32.mrb[0].mxu0
        %v4139 = vadd.f32 %v4042, %v4138
        %4140 = vmatprep.mubr.f32.mxu0 0.0
        %4141 = vmatmul.mubr.f32.gmra.mrb[0].mxu0 %v4059
        %v4142 = vpop.f32.mrb[0].mxu0
        %v4143 = vadd.f32 %v4046, %v4142
        %v4144 = vpop.f32.mrb[0].mxu0
        %v4145 = vadd.f32 %v4046, %v4144
        %4146 = vmatprep.mubr.f32.mxu0 0.0
        %4147 = vmatmul.mubr.f32.gmra.mrb[0].mxu0 %v4062
        %v4148 = vpop.f32.mrb[0].mxu0
        %v4149 = vadd.f32 %v4050, %v4148
        %v4150 = vpop.f32.mrb[0].mxu0
        %v4151 = vadd.f32 %v4050, %v4150
        %4152 = vdwg.mxu0
        %v4153 = vmax.f32 %v4131, 0.0
        %v4154 = vmax.f32 %v4133, 0.0
        %v4155 = vmax.f32 %v4137, 0.0
        %v4156 = vmax.f32 %v4139, 0.0
        %v4157 = vmax.f32 %v4143, 0.0
        %v4158 = vmax.f32 %v4145, 0.0
        %v4159 = vmax.f32 %v4149, 0.0
        %v4160 = vmax.f32 %v4151, 0.0
        %v4161 = vadd.f32 %v4010, %v4153
        %v4162 = vadd.f32 %v4012, %v4154
        %v4163 = vadd.f32 %v4016, %v4155
        %v4164 = vadd.f32 %v4018, %v4156
        %v4165 = vadd.f32 %v4022, %v4157
        %v4166 = vadd.f32 %v4024, %v4158
        %v4167 = vadd.f32 %v4028, %v4159
        %v4168 = vadd.f32 %v4030, %v4160
        %4169 = vst [vmem:[%s454] sm:$0xff] %v4161
        %4170 = vst [vmem:[%s454 + $0x8] sm:$0xff] %v4162
        %4171 = vst [vmem:[%s454 + $0x10] sm:$0xff] %v4163
        %4172 = vst [vmem:[%s454 + $0x18] sm:$0xff] %v4164
        %4173 = vst [vmem:[%s454 + $0x20] sm:$0xff] %v4165
        %4174 = vst [vmem:[%s454 + $0x28] sm:$0xff] %v4166
        %4175 = vst [vmem:[%s454 + $0x30] sm:$0xff] %v4167
        %4176 = vst [vmem:[%s454 + $0x38] sm:$0xff] %v4168
        %s4177 = sand.u32 %s251, 1
        %s4178 = scalar_lea.sflag [#allocation4], %s4177
        %s4179 = sand.u32 %s251, 1
        %s4180 = smul.addr %s4179, 64
        %s4181 = scalar_lea.vmem [#allocation14], %s4180
        // Predicated region
        $region89: #{tpu_custom_call.1} parent=59 // pred_check
          %p4182 = pneg %p261
        $region90: #{tpu_custom_call.1} parent=59 // pred_check_branch
          %4184 = sbr.rel (%p4182) target = $region92
        $region91: #{tpu_custom_call.1} parent=59 // pred_region
          %s4186 = ssub.s32 1024, 1024
          %4187 = vsyncadd %s4178, %s4186
          %s4188 = smul.addr %s28, 8
          %s4189 = smul.addr %s4188, 128
          %s4190 = scalar_lea.hbm %s10, %s4189
          %s4191 = sshll.u32 %s4181, 4
          %s4192 = int_to_ptr.vmem [resolvable:$true] %s4191
          %4197 = dma.vmem_to_hbm [thread:$0]  %s4192, 1024, %s4190, %s4178, 256, 256, 16
        $region92: #{tpu_custom_call.1} parent=59 // pred_fallthru
          _
      $region60: #{tpu_custom_call.1} parent=5 // pred_fallthru
        _
      %p4198 = scmp.le.s32.totalorder 2, %s23
      // Predicated region
      $region93: #{tpu_custom_call.1} parent=5 // pred_check
        %p4199 = pneg %p4198
      $region94: #{tpu_custom_call.1} parent=5 // pred_check_branch
        %4201 = sbr.rel (%p4199) target = $region96
      $region95: #{tpu_custom_call.1} parent=5 // pred_region
        %s4202 = ssub.s32 %s23, 2
        // Predicated region
        $region97: #{tpu_custom_call.1} parent=95 // pred_check
          %p4203 = pneg %p267
        $region98: #{tpu_custom_call.1} parent=95 // pred_check_branch
          %4205 = sbr.rel (%p4203) target = $region100
        $region99: #{tpu_custom_call.1} parent=95 // pred_region
          %s4206 = sand.u32 %s252, 1
          %s4207 = scalar_lea.sflag [#allocation4], %s4206
          %s4208 = sand.u32 %s252, 1
          %s4209 = smul.addr %s4208, 64
          %s4210 = scalar_lea.vmem [#allocation14], %s4209
          %4211 = dma.done %s4207, 1024
        $region100: #{tpu_custom_call.1} parent=95 // pred_fallthru
          _
      $region96: #{tpu_custom_call.1} parent=5 // pred_fallthru
        _
    $region6: #{tpu_custom_call.1} parent=1 // loop_footer
      %s27 = sadd.s32 1, %s23
    $region7: #{tpu_custom_call.1} parent=1 // loop_footer_branch
      %22 = sbr.rel target = $region3
    $region8: #{tpu_custom_call.1} parent=1 // loop_exit
      _
    %4212 = vsyncpa [#allocation3], 1
    %s4213 = scalar_lea.sflag [#allocation3], 1
    %4214 = vsyncpa %s4213, 1
    %4215 = vsyncpa [#allocation6], 1
    %4216 = vsyncpa [#allocation9], 1
    %4217 = vsyncpa [#allocation12], 1
    %4218 = vsyncpa [#allocation4], 1
    %s4219 = scalar_lea.sflag [#allocation4], 1
    %4220 = vsyncpa %s4219, 1

</llo_original>
